<compile_context>
chip_gen: v5e
topology: v5e:2x2
jax: 0.10.0
libtpu: 0.0.40
codegen_flags: <defaults>
</compile_context>

<pallas_src>
import functools

import jax
import jax.numpy as jnp
from jax.experimental import pallas as pl
from jax.experimental.pallas import tpu as pltpu


# --------------------------------------------------------------------------
# Single fused kernel, streamed over the Cin (K / reduction) axis:
#   per-chunk stats -> BN -> add -> ReLU -> MXU matmul into resident output.
# --------------------------------------------------------------------------
def _fused_kernel(x45_ref, x44_ref, gamma_ref, beta_ref, w_ref, o_ref, *,
                  eps, inv_m):
    k = pl.program_id(0)

    # The (Cout, HW) f32 output block is resident across the reduction axis:
    # zero it on the first step, accumulate into it on every step.
    @pl.when(k == 0)
    def _():
        o_ref[...] = jnp.zeros_like(o_ref)

    # Per-channel batch statistics over the HW (lane) axis, all in f32.
    # Centered two-pass variance (numerically safe for non-zero-mean data),
    # plus a clamp so rsqrt never sees a tiny negative value.
    x45 = x45_ref[...]                                        # (tk, HW) f32
    mean = jnp.sum(x45, axis=1, keepdims=True) * inv_m        # (tk, 1)
    xc = x45 - mean                                           # (tk, HW)
    var = jnp.maximum(jnp.sum(xc * xc, axis=1, keepdims=True) * inv_m, 0.0)
    inv_std = jax.lax.rsqrt(var + eps)                        # (tk, 1)
    scale = gamma_ref[...] * inv_std                          # (tk, 1)

    # BN-normalize + residual add + ReLU (f32 elementwise on the VPU).
    a = jnp.maximum(x44_ref[...] + xc * scale + beta_ref[...], 0.0)

    # 1x1 conv == matmul on the MXU: bf16 operands, f32 accumulation directly
    # into the resident f32 output block.
    o_ref[...] += jnp.dot(w_ref[...], a.astype(jnp.bfloat16),
                          preferred_element_type=jnp.float32)


def _fused_forward(x45_cm, x44_cm, gamma, beta, w_bf16, *, eps):
    c_in, hw = x45_cm.shape
    c_out = w_bf16.shape[0]

    # Cin tile: 256 -> 2 grid steps for Cin=512 (low per-step overhead while
    # still letting BlockSpec double-buffering overlap DMA with compute).
    if c_in % 256 == 0:
        tk = 256
    elif c_in % 128 == 0:
        tk = 128
    else:
        tk = c_in
    grid = (c_in // tk,)

    kernel = functools.partial(_fused_kernel, eps=eps, inv_m=1.0 / hw)
    return pl.pallas_call(
        kernel,
        out_shape=jax.ShapeDtypeStruct((c_out, hw), jnp.float32),
        grid_spec=pltpu.PrefetchScalarGridSpec(
            num_scalar_prefetch=0,
            grid=grid,
            in_specs=[
                # Streamed (tk, HW) chunks; HW=784 is the full minor dim, so
                # the (8,128) divisibility rule is satisfied.
                pl.BlockSpec((tk, hw), lambda k: (k, 0)),     # x45 chunk
                pl.BlockSpec((tk, hw), lambda k: (k, 0)),     # x44 chunk
                pl.BlockSpec((tk, 1), lambda k: (k, 0)),      # gamma chunk
                pl.BlockSpec((tk, 1), lambda k: (k, 0)),      # beta chunk
                pl.BlockSpec((c_out, tk), lambda k: (0, k)),  # W slab (bf16)
            ],
            # Constant index -> output resident in VMEM across the reduction
            # axis; doubles as the f32 accumulator.
            out_specs=pl.BlockSpec((c_out, hw), lambda k: (0, 0)),
        ),
        compiler_params=pltpu.CompilerParams(
            dimension_semantics=("arbitrary",)),
    )(x45_cm, x44_cm, gamma, beta, w_bf16)


# --------------------------------------------------------------------------
# Wrapper reproducing M.forward (training-mode BatchNorm2d, default state):
#   y = Conv1x1(ReLU(x44 + BN(x45)))
# --------------------------------------------------------------------------
@functools.partial(jax.jit, static_argnames=("eps",))
def module_forward(x45, x44, gamma, beta, conv_w, eps=1e-5):
    n, c_in, h, w_sp = x45.shape
    c_out = conv_w.shape[0]
    hw = h * w_sp
    assert n == 1  # TODO(synk): N > 1 would need a batch grid axis / transpose.

    # NCHW (N=1) -> channel-major (C, H*W): a free reshape, no transpose/pad.
    x45_cm = x45.reshape(c_in, hw).astype(jnp.float32)
    x44_cm = x44.reshape(c_in, hw).astype(jnp.float32)

    # Conv weight (Cout, Cin, 1, 1) -> (Cout, Cin); bf16 for the MXU.
    w_mat = conv_w.reshape(c_out, c_in).astype(jnp.bfloat16)

    out_cm = _fused_forward(
        x45_cm, x44_cm,
        gamma.reshape(c_in, 1).astype(jnp.float32),
        beta.reshape(c_in, 1).astype(jnp.float32),
        w_mat, eps=eps)

    # (Cout, H*W) -> NCHW: free reshape.
    return out_cm.reshape(n, c_out, h, w_sp)


def _reference(x45, x44, gamma, beta, conv_w, eps=1e-5):
    mean = jnp.mean(x45, axis=(0, 2, 3), keepdims=True)
    var = jnp.mean((x45 - mean) ** 2, axis=(0, 2, 3), keepdims=True)
    xhat = (x45 - mean) * jax.lax.rsqrt(var + eps)
    bn = xhat * gamma.reshape(1, -1, 1, 1) + beta.reshape(1, -1, 1, 1)
    a = jnp.maximum(x44 + bn, 0.0)
    n, c_in, h, w_sp = a.shape
    c_out = conv_w.shape[0]
    rows = jnp.transpose(a, (0, 2, 3, 1)).reshape(-1, c_in)
    out = rows @ conv_w.reshape(c_out, c_in).T
    return jnp.transpose(out.reshape(n, h, w_sp, c_out), (0, 3, 1, 2))


if __name__ == "__main__":
    key = jax.random.PRNGKey(0)
    k1, k2, k3 = jax.random.split(key, 3)

    # Shapes fixed by the module: BatchNorm2d(512), Conv2d(512 -> 256, 1x1).
    N, C_IN, H, W, C_OUT = 1, 512, 28, 28, 256

    x45 = jax.random.normal(k1, (N, C_IN, H, W), dtype=jnp.float32)
    x44 = jax.random.normal(k2, (N, C_IN, H, W), dtype=jnp.float32)

    # BatchNorm2d params (PyTorch default init: weight=1, bias=0)
    gamma = jnp.ones((C_IN,), dtype=jnp.float32)
    beta = jnp.zeros((C_IN,), dtype=jnp.float32)
    # Conv2d(512, 256, 1, bias=False) weight, deterministic synthetic init
    conv_w = jax.random.normal(k3, (C_OUT, C_IN, 1, 1), dtype=jnp.float32) * 0.05

    out = module_forward(x45, x44, gamma, beta, conv_w)
    out = jax.block_until_ready(out)

    ref = _reference(x45, x44, gamma, beta, conv_w)
    assert out.shape == (N, C_OUT, H, W), out.shape
    # Tolerance reflects bf16 MXU operands (f32 accumulation over K=512).
    assert jnp.allclose(out, ref, atol=3e-2, rtol=3e-2), "mismatch vs reference"

    print("KERNEL_OK")
</pallas_src>

<mosaic_0001>
module attributes {stable_mosaic.version = 11 : i64} {
  func.func @_fused_kernel(%arg0: i32, %arg1: memref<256x784xf32, #tpu.memory_space<vmem>>, %arg2: memref<256x784xf32, #tpu.memory_space<vmem>>, %arg3: memref<256x1xf32, #tpu.memory_space<vmem>>, %arg4: memref<256x1xf32, #tpu.memory_space<vmem>>, %arg5: memref<256x256xbf16, #tpu.memory_space<vmem>>, %arg6: memref<256x784xf32, #tpu.memory_space<vmem>>) attributes {dimension_semantics = [#tpu.dimension_semantics<arbitrary>], iteration_bounds = array<i64: 2>, scalar_prefetch = 0 : i64, scratch_operands = 0 : i64, tpu.core_type = #tpu.core_type<tc>, window_params = [{transform_indices = @transform_0, window_bounds = array<i64: 256, 784>}, {transform_indices = @transform_1, window_bounds = array<i64: 256, 784>}, {transform_indices = @transform_2, window_bounds = array<i64: 256, 1>}, {transform_indices = @transform_3, window_bounds = array<i64: 256, 1>}, {transform_indices = @transform_4, window_bounds = array<i64: 256, 256>}, {pipeline_mode = #tpu.pipeline_mode<synchronous>, transform_indices = @transform_5, window_bounds = array<i64: 256, 784>}]} {
    %c0_i32 = arith.constant 0 : i32
    %0 = arith.cmpi eq, %arg0, %c0_i32 : i32
    %1 = arith.extui %0 : i1 to i32
    %c0_i32_0 = arith.constant 0 : i32
    %2 = arith.cmpi ne, %1, %c0_i32_0 : i32
    scf.if %2 {
      %cst_21 = arith.constant 0.000000e+00 : f32
      %37 = vector.broadcast %cst_21 : f32 to vector<256x784xf32>
      %c0_22 = arith.constant 0 : index
      %c0_23 = arith.constant 0 : index
      %38 = vector.load %arg6[%c0_22, %c0_23] : memref<256x784xf32, #tpu.memory_space<vmem>>, vector<256x784xf32>
      tpu.vector_store %arg6[%c0_22, %c0_23], %37 {strides = array<i32>} : memref<256x784xf32, #tpu.memory_space<vmem>>, vector<256x784xf32>,
    } else {
    }
    %c0 = arith.constant 0 : index
    %c0_1 = arith.constant 0 : index
    %3 = vector.load %arg1[%c0, %c0_1] : memref<256x784xf32, #tpu.memory_space<vmem>>, vector<256x784xf32>
    %cst = arith.constant dense<0.000000e+00> : vector<256xf32>
    %4 = vector.multi_reduction <add>, %3, %cst [1] : vector<256x784xf32> to vector<256xf32>
    %5 = vector.shape_cast %4 : vector<256xf32> to vector<256x1xf32>
    %cst_2 = arith.constant 0.00127551018 : f32
    %6 = vector.broadcast %cst_2 : f32 to vector<256x1xf32>
    %7 = arith.mulf %5, %6 : vector<256x1xf32>
    %8 = vector.broadcast %7 : vector<256x1xf32> to vector<256x784xf32>
    %9 = arith.subf %3, %8 : vector<256x784xf32>
    %10 = arith.mulf %9, %9 : vector<256x784xf32>
    %cst_3 = arith.constant dense<0.000000e+00> : vector<256xf32>
    %11 = vector.multi_reduction <add>, %10, %cst_3 [1] : vector<256x784xf32> to vector<256xf32>
    %12 = vector.shape_cast %11 : vector<256xf32> to vector<256x1xf32>
    %cst_4 = arith.constant 0.00127551018 : f32
    %13 = vector.broadcast %cst_4 : f32 to vector<256x1xf32>
    %14 = arith.mulf %12, %13 : vector<256x1xf32>
    %cst_5 = arith.constant 0.000000e+00 : f32
    %15 = vector.broadcast %cst_5 : f32 to vector<256x1xf32>
    %16 = arith.maximumf %14, %15 : vector<256x1xf32>
    %cst_6 = arith.constant 9.99999974E-6 : f32
    %17 = vector.broadcast %cst_6 : f32 to vector<256x1xf32>
    %18 = arith.addf %16, %17 : vector<256x1xf32>
    %19 = math.rsqrt %18 : vector<256x1xf32>
    %c0_7 = arith.constant 0 : index
    %c0_8 = arith.constant 0 : index
    %20 = vector.load %arg3[%c0_7, %c0_8] : memref<256x1xf32, #tpu.memory_space<vmem>>, vector<256x1xf32>
    %21 = arith.mulf %20, %19 : vector<256x1xf32>
    %c0_9 = arith.constant 0 : index
    %c0_10 = arith.constant 0 : index
    %22 = vector.load %arg2[%c0_9, %c0_10] : memref<256x784xf32, #tpu.memory_space<vmem>>, vector<256x784xf32>
    %23 = vector.broadcast %21 : vector<256x1xf32> to vector<256x784xf32>
    %24 = arith.mulf %9, %23 : vector<256x784xf32>
    %25 = arith.addf %22, %24 : vector<256x784xf32>
    %c0_11 = arith.constant 0 : index
    %c0_12 = arith.constant 0 : index
    %26 = vector.load %arg4[%c0_11, %c0_12] : memref<256x1xf32, #tpu.memory_space<vmem>>, vector<256x1xf32>
    %27 = vector.broadcast %26 : vector<256x1xf32> to vector<256x784xf32>
    %28 = arith.addf %25, %27 : vector<256x784xf32>
    %cst_13 = arith.constant 0.000000e+00 : f32
    %29 = vector.broadcast %cst_13 : f32 to vector<256x784xf32>
    %30 = arith.maximumf %28, %29 : vector<256x784xf32>
    %c0_14 = arith.constant 0 : index
    %c0_15 = arith.constant 0 : index
    %31 = vector.load %arg6[%c0_14, %c0_15] : memref<256x784xf32, #tpu.memory_space<vmem>>, vector<256x784xf32>
    %c0_16 = arith.constant 0 : index
    %c0_17 = arith.constant 0 : index
    %32 = vector.load %arg5[%c0_16, %c0_17] : memref<256x256xbf16, #tpu.memory_space<vmem>>, vector<256x256xbf16>
    %33 = arith.truncf %30 : vector<256x784xf32> to vector<256x784xbf16>
    %cst_18 = arith.constant dense<0.000000e+00> : vector<256x784xf32>
    %34 = tpu.matmul %32, %33, %cst_18 {dimension_numbers = #tpu.dot_dimension_numbers<[1], [0], [0], [1], [0, 0, 1, 1], [], []>} : vector<256x256xbf16>, vector<256x784xbf16>, vector<256x784xf32> -> vector<256x784xf32>
    %35 = arith.addf %31, %34 : vector<256x784xf32>
    %c0_19 = arith.constant 0 : index
    %c0_20 = arith.constant 0 : index
    %36 = vector.load %arg6[%c0_19, %c0_20] : memref<256x784xf32, #tpu.memory_space<vmem>>, vector<256x784xf32>
    tpu.vector_store %arg6[%c0_19, %c0_20], %35 {strides = array<i32>} : memref<256x784xf32, #tpu.memory_space<vmem>>, vector<256x784xf32>,
    return
  }
  func.func @transform_0(%arg0: i32) -> (i32, i32) {
    %c0_i32 = arith.constant 0 : i32
    %c0_i32_0 = arith.constant 0 : i32
    return %arg0, %c0_i32 : i32, i32
  }
  func.func @transform_1(%arg0: i32) -> (i32, i32) {
    %c0_i32 = arith.constant 0 : i32
    %c0_i32_0 = arith.constant 0 : i32
    return %arg0, %c0_i32 : i32, i32
  }
  func.func @transform_2(%arg0: i32) -> (i32, i32) {
    %c0_i32 = arith.constant 0 : i32
    %c0_i32_0 = arith.constant 0 : i32
    return %arg0, %c0_i32 : i32, i32
  }
  func.func @transform_3(%arg0: i32) -> (i32, i32) {
    %c0_i32 = arith.constant 0 : i32
    %c0_i32_0 = arith.constant 0 : i32
    return %arg0, %c0_i32 : i32, i32
  }
  func.func @transform_4(%arg0: i32) -> (i32, i32) {
    %c0_i32 = arith.constant 0 : i32
    %c0_i32_0 = arith.constant 0 : i32
    return %c0_i32, %arg0 : i32, i32
  }
  func.func @transform_5(%arg0: i32) -> (i32, i32) {
    %c0_i32 = arith.constant 0 : i32
    %c0_i32_0 = arith.constant 0 : i32
    %c0_i32_1 = arith.constant 0 : i32
    return %c0_i32, %c0_i32_0 : i32, i32
  }
}

</mosaic_0001>

<llo_original>
// kernel: module_forward.1
$region0: #{module_forward.1}
  #allocation0 [shape = 'u32[]', space=smem, size = 0x4, offset = 0x4, fixed_abs, tag = 'smem constant byte address 0x4 - core index']
  #allocation1 [shape = 'u32[72,128]{1,0:T(1,128)}', space=vmem, size = 0x9000, scoped, tag = 'internal scratch']
  %s0 = inlined_call_operand.vmem [shape: f32[512,784], index: 0, kind: input, shape index: {}]
  %s1 = inlined_call_operand.vmem [shape: f32[512,784], index: 1, kind: input, shape index: {}]
  %s2 = inlined_call_operand.vmem [shape: f32[512,1], index: 2, kind: input, shape index: {}]
  %s3 = inlined_call_operand.vmem [shape: f32[512,1], index: 3, kind: input, shape index: {}]
  %s4 = inlined_call_operand.vmem [shape: bf16[256,512], index: 4, kind: input, shape index: {}]
  %s5 = inlined_call_operand.vmem [shape: f32[256,784], index: 5, kind: output, shape index: {}]
  %s6 = sld [smem:[#allocation0]]
  $region95: #{module_forward.1} parent=0
    _
  %s8 = ssub.s32 1, %s6
  %s9 = scalar_select 0, %s8, %s6
  $region1: #{module_forward.1} parent=0
    #allocation2 [shape = 'u8[262144]{0}', space=vmem, size = 0x40000, scoped, tag = 'input window, operand 4']
    loop: start=0, step=1, limit=4
    $region2: #{module_forward.1} parent=1 // loop_pre_header
      _
    $region3: #{module_forward.1} parent=1 // loop_header
      %s11 = sphi 0, %s15
      %p12 = scmp.ge.s32.totalorder %s11, 4
      %s21 = sphi 0, %s23
      %s24 = sphi 0, %s21
      %s25 = sphi 0, %s24
      %s41 = sphi 0, %s25
      %s47 = sphi 0, %s49
      %s50 = sphi 0, %s47
      %s51 = sphi 0, %s50
      %s67 = sphi 0, %s51
      %s73 = sphi 0, %s75
      %s76 = sphi 0, %s73
      %s77 = sphi 0, %s76
      %s93 = sphi 0, %s77
      %s99 = sphi 0, %s101
      %s102 = sphi 0, %s99
      %s103 = sphi 0, %s102
      %s119 = sphi 0, %s103
      %s125 = sphi 0, %s127
      %s128 = sphi 0, %s125
      %s129 = sphi 0, %s128
      %s145 = sphi 0, %s129
      %s149 = sphi 0, %s149
      %s151 = sphi 0, %s149
      %s152 = sphi 0, %s151
      %s166 = sphi 0, %s152
    $region4: #{module_forward.1} parent=1 // loop_header_branch
      %14 = sbr.rel (%p12) target = $region8
    $region5: #{module_forward.1} parent=1 // loop_body
      %s16 = ssub.s32 %s11, 1
      %s17 = ssub.s32 %s11, 2
      %s18 = sadd.s32 %s11, 1
      %s19 = ssub.s32 %s11, %s18
      %p20 = scmp.eq.s32.totalorder %s19, 0
      %s22 = sadd.s32 %s21, 1
      %s23 = scalar_select %p20, %s21, %s22
      %p26 = pneg %p20
      %p27 = scmp.eq.s32.totalorder %s11, 1
      %p28 = por %p26, %p27
      %p29 = scmp.ne.s32.totalorder %s21, %s24
      %p30 = scmp.eq.s32.totalorder %s11, 0
      %p31 = por %p29, %p30
      %p32 = scmp.ne.s32.totalorder %s21, %s24
      %p33 = scmp.eq.s32.totalorder %s16, 1
      %p34 = por %p32, %p33
      %p35 = scmp.ne.s32.totalorder %s24, %s25
      %p36 = scmp.eq.s32.totalorder %s16, 0
      %p37 = por %p35, %p36
      %p38 = scmp.ne.s32.totalorder %s24, %s25
      %p39 = scmp.eq.s32.totalorder %s17, 1
      %p40 = por %p38, %p39
      %p42 = scmp.ne.s32.totalorder %s25, %s41
      %p43 = scmp.eq.s32.totalorder %s17, 0
      %p44 = por %p42, %p43
      %s45 = ssub.s32 %s11, %s18
      %p46 = scmp.eq.s32.totalorder %s45, 0
      %s48 = sadd.s32 %s47, 1
      %s49 = scalar_select %p46, %s47, %s48
      %p52 = pneg %p46
      %p53 = scmp.eq.s32.totalorder %s11, 1
      %p54 = por %p52, %p53
      %p55 = scmp.ne.s32.totalorder %s47, %s50
      %p56 = scmp.eq.s32.totalorder %s11, 0
      %p57 = por %p55, %p56
      %p58 = scmp.ne.s32.totalorder %s47, %s50
      %p59 = scmp.eq.s32.totalorder %s16, 1
      %p60 = por %p58, %p59
      %p61 = scmp.ne.s32.totalorder %s50, %s51
      %p62 = scmp.eq.s32.totalorder %s16, 0
      %p63 = por %p61, %p62
      %p64 = scmp.ne.s32.totalorder %s50, %s51
      %p65 = scmp.eq.s32.totalorder %s17, 1
      %p66 = por %p64, %p65
      %p68 = scmp.ne.s32.totalorder %s51, %s67
      %p69 = scmp.eq.s32.totalorder %s17, 0
      %p70 = por %p68, %p69
      %s71 = ssub.s32 %s11, %s18
      %p72 = scmp.eq.s32.totalorder %s71, 0
      %s74 = sadd.s32 %s73, 1
      %s75 = scalar_select %p72, %s73, %s74
      %p78 = pneg %p72
      %p79 = scmp.eq.s32.totalorder %s11, 1
      %p80 = por %p78, %p79
      %p81 = scmp.ne.s32.totalorder %s73, %s76
      %p82 = scmp.eq.s32.totalorder %s11, 0
      %p83 = por %p81, %p82
      %p84 = scmp.ne.s32.totalorder %s73, %s76
      %p85 = scmp.eq.s32.totalorder %s16, 1
      %p86 = por %p84, %p85
      %p87 = scmp.ne.s32.totalorder %s76, %s77
      %p88 = scmp.eq.s32.totalorder %s16, 0
      %p89 = por %p87, %p88
      %p90 = scmp.ne.s32.totalorder %s76, %s77
      %p91 = scmp.eq.s32.totalorder %s17, 1
      %p92 = por %p90, %p91
      %p94 = scmp.ne.s32.totalorder %s77, %s93
      %p95 = scmp.eq.s32.totalorder %s17, 0
      %p96 = por %p94, %p95
      %s97 = ssub.s32 %s11, %s18
      %p98 = scmp.eq.s32.totalorder %s97, 0
      %s100 = sadd.s32 %s99, 1
      %s101 = scalar_select %p98, %s99, %s100
      %p104 = pneg %p98
      %p105 = scmp.eq.s32.totalorder %s11, 1
      %p106 = por %p104, %p105
      %p107 = scmp.ne.s32.totalorder %s99, %s102
      %p108 = scmp.eq.s32.totalorder %s11, 0
      %p109 = por %p107, %p108
      %p110 = scmp.ne.s32.totalorder %s99, %s102
      %p111 = scmp.eq.s32.totalorder %s16, 1
      %p112 = por %p110, %p111
      %p113 = scmp.ne.s32.totalorder %s102, %s103
      %p114 = scmp.eq.s32.totalorder %s16, 0
      %p115 = por %p113, %p114
      %p116 = scmp.ne.s32.totalorder %s102, %s103
      %p117 = scmp.eq.s32.totalorder %s17, 1
      %p118 = por %p116, %p117
      %p120 = scmp.ne.s32.totalorder %s103, %s119
      %p121 = scmp.eq.s32.totalorder %s17, 0
      %p122 = por %p120, %p121
      %s123 = ssub.s32 %s11, %s18
      %p124 = scmp.eq.s32.totalorder %s123, 0
      %s126 = sadd.s32 %s125, 1
      %s127 = scalar_select %p124, %s125, %s126
      %p130 = pneg %p124
      %p131 = scmp.eq.s32.totalorder %s11, 1
      %p132 = por %p130, %p131
      %p133 = scmp.ne.s32.totalorder %s125, %s128
      %p134 = scmp.eq.s32.totalorder %s11, 0
      %p135 = por %p133, %p134
      %p136 = scmp.ne.s32.totalorder %s125, %s128
      %p137 = scmp.eq.s32.totalorder %s16, 1
      %p138 = por %p136, %p137
      %p139 = scmp.ne.s32.totalorder %s128, %s129
      %p140 = scmp.eq.s32.totalorder %s16, 0
      %p141 = por %p139, %p140
      %p142 = scmp.ne.s32.totalorder %s128, %s129
      %p143 = scmp.eq.s32.totalorder %s17, 1
      %p144 = por %p142, %p143
      %p146 = scmp.ne.s32.totalorder %s129, %s145
      %p147 = scmp.eq.s32.totalorder %s17, 0
      %p148 = por %p146, %p147
      %s150 = sadd.s32 %s149, 1
      %p153 = scmp.eq.s32.totalorder %s11, 1
      %p154 = scmp.ne.s32.totalorder %s149, %s151
      %p155 = scmp.eq.s32.totalorder %s11, 0
      %p156 = por %p154, %p155
      %p157 = scmp.ne.s32.totalorder %s149, %s151
      %p158 = scmp.eq.s32.totalorder %s16, 1
      %p159 = por %p157, %p158
      %p160 = scmp.ne.s32.totalorder %s151, %s152
      %p161 = scmp.eq.s32.totalorder %s16, 0
      %p162 = por %p160, %p161
      %p163 = scmp.ne.s32.totalorder %s151, %s152
      %p164 = scmp.eq.s32.totalorder %s17, 1
      %p165 = por %p163, %p164
      %p167 = scmp.ne.s32.totalorder %s152, %s166
      %p168 = scmp.eq.s32.totalorder %s17, 0
      %p169 = por %p167, %p168
      %p170 = scmp.le.s32.totalorder 1, %s11
      %p171 = scmp.lt.s32.totalorder %s11, 3
      %p172 = pnand %p170, %p171
      %p173 = pneg %p172
      // Predicated region
      $region9: #{module_forward.1} parent=5 // pred_check
        _
      $region10: #{module_forward.1} parent=5 // pred_check_branch
        %175 = sbr.rel (%p172) target = $region12
      $region11: #{module_forward.1} parent=5 // pred_region
        %s176 = ssub.s32 %s11, 1
      $region12: #{module_forward.1} parent=5 // pred_fallthru
        _
      %p177 = scmp.lt.s32.totalorder %s11, 2
      // Predicated region
      $region13: #{module_forward.1} parent=5 // pred_check
        %p178 = pneg %p177
      $region14: #{module_forward.1} parent=5 // pred_check_branch
        %180 = sbr.rel (%p178) target = $region16
      $region15: #{module_forward.1} parent=5 // pred_region
        // Predicated region
        $region17: #{module_forward.1} parent=15 // pred_check
          %p181 = pneg %p31
        $region18: #{module_forward.1} parent=15 // pred_check_branch
          %183 = sbr.rel (%p181) target = $region20
        $region19: #{module_forward.1} parent=15 // pred_region
          %s184 = smul.u32 32, %s11
          %p185 = scmp.lt.s32.totalorder %s184, 63
          %s186 = scalar_select %p185, %s184, 63
          %s187 = smul.addr %s186, 7
          %s188 = smul.addr %s187, 8
          %s189 = scalar_lea.vmem %s0, %s188
          %s190 = smul.u32 32, %s11
        $region20: #{module_forward.1} parent=15 // pred_fallthru
          _
        // Predicated region
        $region21: #{module_forward.1} parent=15 // pred_check
          %p191 = pneg %p57
        $region22: #{module_forward.1} parent=15 // pred_check_branch
          %193 = sbr.rel (%p191) target = $region24
        $region23: #{module_forward.1} parent=15 // pred_region
          %s194 = smul.u32 32, %s11
          %p195 = scmp.lt.s32.totalorder %s194, 63
          %s196 = scalar_select %p195, %s194, 63
          %s197 = smul.addr %s196, 7
          %s198 = smul.addr %s197, 8
          %s199 = scalar_lea.vmem %s1, %s198
          %s200 = smul.u32 32, %s11
        $region24: #{module_forward.1} parent=15 // pred_fallthru
          _
        // Predicated region
        $region25: #{module_forward.1} parent=15 // pred_check
          %p201 = pneg %p83
        $region26: #{module_forward.1} parent=15 // pred_check_branch
          %203 = sbr.rel (%p201) target = $region28
        $region27: #{module_forward.1} parent=15 // pred_region
          %s204 = smul.u32 32, %s11
          %p205 = scmp.lt.s32.totalorder %s204, 63
          %s206 = scalar_select %p205, %s204, 63
          %s207 = smul.addr %s206, 8
          %s208 = scalar_lea.vmem %s2, %s207
          %s209 = smul.u32 32, %s11
        $region28: #{module_forward.1} parent=15 // pred_fallthru
          _
        // Predicated region
        $region29: #{module_forward.1} parent=15 // pred_check
          %p210 = pneg %p109
        $region30: #{module_forward.1} parent=15 // pred_check_branch
          %212 = sbr.rel (%p210) target = $region32
        $region31: #{module_forward.1} parent=15 // pred_region
          %s213 = smul.u32 32, %s11
          %p214 = scmp.lt.s32.totalorder %s213, 63
          %s215 = scalar_select %p214, %s213, 63
          %s216 = smul.addr %s215, 8
          %s217 = scalar_lea.vmem %s3, %s216
          %s218 = smul.u32 32, %s11
        $region32: #{module_forward.1} parent=15 // pred_fallthru
          _
        // Predicated region
        $region33: #{module_forward.1} parent=15 // pred_check
          %p219 = pneg %p135
        $region34: #{module_forward.1} parent=15 // pred_check_branch
          %221 = sbr.rel (%p219) target = $region36
        $region35: #{module_forward.1} parent=15 // pred_region
          %s222 = sand.u32 %s125, 1
          %s223 = sand.u32 %s125, 1
          %s224 = smul.addr %s223, 256
          %s225 = scalar_lea.vmem [#allocation2], %s224
          %s226 = smul.u32 2, %s11
          %s227 = smul.addr %s226, 4
          %s228 = scalar_lea.vmem %s4, %s227
          // Predicated region
          $region37: #{module_forward.1} parent=35 // pred_check
            _
          $region38: #{module_forward.1} parent=35 // pred_check_branch
            %230 = sbr.rel (0) target = $region40
          $region39: #{module_forward.1} parent=35 // pred_region
            // Predicated region
            $region41: #{module_forward.1} parent=39 // pred_check
              _
            $region42: #{module_forward.1} parent=39 // pred_check_branch
              %232 = sbr.rel (0) target = $region44
            $region43: #{module_forward.1} parent=39 // pred_region
              // Predicated region
              $region56: #{module_forward.1} parent=43 // pred_check
                _
              $region57: #{module_forward.1} parent=43 // pred_check_branch
                %310 = sbr.rel (0) target = $region59
              $region58: #{module_forward.1} parent=43 // pred_region
                loop: start=0, step=1, limit=1
                $region60: #{module_forward.1} parent=58 // loop_pre_header
                  _
                $region61: #{module_forward.1} parent=58 // loop_header
                  %s312 = sphi 0, %s316
                  %p313 = scmp.ge.s32.totalorder %s312, 1
                  %s317 = sphi %s228, %s228
                  %s318 = sphi %s225, %s225
                $region62: #{module_forward.1} parent=58 // loop_header_branch
                  %315 = sbr.rel (%p313) target = $region66
                $region63: #{module_forward.1} parent=58 // loop_body
                  %v319 = vld [vmem:[%s317] sm:$0xff]
                  %320 = vst [vmem:[%s318] sm:$0xff] %v319
                  %v321 = vld [vmem:[%s317 + $0x10] sm:$0xff]
                  %322 = vst [vmem:[%s318 + $0x8] sm:$0xff] %v321
                  %v323 = vld [vmem:[%s317 + $0x20] sm:$0xff]
                  %324 = vst [vmem:[%s318 + $0x10] sm:$0xff] %v323
                  %v325 = vld [vmem:[%s317 + $0x30] sm:$0xff]
                  %326 = vst [vmem:[%s318 + $0x18] sm:$0xff] %v325
                  %v327 = vld [vmem:[%s317 + $0x40] sm:$0xff]
                  %328 = vst [vmem:[%s318 + $0x20] sm:$0xff] %v327
                  %v329 = vld [vmem:[%s317 + $0x50] sm:$0xff]
                  %330 = vst [vmem:[%s318 + $0x28] sm:$0xff] %v329
                  %v331 = vld [vmem:[%s317 + $0x60] sm:$0xff]
                  %332 = vst [vmem:[%s318 + $0x30] sm:$0xff] %v331
                  %v333 = vld [vmem:[%s317 + $0x70] sm:$0xff]
                  %334 = vst [vmem:[%s318 + $0x38] sm:$0xff] %v333
                  %v335 = vld [vmem:[%s317 + $0x80] sm:$0xff]
                  %336 = vst [vmem:[%s318 + $0x40] sm:$0xff] %v335
                  %v337 = vld [vmem:[%s317 + $0x90] sm:$0xff]
                  %338 = vst [vmem:[%s318 + $0x48] sm:$0xff] %v337
                  %v339 = vld [vmem:[%s317 + $0xa0] sm:$0xff]
                  %340 = vst [vmem:[%s318 + $0x50] sm:$0xff] %v339
                  %v341 = vld [vmem:[%s317 + $0xb0] sm:$0xff]
                  %342 = vst [vmem:[%s318 + $0x58] sm:$0xff] %v341
                  %v343 = vld [vmem:[%s317 + $0xc0] sm:$0xff]
                  %344 = vst [vmem:[%s318 + $0x60] sm:$0xff] %v343
                  %v345 = vld [vmem:[%s317 + $0xd0] sm:$0xff]
                  %346 = vst [vmem:[%s318 + $0x68] sm:$0xff] %v345
                  %v347 = vld [vmem:[%s317 + $0xe0] sm:$0xff]
                  %348 = vst [vmem:[%s318 + $0x70] sm:$0xff] %v347
                  %v349 = vld [vmem:[%s317 + $0xf0] sm:$0xff]
                  %350 = vst [vmem:[%s318 + $0x78] sm:$0xff] %v349
                  %v351 = vld [vmem:[%s317 + $0x100] sm:$0xff]
                  %352 = vst [vmem:[%s318 + $0x80] sm:$0xff] %v351
                  %v353 = vld [vmem:[%s317 + $0x110] sm:$0xff]
                  %354 = vst [vmem:[%s318 + $0x88] sm:$0xff] %v353
                  %v355 = vld [vmem:[%s317 + $0x120] sm:$0xff]
                  %356 = vst [vmem:[%s318 + $0x90] sm:$0xff] %v355
                  %v357 = vld [vmem:[%s317 + $0x130] sm:$0xff]
                  %358 = vst [vmem:[%s318 + $0x98] sm:$0xff] %v357
                  %v359 = vld [vmem:[%s317 + $0x140] sm:$0xff]
                  %360 = vst [vmem:[%s318 + $0xa0] sm:$0xff] %v359
                  %v361 = vld [vmem:[%s317 + $0x150] sm:$0xff]
                  %362 = vst [vmem:[%s318 + $0xa8] sm:$0xff] %v361
                  %v363 = vld [vmem:[%s317 + $0x160] sm:$0xff]
                  %364 = vst [vmem:[%s318 + $0xb0] sm:$0xff] %v363
                  %v365 = vld [vmem:[%s317 + $0x170] sm:$0xff]
                  %366 = vst [vmem:[%s318 + $0xb8] sm:$0xff] %v365
                  %v367 = vld [vmem:[%s317 + $0x180] sm:$0xff]
                  %368 = vst [vmem:[%s318 + $0xc0] sm:$0xff] %v367
                  %v369 = vld [vmem:[%s317 + $0x190] sm:$0xff]
                  %370 = vst [vmem:[%s318 + $0xc8] sm:$0xff] %v369
                  %v371 = vld [vmem:[%s317 + $0x1a0] sm:$0xff]
                  %372 = vst [vmem:[%s318 + $0xd0] sm:$0xff] %v371
                  %v373 = vld [vmem:[%s317 + $0x1b0] sm:$0xff]
                  %374 = vst [vmem:[%s318 + $0xd8] sm:$0xff] %v373
                  %v375 = vld [vmem:[%s317 + $0x1c0] sm:$0xff]
                  %376 = vst [vmem:[%s318 + $0xe0] sm:$0xff] %v375
                  %v377 = vld [vmem:[%s317 + $0x1d0] sm:$0xff]
                  %378 = vst [vmem:[%s318 + $0xe8] sm:$0xff] %v377
                  %v379 = vld [vmem:[%s317 + $0x1e0] sm:$0xff]
                  %380 = vst [vmem:[%s318 + $0xf0] sm:$0xff] %v379
                  %v381 = vld [vmem:[%s317 + $0x1f0] sm:$0xff]
                  %382 = vst [vmem:[%s318 + $0xf8] sm:$0xff] %v381
                $region64: #{module_forward.1} parent=58 // loop_footer
                  %s316 = sadd.s32 1, %s312
                $region65: #{module_forward.1} parent=58 // loop_footer_branch
                  %311 = sbr.rel target = $region61
                $region66: #{module_forward.1} parent=58 // loop_exit
                  _
              $region59: #{module_forward.1} parent=43 // pred_fallthru
                _
              // Predicated region
              $region67: #{module_forward.1} parent=43 // pred_check
                _
              $region68: #{module_forward.1} parent=43 // pred_check_branch
                %384 = sbr.rel target = $region70
              $region69: #{module_forward.1} parent=43 // pred_region
                _
              $region70: #{module_forward.1} parent=43 // pred_fallthru
                _
            $region44: #{module_forward.1} parent=39 // pred_fallthru
              _
            // Predicated region
            $region45: #{module_forward.1} parent=39 // pred_check
              _
            $region46: #{module_forward.1} parent=39 // pred_check_branch
              %234 = sbr.rel target = $region48
            $region47: #{module_forward.1} parent=39 // pred_region
              %s236 = ssub.s32 256, 1
              loop: start=0, step=1, limit=1
              $region49: #{module_forward.1} parent=47 // loop_pre_header
                _
              $region50: #{module_forward.1} parent=47 // loop_header
                %s238 = sphi 0, %s242
                %p239 = scmp.ge.s32.totalorder %s238, 1
                %s243 = sphi %s228, %s228
                %s244 = sphi %s225, %s225
              $region51: #{module_forward.1} parent=47 // loop_header_branch
                %241 = sbr.rel (%p239) target = $region55
              $region52: #{module_forward.1} parent=47 // loop_body
                %v245 = vld [vmem:[%s243] sm:%s236]
                %246 = vst [vmem:[%s244] sm:%s236] %v245
                %v247 = vld [vmem:[%s243 + $0x10] sm:%s236]
                %248 = vst [vmem:[%s244 + $0x8] sm:%s236] %v247
                %v249 = vld [vmem:[%s243 + $0x20] sm:%s236]
                %250 = vst [vmem:[%s244 + $0x10] sm:%s236] %v249
                %v251 = vld [vmem:[%s243 + $0x30] sm:%s236]
                %252 = vst [vmem:[%s244 + $0x18] sm:%s236] %v251
                %v253 = vld [vmem:[%s243 + $0x40] sm:%s236]
                %254 = vst [vmem:[%s244 + $0x20] sm:%s236] %v253
                %v255 = vld [vmem:[%s243 + $0x50] sm:%s236]
                %256 = vst [vmem:[%s244 + $0x28] sm:%s236] %v255
                %v257 = vld [vmem:[%s243 + $0x60] sm:%s236]
                %258 = vst [vmem:[%s244 + $0x30] sm:%s236] %v257
                %v259 = vld [vmem:[%s243 + $0x70] sm:%s236]
                %260 = vst [vmem:[%s244 + $0x38] sm:%s236] %v259
                %v261 = vld [vmem:[%s243 + $0x80] sm:%s236]
                %262 = vst [vmem:[%s244 + $0x40] sm:%s236] %v261
                %v263 = vld [vmem:[%s243 + $0x90] sm:%s236]
                %264 = vst [vmem:[%s244 + $0x48] sm:%s236] %v263
                %v265 = vld [vmem:[%s243 + $0xa0] sm:%s236]
                %266 = vst [vmem:[%s244 + $0x50] sm:%s236] %v265
                %v267 = vld [vmem:[%s243 + $0xb0] sm:%s236]
                %268 = vst [vmem:[%s244 + $0x58] sm:%s236] %v267
                %v269 = vld [vmem:[%s243 + $0xc0] sm:%s236]
                %270 = vst [vmem:[%s244 + $0x60] sm:%s236] %v269
                %v271 = vld [vmem:[%s243 + $0xd0] sm:%s236]
                %272 = vst [vmem:[%s244 + $0x68] sm:%s236] %v271
                %v273 = vld [vmem:[%s243 + $0xe0] sm:%s236]
                %274 = vst [vmem:[%s244 + $0x70] sm:%s236] %v273
                %v275 = vld [vmem:[%s243 + $0xf0] sm:%s236]
                %276 = vst [vmem:[%s244 + $0x78] sm:%s236] %v275
                %v277 = vld [vmem:[%s243 + $0x100] sm:%s236]
                %278 = vst [vmem:[%s244 + $0x80] sm:%s236] %v277
                %v279 = vld [vmem:[%s243 + $0x110] sm:%s236]
                %280 = vst [vmem:[%s244 + $0x88] sm:%s236] %v279
                %v281 = vld [vmem:[%s243 + $0x120] sm:%s236]
                %282 = vst [vmem:[%s244 + $0x90] sm:%s236] %v281
                %v283 = vld [vmem:[%s243 + $0x130] sm:%s236]
                %284 = vst [vmem:[%s244 + $0x98] sm:%s236] %v283
                %v285 = vld [vmem:[%s243 + $0x140] sm:%s236]
                %286 = vst [vmem:[%s244 + $0xa0] sm:%s236] %v285
                %v287 = vld [vmem:[%s243 + $0x150] sm:%s236]
                %288 = vst [vmem:[%s244 + $0xa8] sm:%s236] %v287
                %v289 = vld [vmem:[%s243 + $0x160] sm:%s236]
                %290 = vst [vmem:[%s244 + $0xb0] sm:%s236] %v289
                %v291 = vld [vmem:[%s243 + $0x170] sm:%s236]
                %292 = vst [vmem:[%s244 + $0xb8] sm:%s236] %v291
                %v293 = vld [vmem:[%s243 + $0x180] sm:%s236]
                %294 = vst [vmem:[%s244 + $0xc0] sm:%s236] %v293
                %v295 = vld [vmem:[%s243 + $0x190] sm:%s236]
                %296 = vst [vmem:[%s244 + $0xc8] sm:%s236] %v295
                %v297 = vld [vmem:[%s243 + $0x1a0] sm:%s236]
                %298 = vst [vmem:[%s244 + $0xd0] sm:%s236] %v297
                %v299 = vld [vmem:[%s243 + $0x1b0] sm:%s236]
                %300 = vst [vmem:[%s244 + $0xd8] sm:%s236] %v299
                %v301 = vld [vmem:[%s243 + $0x1c0] sm:%s236]
                %302 = vst [vmem:[%s244 + $0xe0] sm:%s236] %v301
                %v303 = vld [vmem:[%s243 + $0x1d0] sm:%s236]
                %304 = vst [vmem:[%s244 + $0xe8] sm:%s236] %v303
                %v305 = vld [vmem:[%s243 + $0x1e0] sm:%s236]
                %306 = vst [vmem:[%s244 + $0xf0] sm:%s236] %v305
                %v307 = vld [vmem:[%s243 + $0x1f0] sm:%s236]
                %308 = vst [vmem:[%s244 + $0xf8] sm:%s236] %v307
              $region53: #{module_forward.1} parent=47 // loop_footer
                %s242 = sadd.s32 1, %s238
              $region54: #{module_forward.1} parent=47 // loop_footer_branch
                %237 = sbr.rel target = $region50
              $region55: #{module_forward.1} parent=47 // loop_exit
                _
            $region48: #{module_forward.1} parent=39 // pred_fallthru
              _
          $region40: #{module_forward.1} parent=35 // pred_fallthru
            _
          %385 = vnop
        $region36: #{module_forward.1} parent=15 // pred_fallthru
          _
      $region16: #{module_forward.1} parent=5 // pred_fallthru
        _
      %p386 = scmp.le.s32.totalorder 1, %s11
      %p387 = scmp.lt.s32.totalorder %s11, 3
      %p388 = pnand %p386, %p387
      %p389 = pneg %p388
      // Predicated region
      $region71: #{module_forward.1} parent=5 // pred_check
        _
      $region72: #{module_forward.1} parent=5 // pred_check_branch
        %391 = sbr.rel (%p388) target = $region74
      $region73: #{module_forward.1} parent=5 // pred_region
        %s392 = ssub.s32 %s11, 1
        %s393 = sand.u32 %s128, 1
        %s394 = sand.u32 %s128, 1
        %s395 = smul.addr %s394, 256
        %s396 = scalar_lea.vmem [#allocation2], %s395
        // Predicated region
        $region75: #{module_forward.1} parent=73 // pred_check
          %p397 = pneg %p141
        $region76: #{module_forward.1} parent=73 // pred_check_branch
          %399 = sbr.rel (%p397) target = $region78
        $region77: #{module_forward.1} parent=73 // pred_region
          _
        $region78: #{module_forward.1} parent=73 // pred_fallthru
          _
        %s400 = smul.u32 32, %s16
        %p401 = scmp.lt.s32.totalorder %s400, 63
        %s402 = scalar_select %p401, %s400, 63
        %s403 = smul.addr %s402, 7
        %s404 = smul.addr %s403, 8
        %s405 = scalar_lea.vmem %s0, %s404
        %p406 = pneg %p37
        %p407 = pneg %p34
        %s408 = smul.u32 32, %s16
        %p409 = scmp.lt.s32.totalorder %s408, 63
        %s410 = scalar_select %p409, %s408, 63
        %s411 = smul.addr %s410, 7
        %s412 = smul.addr %s411, 8
        %s413 = scalar_lea.vmem %s1, %s412
        %p414 = pneg %p63
        %p415 = pneg %p60
        %s416 = smul.u32 32, %s16
        %p417 = scmp.lt.s32.totalorder %s416, 63
        %s418 = scalar_select %p417, %s416, 63
        %s419 = smul.addr %s418, 8
        %s420 = scalar_lea.vmem %s2, %s419
        %p421 = pneg %p89
        %p422 = pneg %p86
        %s423 = smul.u32 32, %s16
        %p424 = scmp.lt.s32.totalorder %s423, 63
        %s425 = scalar_select %p424, %s423, 63
        %s426 = smul.addr %s425, 8
        %s427 = scalar_lea.vmem %s3, %s426
        %p428 = pneg %p115
        %p429 = pneg %p112
        %s430 = sand.u32 %s128, 1
        %s431 = sand.u32 %s128, 1
        %s432 = smul.addr %s431, 256
        %s433 = scalar_lea.vmem [#allocation2], %s432
        %p434 = pneg %p141
        %p435 = pneg %p138
        %p436 = pneg %p162
        %p437 = pneg %p159
        %s438 = smul.u32 32, %s16
        %p439 = scmp.lt.s32.totalorder %s438, 63
        %s440 = scalar_select %p439, %s438, 63
        %s441 = smul.addr %s440, 7
        %s442 = smul.addr %s441, 8
        %s443 = scalar_lea.vmem %s0, %s442
        %s444 = smul.u32 32, %s16
        %s445 = smul.u32 32, %s16
        %p446 = scmp.lt.s32.totalorder %s445, 63
        %s447 = scalar_select %p446, %s445, 63
        %s448 = smul.addr %s447, 7
        %s449 = smul.addr %s448, 8
        %s450 = scalar_lea.vmem %s1, %s449
        %s451 = smul.u32 32, %s16
        %s452 = smul.u32 32, %s16
        %p453 = scmp.lt.s32.totalorder %s452, 63
        %s454 = scalar_select %p453, %s452, 63
        %s455 = smul.addr %s454, 8
        %s456 = scalar_lea.vmem %s2, %s455
        %s457 = smul.u32 32, %s16
        %s458 = smul.u32 32, %s16
        %p459 = scmp.lt.s32.totalorder %s458, 63
        %s460 = scalar_select %p459, %s458, 63
        %s461 = smul.addr %s460, 8
        %s462 = scalar_lea.vmem %s3, %s461
        %s463 = smul.u32 32, %s16
        %s464 = smul.u32 2, %s16
        %p465 = scmp.eq.s32.totalorder %s16, 0
        // Predicated region
        $region79: #{module_forward.1} parent=73 // pred_check
          %p466 = pneg %p465
        $region80: #{module_forward.1} parent=73 // pred_check_branch
          %468 = sbr.rel (%p466) target = $region82
        $region81: #{module_forward.1} parent=73 // pred_region
          %469 = vst [vmem:[%s5] sm:$0xff] 0.0
          %470 = vst [vmem:[%s5 + $0x8] sm:$0xff] 0.0
          %471 = vst [vmem:[%s5 + $0x10] sm:$0xff] 0.0
          %472 = vst [vmem:[%s5 + $0x18] sm:$0xff] 0.0
          %473 = vst [vmem:[%s5 + $0x20] sm:$0xff] 0.0
          %474 = vst [vmem:[%s5 + $0x28] sm:$0xff] 0.0
          %vm475 = vcmask 130048
          %476 = vst.msk [vmem:[%s5 + $0x30] sm:$0xff] %vm475, 0.0
          %477 = vst [vmem:[%s5 + $0x38] sm:$0xff] 0.0
          %478 = vst [vmem:[%s5 + $0x40] sm:$0xff] 0.0
          %479 = vst [vmem:[%s5 + $0x48] sm:$0xff] 0.0
          %480 = vst [vmem:[%s5 + $0x50] sm:$0xff] 0.0
          %481 = vst [vmem:[%s5 + $0x58] sm:$0xff] 0.0
          %482 = vst [vmem:[%s5 + $0x60] sm:$0xff] 0.0
          %483 = vst.msk [vmem:[%s5 + $0x68] sm:$0xff] %vm475, 0.0
          %484 = vst [vmem:[%s5 + $0x70] sm:$0xff] 0.0
          %485 = vst [vmem:[%s5 + $0x78] sm:$0xff] 0.0
          %486 = vst [vmem:[%s5 + $0x80] sm:$0xff] 0.0
          %487 = vst [vmem:[%s5 + $0x88] sm:$0xff] 0.0
          %488 = vst [vmem:[%s5 + $0x90] sm:$0xff] 0.0
          %489 = vst [vmem:[%s5 + $0x98] sm:$0xff] 0.0
          %490 = vst.msk [vmem:[%s5 + $0xa0] sm:$0xff] %vm475, 0.0
          %491 = vst [vmem:[%s5 + $0xa8] sm:$0xff] 0.0
          %492 = vst [vmem:[%s5 + $0xb0] sm:$0xff] 0.0
          %493 = vst [vmem:[%s5 + $0xb8] sm:$0xff] 0.0
          %494 = vst [vmem:[%s5 + $0xc0] sm:$0xff] 0.0
          %495 = vst [vmem:[%s5 + $0xc8] sm:$0xff] 0.0
          %496 = vst [vmem:[%s5 + $0xd0] sm:$0xff] 0.0
          %497 = vst.msk [vmem:[%s5 + $0xd8] sm:$0xff] %vm475, 0.0
          %498 = vst [vmem:[%s5 + $0xe0] sm:$0xff] 0.0
          %499 = vst [vmem:[%s5 + $0xe8] sm:$0xff] 0.0
          %500 = vst [vmem:[%s5 + $0xf0] sm:$0xff] 0.0
          %501 = vst [vmem:[%s5 + $0xf8] sm:$0xff] 0.0
          %502 = vst [vmem:[%s5 + $0x100] sm:$0xff] 0.0
          %503 = vst [vmem:[%s5 + $0x108] sm:$0xff] 0.0
          %504 = vst.msk [vmem:[%s5 + $0x110] sm:$0xff] %vm475, 0.0
          %505 = vst [vmem:[%s5 + $0x118] sm:$0xff] 0.0
          %506 = vst [vmem:[%s5 + $0x120] sm:$0xff] 0.0
          %507 = vst [vmem:[%s5 + $0x128] sm:$0xff] 0.0
          %508 = vst [vmem:[%s5 + $0x130] sm:$0xff] 0.0
          %509 = vst [vmem:[%s5 + $0x138] sm:$0xff] 0.0
          %510 = vst [vmem:[%s5 + $0x140] sm:$0xff] 0.0
          %511 = vst.msk [vmem:[%s5 + $0x148] sm:$0xff] %vm475, 0.0
          %512 = vst [vmem:[%s5 + $0x150] sm:$0xff] 0.0
          %513 = vst [vmem:[%s5 + $0x158] sm:$0xff] 0.0
          %514 = vst [vmem:[%s5 + $0x160] sm:$0xff] 0.0
          %515 = vst [vmem:[%s5 + $0x168] sm:$0xff] 0.0
          %516 = vst [vmem:[%s5 + $0x170] sm:$0xff] 0.0
          %517 = vst [vmem:[%s5 + $0x178] sm:$0xff] 0.0
          %518 = vst.msk [vmem:[%s5 + $0x180] sm:$0xff] %vm475, 0.0
          %519 = vst [vmem:[%s5 + $0x188] sm:$0xff] 0.0
          %520 = vst [vmem:[%s5 + $0x190] sm:$0xff] 0.0
          %521 = vst [vmem:[%s5 + $0x198] sm:$0xff] 0.0
          %522 = vst [vmem:[%s5 + $0x1a0] sm:$0xff] 0.0
          %523 = vst [vmem:[%s5 + $0x1a8] sm:$0xff] 0.0
          %524 = vst [vmem:[%s5 + $0x1b0] sm:$0xff] 0.0
          %525 = vst.msk [vmem:[%s5 + $0x1b8] sm:$0xff] %vm475, 0.0
          %526 = vst [vmem:[%s5 + $0x1c0] sm:$0xff] 0.0
          %527 = vst [vmem:[%s5 + $0x1c8] sm:$0xff] 0.0
          %528 = vst [vmem:[%s5 + $0x1d0] sm:$0xff] 0.0
          %529 = vst [vmem:[%s5 + $0x1d8] sm:$0xff] 0.0
          %530 = vst [vmem:[%s5 + $0x1e0] sm:$0xff] 0.0
          %531 = vst [vmem:[%s5 + $0x1e8] sm:$0xff] 0.0
          %532 = vst.msk [vmem:[%s5 + $0x1f0] sm:$0xff] %vm475, 0.0
          %533 = vst [vmem:[%s5 + $0x1f8] sm:$0xff] 0.0
          %534 = vst [vmem:[%s5 + $0x200] sm:$0xff] 0.0
          %535 = vst [vmem:[%s5 + $0x208] sm:$0xff] 0.0
          %536 = vst [vmem:[%s5 + $0x210] sm:$0xff] 0.0
          %537 = vst [vmem:[%s5 + $0x218] sm:$0xff] 0.0
          %538 = vst [vmem:[%s5 + $0x220] sm:$0xff] 0.0
          %539 = vst.msk [vmem:[%s5 + $0x228] sm:$0xff] %vm475, 0.0
          %540 = vst [vmem:[%s5 + $0x230] sm:$0xff] 0.0
          %541 = vst [vmem:[%s5 + $0x238] sm:$0xff] 0.0
          %542 = vst [vmem:[%s5 + $0x240] sm:$0xff] 0.0
          %543 = vst [vmem:[%s5 + $0x248] sm:$0xff] 0.0
          %544 = vst [vmem:[%s5 + $0x250] sm:$0xff] 0.0
          %545 = vst [vmem:[%s5 + $0x258] sm:$0xff] 0.0
          %546 = vst.msk [vmem:[%s5 + $0x260] sm:$0xff] %vm475, 0.0
          %547 = vst [vmem:[%s5 + $0x268] sm:$0xff] 0.0
          %548 = vst [vmem:[%s5 + $0x270] sm:$0xff] 0.0
          %549 = vst [vmem:[%s5 + $0x278] sm:$0xff] 0.0
          %550 = vst [vmem:[%s5 + $0x280] sm:$0xff] 0.0
          %551 = vst [vmem:[%s5 + $0x288] sm:$0xff] 0.0
          %552 = vst [vmem:[%s5 + $0x290] sm:$0xff] 0.0
          %553 = vst.msk [vmem:[%s5 + $0x298] sm:$0xff] %vm475, 0.0
          %554 = vst [vmem:[%s5 + $0x2a0] sm:$0xff] 0.0
          %555 = vst [vmem:[%s5 + $0x2a8] sm:$0xff] 0.0
          %556 = vst [vmem:[%s5 + $0x2b0] sm:$0xff] 0.0
          %557 = vst [vmem:[%s5 + $0x2b8] sm:$0xff] 0.0
          %558 = vst [vmem:[%s5 + $0x2c0] sm:$0xff] 0.0
          %559 = vst [vmem:[%s5 + $0x2c8] sm:$0xff] 0.0
          %560 = vst.msk [vmem:[%s5 + $0x2d0] sm:$0xff] %vm475, 0.0
          %561 = vst [vmem:[%s5 + $0x2d8] sm:$0xff] 0.0
          %562 = vst [vmem:[%s5 + $0x2e0] sm:$0xff] 0.0
          %563 = vst [vmem:[%s5 + $0x2e8] sm:$0xff] 0.0
          %564 = vst [vmem:[%s5 + $0x2f0] sm:$0xff] 0.0
          %565 = vst [vmem:[%s5 + $0x2f8] sm:$0xff] 0.0
          %566 = vst [vmem:[%s5 + $0x300] sm:$0xff] 0.0
          %567 = vst.msk [vmem:[%s5 + $0x308] sm:$0xff] %vm475, 0.0
          %568 = vst [vmem:[%s5 + $0x310] sm:$0xff] 0.0
          %569 = vst [vmem:[%s5 + $0x318] sm:$0xff] 0.0
          %570 = vst [vmem:[%s5 + $0x320] sm:$0xff] 0.0
          %571 = vst [vmem:[%s5 + $0x328] sm:$0xff] 0.0
          %572 = vst [vmem:[%s5 + $0x330] sm:$0xff] 0.0
          %573 = vst [vmem:[%s5 + $0x338] sm:$0xff] 0.0
          %574 = vst.msk [vmem:[%s5 + $0x340] sm:$0xff] %vm475, 0.0
          %575 = vst [vmem:[%s5 + $0x348] sm:$0xff] 0.0
          %576 = vst [vmem:[%s5 + $0x350] sm:$0xff] 0.0
          %577 = vst [vmem:[%s5 + $0x358] sm:$0xff] 0.0
          %578 = vst [vmem:[%s5 + $0x360] sm:$0xff] 0.0
          %579 = vst [vmem:[%s5 + $0x368] sm:$0xff] 0.0
          %580 = vst [vmem:[%s5 + $0x370] sm:$0xff] 0.0
          %581 = vst.msk [vmem:[%s5 + $0x378] sm:$0xff] %vm475, 0.0
          %582 = vst [vmem:[%s5 + $0x380] sm:$0xff] 0.0
          %583 = vst [vmem:[%s5 + $0x388] sm:$0xff] 0.0
          %584 = vst [vmem:[%s5 + $0x390] sm:$0xff] 0.0
          %585 = vst [vmem:[%s5 + $0x398] sm:$0xff] 0.0
          %586 = vst [vmem:[%s5 + $0x3a0] sm:$0xff] 0.0
          %587 = vst [vmem:[%s5 + $0x3a8] sm:$0xff] 0.0
          %588 = vst.msk [vmem:[%s5 + $0x3b0] sm:$0xff] %vm475, 0.0
          %589 = vst [vmem:[%s5 + $0x3b8] sm:$0xff] 0.0
          %590 = vst [vmem:[%s5 + $0x3c0] sm:$0xff] 0.0
          %591 = vst [vmem:[%s5 + $0x3c8] sm:$0xff] 0.0
          %592 = vst [vmem:[%s5 + $0x3d0] sm:$0xff] 0.0
          %593 = vst [vmem:[%s5 + $0x3d8] sm:$0xff] 0.0
          %594 = vst [vmem:[%s5 + $0x3e0] sm:$0xff] 0.0
          %595 = vst.msk [vmem:[%s5 + $0x3e8] sm:$0xff] %vm475, 0.0
          %596 = vst [vmem:[%s5 + $0x3f0] sm:$0xff] 0.0
          %597 = vst [vmem:[%s5 + $0x3f8] sm:$0xff] 0.0
          %598 = vst [vmem:[%s5 + $0x400] sm:$0xff] 0.0
          %599 = vst [vmem:[%s5 + $0x408] sm:$0xff] 0.0
          %600 = vst [vmem:[%s5 + $0x410] sm:$0xff] 0.0
          %601 = vst [vmem:[%s5 + $0x418] sm:$0xff] 0.0
          %602 = vst.msk [vmem:[%s5 + $0x420] sm:$0xff] %vm475, 0.0
          %603 = vst [vmem:[%s5 + $0x428] sm:$0xff] 0.0
          %604 = vst [vmem:[%s5 + $0x430] sm:$0xff] 0.0
          %605 = vst [vmem:[%s5 + $0x438] sm:$0xff] 0.0
          %606 = vst [vmem:[%s5 + $0x440] sm:$0xff] 0.0
          %607 = vst [vmem:[%s5 + $0x448] sm:$0xff] 0.0
          %608 = vst [vmem:[%s5 + $0x450] sm:$0xff] 0.0
          %609 = vst.msk [vmem:[%s5 + $0x458] sm:$0xff] %vm475, 0.0
          %610 = vst [vmem:[%s5 + $0x460] sm:$0xff] 0.0
          %611 = vst [vmem:[%s5 + $0x468] sm:$0xff] 0.0
          %612 = vst [vmem:[%s5 + $0x470] sm:$0xff] 0.0
          %613 = vst [vmem:[%s5 + $0x478] sm:$0xff] 0.0
          %614 = vst [vmem:[%s5 + $0x480] sm:$0xff] 0.0
          %615 = vst [vmem:[%s5 + $0x488] sm:$0xff] 0.0
          %616 = vst.msk [vmem:[%s5 + $0x490] sm:$0xff] %vm475, 0.0
          %617 = vst [vmem:[%s5 + $0x498] sm:$0xff] 0.0
          %618 = vst [vmem:[%s5 + $0x4a0] sm:$0xff] 0.0
          %619 = vst [vmem:[%s5 + $0x4a8] sm:$0xff] 0.0
          %620 = vst [vmem:[%s5 + $0x4b0] sm:$0xff] 0.0
          %621 = vst [vmem:[%s5 + $0x4b8] sm:$0xff] 0.0
          %622 = vst [vmem:[%s5 + $0x4c0] sm:$0xff] 0.0
          %623 = vst.msk [vmem:[%s5 + $0x4c8] sm:$0xff] %vm475, 0.0
          %624 = vst [vmem:[%s5 + $0x4d0] sm:$0xff] 0.0
          %625 = vst [vmem:[%s5 + $0x4d8] sm:$0xff] 0.0
          %626 = vst [vmem:[%s5 + $0x4e0] sm:$0xff] 0.0
          %627 = vst [vmem:[%s5 + $0x4e8] sm:$0xff] 0.0
          %628 = vst [vmem:[%s5 + $0x4f0] sm:$0xff] 0.0
          %629 = vst [vmem:[%s5 + $0x4f8] sm:$0xff] 0.0
          %630 = vst.msk [vmem:[%s5 + $0x500] sm:$0xff] %vm475, 0.0
          %631 = vst [vmem:[%s5 + $0x508] sm:$0xff] 0.0
          %632 = vst [vmem:[%s5 + $0x510] sm:$0xff] 0.0
          %633 = vst [vmem:[%s5 + $0x518] sm:$0xff] 0.0
          %634 = vst [vmem:[%s5 + $0x520] sm:$0xff] 0.0
          %635 = vst [vmem:[%s5 + $0x528] sm:$0xff] 0.0
          %636 = vst [vmem:[%s5 + $0x530] sm:$0xff] 0.0
          %637 = vst.msk [vmem:[%s5 + $0x538] sm:$0xff] %vm475, 0.0
          %638 = vst [vmem:[%s5 + $0x540] sm:$0xff] 0.0
          %639 = vst [vmem:[%s5 + $0x548] sm:$0xff] 0.0
          %640 = vst [vmem:[%s5 + $0x550] sm:$0xff] 0.0
          %641 = vst [vmem:[%s5 + $0x558] sm:$0xff] 0.0
          %642 = vst [vmem:[%s5 + $0x560] sm:$0xff] 0.0
          %643 = vst [vmem:[%s5 + $0x568] sm:$0xff] 0.0
          %644 = vst.msk [vmem:[%s5 + $0x570] sm:$0xff] %vm475, 0.0
          %645 = vst [vmem:[%s5 + $0x578] sm:$0xff] 0.0
          %646 = vst [vmem:[%s5 + $0x580] sm:$0xff] 0.0
          %647 = vst [vmem:[%s5 + $0x588] sm:$0xff] 0.0
          %648 = vst [vmem:[%s5 + $0x590] sm:$0xff] 0.0
          %649 = vst [vmem:[%s5 + $0x598] sm:$0xff] 0.0
          %650 = vst [vmem:[%s5 + $0x5a0] sm:$0xff] 0.0
          %651 = vst.msk [vmem:[%s5 + $0x5a8] sm:$0xff] %vm475, 0.0
          %652 = vst [vmem:[%s5 + $0x5b0] sm:$0xff] 0.0
          %653 = vst [vmem:[%s5 + $0x5b8] sm:$0xff] 0.0
          %654 = vst [vmem:[%s5 + $0x5c0] sm:$0xff] 0.0
          %655 = vst [vmem:[%s5 + $0x5c8] sm:$0xff] 0.0
          %656 = vst [vmem:[%s5 + $0x5d0] sm:$0xff] 0.0
          %657 = vst [vmem:[%s5 + $0x5d8] sm:$0xff] 0.0
          %658 = vst.msk [vmem:[%s5 + $0x5e0] sm:$0xff] %vm475, 0.0
          %659 = vst [vmem:[%s5 + $0x5e8] sm:$0xff] 0.0
          %660 = vst [vmem:[%s5 + $0x5f0] sm:$0xff] 0.0
          %661 = vst [vmem:[%s5 + $0x5f8] sm:$0xff] 0.0
          %662 = vst [vmem:[%s5 + $0x600] sm:$0xff] 0.0
          %663 = vst [vmem:[%s5 + $0x608] sm:$0xff] 0.0
          %664 = vst [vmem:[%s5 + $0x610] sm:$0xff] 0.0
          %665 = vst.msk [vmem:[%s5 + $0x618] sm:$0xff] %vm475, 0.0
          %666 = vst [vmem:[%s5 + $0x620] sm:$0xff] 0.0
          %667 = vst [vmem:[%s5 + $0x628] sm:$0xff] 0.0
          %668 = vst [vmem:[%s5 + $0x630] sm:$0xff] 0.0
          %669 = vst [vmem:[%s5 + $0x638] sm:$0xff] 0.0
          %670 = vst [vmem:[%s5 + $0x640] sm:$0xff] 0.0
          %671 = vst [vmem:[%s5 + $0x648] sm:$0xff] 0.0
          %672 = vst.msk [vmem:[%s5 + $0x650] sm:$0xff] %vm475, 0.0
          %673 = vst [vmem:[%s5 + $0x658] sm:$0xff] 0.0
          %674 = vst [vmem:[%s5 + $0x660] sm:$0xff] 0.0
          %675 = vst [vmem:[%s5 + $0x668] sm:$0xff] 0.0
          %676 = vst [vmem:[%s5 + $0x670] sm:$0xff] 0.0
          %677 = vst [vmem:[%s5 + $0x678] sm:$0xff] 0.0
          %678 = vst [vmem:[%s5 + $0x680] sm:$0xff] 0.0
          %679 = vst.msk [vmem:[%s5 + $0x688] sm:$0xff] %vm475, 0.0
          %680 = vst [vmem:[%s5 + $0x690] sm:$0xff] 0.0
          %681 = vst [vmem:[%s5 + $0x698] sm:$0xff] 0.0
          %682 = vst [vmem:[%s5 + $0x6a0] sm:$0xff] 0.0
          %683 = vst [vmem:[%s5 + $0x6a8] sm:$0xff] 0.0
          %684 = vst [vmem:[%s5 + $0x6b0] sm:$0xff] 0.0
          %685 = vst [vmem:[%s5 + $0x6b8] sm:$0xff] 0.0
          %686 = vst.msk [vmem:[%s5 + $0x6c0] sm:$0xff] %vm475, 0.0
          %687 = vst [vmem:[%s5 + $0x6c8] sm:$0xff] 0.0
          %688 = vst [vmem:[%s5 + $0x6d0] sm:$0xff] 0.0
          %689 = vst [vmem:[%s5 + $0x6d8] sm:$0xff] 0.0
          %690 = vst [vmem:[%s5 + $0x6e0] sm:$0xff] 0.0
          %691 = vst [vmem:[%s5 + $0x6e8] sm:$0xff] 0.0
          %692 = vst [vmem:[%s5 + $0x6f0] sm:$0xff] 0.0
          %693 = vst.msk [vmem:[%s5 + $0x6f8] sm:$0xff] %vm475, 0.0
        $region82: #{module_forward.1} parent=73 // pred_fallthru
          _
        %v694 = vld [vmem:[%s443] sm:$0xff]
        %v695 = vld [vmem:[%s443 + $0x8] sm:$0xff]
        %v696 = vld [vmem:[%s443 + $0x10] sm:$0xff]
        %v697 = vld [vmem:[%s443 + $0x18] sm:$0xff]
        %v698 = vld [vmem:[%s443 + $0x20] sm:$0xff]
        %v699 = vld [vmem:[%s443 + $0x28] sm:$0xff]
        %v700 = vld [vmem:[%s443 + $0x30] sm:$0xff]
        %v701 = vld [vmem:[%s443 + $0x38] sm:$0xff]
        %v702 = vld [vmem:[%s443 + $0x40] sm:$0xff]
        %v703 = vld [vmem:[%s443 + $0x48] sm:$0xff]
        %v704 = vld [vmem:[%s443 + $0x50] sm:$0xff]
        %v705 = vld [vmem:[%s443 + $0x58] sm:$0xff]
        %v706 = vld [vmem:[%s443 + $0x60] sm:$0xff]
        %v707 = vld [vmem:[%s443 + $0x68] sm:$0xff]
        %v708 = vld [vmem:[%s443 + $0x70] sm:$0xff]
        %v709 = vld [vmem:[%s443 + $0x78] sm:$0xff]
        %v710 = vld [vmem:[%s443 + $0x80] sm:$0xff]
        %v711 = vld [vmem:[%s443 + $0x88] sm:$0xff]
        %v712 = vld [vmem:[%s443 + $0x90] sm:$0xff]
        %v713 = vld [vmem:[%s443 + $0x98] sm:$0xff]
        %v714 = vld [vmem:[%s443 + $0xa0] sm:$0xff]
        %v715 = vld [vmem:[%s443 + $0xa8] sm:$0xff]
        %v716 = vld [vmem:[%s443 + $0xb0] sm:$0xff]
        %v717 = vld [vmem:[%s443 + $0xb8] sm:$0xff]
        %v718 = vld [vmem:[%s443 + $0xc0] sm:$0xff]
        %v719 = vld [vmem:[%s443 + $0xc8] sm:$0xff]
        %v720 = vld [vmem:[%s443 + $0xd0] sm:$0xff]
        %v721 = vld [vmem:[%s443 + $0xd8] sm:$0xff]
        %v722 = vld [vmem:[%s443 + $0xe0] sm:$0xff]
        %v723 = vld [vmem:[%s443 + $0xe8] sm:$0xff]
        %v724 = vld [vmem:[%s443 + $0xf0] sm:$0xff]
        %v725 = vld [vmem:[%s443 + $0xf8] sm:$0xff]
        %v726 = vld [vmem:[%s443 + $0x100] sm:$0xff]
        %v727 = vld [vmem:[%s443 + $0x108] sm:$0xff]
        %v728 = vld [vmem:[%s443 + $0x110] sm:$0xff]
        %v729 = vld [vmem:[%s443 + $0x118] sm:$0xff]
        %v730 = vld [vmem:[%s443 + $0x120] sm:$0xff]
        %v731 = vld [vmem:[%s443 + $0x128] sm:$0xff]
        %v732 = vld [vmem:[%s443 + $0x130] sm:$0xff]
        %v733 = vld [vmem:[%s443 + $0x138] sm:$0xff]
        %v734 = vld [vmem:[%s443 + $0x140] sm:$0xff]
        %v735 = vld [vmem:[%s443 + $0x148] sm:$0xff]
        %v736 = vld [vmem:[%s443 + $0x150] sm:$0xff]
        %v737 = vld [vmem:[%s443 + $0x158] sm:$0xff]
        %v738 = vld [vmem:[%s443 + $0x160] sm:$0xff]
        %v739 = vld [vmem:[%s443 + $0x168] sm:$0xff]
        %v740 = vld [vmem:[%s443 + $0x170] sm:$0xff]
        %v741 = vld [vmem:[%s443 + $0x178] sm:$0xff]
        %v742 = vld [vmem:[%s443 + $0x180] sm:$0xff]
        %v743 = vld [vmem:[%s443 + $0x188] sm:$0xff]
        %v744 = vld [vmem:[%s443 + $0x190] sm:$0xff]
        %v745 = vld [vmem:[%s443 + $0x198] sm:$0xff]
        %v746 = vld [vmem:[%s443 + $0x1a0] sm:$0xff]
        %v747 = vld [vmem:[%s443 + $0x1a8] sm:$0xff]
        %v748 = vld [vmem:[%s443 + $0x1b0] sm:$0xff]
        %v749 = vld [vmem:[%s443 + $0x1b8] sm:$0xff]
        %v750 = vld [vmem:[%s443 + $0x1c0] sm:$0xff]
        %v751 = vld [vmem:[%s443 + $0x1c8] sm:$0xff]
        %v752 = vld [vmem:[%s443 + $0x1d0] sm:$0xff]
        %v753 = vld [vmem:[%s443 + $0x1d8] sm:$0xff]
        %v754 = vld [vmem:[%s443 + $0x1e0] sm:$0xff]
        %v755 = vld [vmem:[%s443 + $0x1e8] sm:$0xff]
        %v756 = vld [vmem:[%s443 + $0x1f0] sm:$0xff]
        %v757 = vld [vmem:[%s443 + $0x1f8] sm:$0xff]
        %v758 = vld [vmem:[%s443 + $0x200] sm:$0xff]
        %v759 = vld [vmem:[%s443 + $0x208] sm:$0xff]
        %v760 = vld [vmem:[%s443 + $0x210] sm:$0xff]
        %v761 = vld [vmem:[%s443 + $0x218] sm:$0xff]
        %v762 = vld [vmem:[%s443 + $0x220] sm:$0xff]
        %v763 = vld [vmem:[%s443 + $0x228] sm:$0xff]
        %v764 = vld [vmem:[%s443 + $0x230] sm:$0xff]
        %v765 = vld [vmem:[%s443 + $0x238] sm:$0xff]
        %v766 = vld [vmem:[%s443 + $0x240] sm:$0xff]
        %v767 = vld [vmem:[%s443 + $0x248] sm:$0xff]
        %v768 = vld [vmem:[%s443 + $0x250] sm:$0xff]
        %v769 = vld [vmem:[%s443 + $0x258] sm:$0xff]
        %v770 = vld [vmem:[%s443 + $0x260] sm:$0xff]
        %v771 = vld [vmem:[%s443 + $0x268] sm:$0xff]
        %v772 = vld [vmem:[%s443 + $0x270] sm:$0xff]
        %v773 = vld [vmem:[%s443 + $0x278] sm:$0xff]
        %v774 = vld [vmem:[%s443 + $0x280] sm:$0xff]
        %v775 = vld [vmem:[%s443 + $0x288] sm:$0xff]
        %v776 = vld [vmem:[%s443 + $0x290] sm:$0xff]
        %v777 = vld [vmem:[%s443 + $0x298] sm:$0xff]
        %v778 = vld [vmem:[%s443 + $0x2a0] sm:$0xff]
        %v779 = vld [vmem:[%s443 + $0x2a8] sm:$0xff]
        %v780 = vld [vmem:[%s443 + $0x2b0] sm:$0xff]
        %v781 = vld [vmem:[%s443 + $0x2b8] sm:$0xff]
        %v782 = vld [vmem:[%s443 + $0x2c0] sm:$0xff]
        %v783 = vld [vmem:[%s443 + $0x2c8] sm:$0xff]
        %v784 = vld [vmem:[%s443 + $0x2d0] sm:$0xff]
        %v785 = vld [vmem:[%s443 + $0x2d8] sm:$0xff]
        %v786 = vld [vmem:[%s443 + $0x2e0] sm:$0xff]
        %v787 = vld [vmem:[%s443 + $0x2e8] sm:$0xff]
        %v788 = vld [vmem:[%s443 + $0x2f0] sm:$0xff]
        %v789 = vld [vmem:[%s443 + $0x2f8] sm:$0xff]
        %v790 = vld [vmem:[%s443 + $0x300] sm:$0xff]
        %v791 = vld [vmem:[%s443 + $0x308] sm:$0xff]
        %v792 = vld [vmem:[%s443 + $0x310] sm:$0xff]
        %v793 = vld [vmem:[%s443 + $0x318] sm:$0xff]
        %v794 = vld [vmem:[%s443 + $0x320] sm:$0xff]
        %v795 = vld [vmem:[%s443 + $0x328] sm:$0xff]
        %v796 = vld [vmem:[%s443 + $0x330] sm:$0xff]
        %v797 = vld [vmem:[%s443 + $0x338] sm:$0xff]
        %v798 = vld [vmem:[%s443 + $0x340] sm:$0xff]
        %v799 = vld [vmem:[%s443 + $0x348] sm:$0xff]
        %v800 = vld [vmem:[%s443 + $0x350] sm:$0xff]
        %v801 = vld [vmem:[%s443 + $0x358] sm:$0xff]
        %v802 = vld [vmem:[%s443 + $0x360] sm:$0xff]
        %v803 = vld [vmem:[%s443 + $0x368] sm:$0xff]
        %v804 = vld [vmem:[%s443 + $0x370] sm:$0xff]
        %v805 = vld [vmem:[%s443 + $0x378] sm:$0xff]
        %v806 = vld [vmem:[%s443 + $0x380] sm:$0xff]
        %v807 = vld [vmem:[%s443 + $0x388] sm:$0xff]
        %v808 = vld [vmem:[%s443 + $0x390] sm:$0xff]
        %v809 = vld [vmem:[%s443 + $0x398] sm:$0xff]
        %v810 = vld [vmem:[%s443 + $0x3a0] sm:$0xff]
        %v811 = vld [vmem:[%s443 + $0x3a8] sm:$0xff]
        %v812 = vld [vmem:[%s443 + $0x3b0] sm:$0xff]
        %v813 = vld [vmem:[%s443 + $0x3b8] sm:$0xff]
        %v814 = vld [vmem:[%s443 + $0x3c0] sm:$0xff]
        %v815 = vld [vmem:[%s443 + $0x3c8] sm:$0xff]
        %v816 = vld [vmem:[%s443 + $0x3d0] sm:$0xff]
        %v817 = vld [vmem:[%s443 + $0x3d8] sm:$0xff]
        %v818 = vld [vmem:[%s443 + $0x3e0] sm:$0xff]
        %v819 = vld [vmem:[%s443 + $0x3e8] sm:$0xff]
        %v820 = vld [vmem:[%s443 + $0x3f0] sm:$0xff]
        %v821 = vld [vmem:[%s443 + $0x3f8] sm:$0xff]
        %v822 = vld [vmem:[%s443 + $0x400] sm:$0xff]
        %v823 = vld [vmem:[%s443 + $0x408] sm:$0xff]
        %v824 = vld [vmem:[%s443 + $0x410] sm:$0xff]
        %v825 = vld [vmem:[%s443 + $0x418] sm:$0xff]
        %v826 = vld [vmem:[%s443 + $0x420] sm:$0xff]
        %v827 = vld [vmem:[%s443 + $0x428] sm:$0xff]
        %v828 = vld [vmem:[%s443 + $0x430] sm:$0xff]
        %v829 = vld [vmem:[%s443 + $0x438] sm:$0xff]
        %v830 = vld [vmem:[%s443 + $0x440] sm:$0xff]
        %v831 = vld [vmem:[%s443 + $0x448] sm:$0xff]
        %v832 = vld [vmem:[%s443 + $0x450] sm:$0xff]
        %v833 = vld [vmem:[%s443 + $0x458] sm:$0xff]
        %v834 = vld [vmem:[%s443 + $0x460] sm:$0xff]
        %v835 = vld [vmem:[%s443 + $0x468] sm:$0xff]
        %v836 = vld [vmem:[%s443 + $0x470] sm:$0xff]
        %v837 = vld [vmem:[%s443 + $0x478] sm:$0xff]
        %v838 = vld [vmem:[%s443 + $0x480] sm:$0xff]
        %v839 = vld [vmem:[%s443 + $0x488] sm:$0xff]
        %v840 = vld [vmem:[%s443 + $0x490] sm:$0xff]
        %v841 = vld [vmem:[%s443 + $0x498] sm:$0xff]
        %v842 = vld [vmem:[%s443 + $0x4a0] sm:$0xff]
        %v843 = vld [vmem:[%s443 + $0x4a8] sm:$0xff]
        %v844 = vld [vmem:[%s443 + $0x4b0] sm:$0xff]
        %v845 = vld [vmem:[%s443 + $0x4b8] sm:$0xff]
        %v846 = vld [vmem:[%s443 + $0x4c0] sm:$0xff]
        %v847 = vld [vmem:[%s443 + $0x4c8] sm:$0xff]
        %v848 = vld [vmem:[%s443 + $0x4d0] sm:$0xff]
        %v849 = vld [vmem:[%s443 + $0x4d8] sm:$0xff]
        %v850 = vld [vmem:[%s443 + $0x4e0] sm:$0xff]
        %v851 = vld [vmem:[%s443 + $0x4e8] sm:$0xff]
        %v852 = vld [vmem:[%s443 + $0x4f0] sm:$0xff]
        %v853 = vld [vmem:[%s443 + $0x4f8] sm:$0xff]
        %v854 = vld [vmem:[%s443 + $0x500] sm:$0xff]
        %v855 = vld [vmem:[%s443 + $0x508] sm:$0xff]
        %v856 = vld [vmem:[%s443 + $0x510] sm:$0xff]
        %v857 = vld [vmem:[%s443 + $0x518] sm:$0xff]
        %v858 = vld [vmem:[%s443 + $0x520] sm:$0xff]
        %v859 = vld [vmem:[%s443 + $0x528] sm:$0xff]
        %v860 = vld [vmem:[%s443 + $0x530] sm:$0xff]
        %v861 = vld [vmem:[%s443 + $0x538] sm:$0xff]
        %v862 = vld [vmem:[%s443 + $0x540] sm:$0xff]
        %v863 = vld [vmem:[%s443 + $0x548] sm:$0xff]
        %v864 = vld [vmem:[%s443 + $0x550] sm:$0xff]
        %v865 = vld [vmem:[%s443 + $0x558] sm:$0xff]
        %v866 = vld [vmem:[%s443 + $0x560] sm:$0xff]
        %v867 = vld [vmem:[%s443 + $0x568] sm:$0xff]
        %v868 = vld [vmem:[%s443 + $0x570] sm:$0xff]
        %v869 = vld [vmem:[%s443 + $0x578] sm:$0xff]
        %v870 = vld [vmem:[%s443 + $0x580] sm:$0xff]
        %v871 = vld [vmem:[%s443 + $0x588] sm:$0xff]
        %v872 = vld [vmem:[%s443 + $0x590] sm:$0xff]
        %v873 = vld [vmem:[%s443 + $0x598] sm:$0xff]
        %v874 = vld [vmem:[%s443 + $0x5a0] sm:$0xff]
        %v875 = vld [vmem:[%s443 + $0x5a8] sm:$0xff]
        %v876 = vld [vmem:[%s443 + $0x5b0] sm:$0xff]
        %v877 = vld [vmem:[%s443 + $0x5b8] sm:$0xff]
        %v878 = vld [vmem:[%s443 + $0x5c0] sm:$0xff]
        %v879 = vld [vmem:[%s443 + $0x5c8] sm:$0xff]
        %v880 = vld [vmem:[%s443 + $0x5d0] sm:$0xff]
        %v881 = vld [vmem:[%s443 + $0x5d8] sm:$0xff]
        %v882 = vld [vmem:[%s443 + $0x5e0] sm:$0xff]
        %v883 = vld [vmem:[%s443 + $0x5e8] sm:$0xff]
        %v884 = vld [vmem:[%s443 + $0x5f0] sm:$0xff]
        %v885 = vld [vmem:[%s443 + $0x5f8] sm:$0xff]
        %v886 = vld [vmem:[%s443 + $0x600] sm:$0xff]
        %v887 = vld [vmem:[%s443 + $0x608] sm:$0xff]
        %v888 = vld [vmem:[%s443 + $0x610] sm:$0xff]
        %v889 = vld [vmem:[%s443 + $0x618] sm:$0xff]
        %v890 = vld [vmem:[%s443 + $0x620] sm:$0xff]
        %v891 = vld [vmem:[%s443 + $0x628] sm:$0xff]
        %v892 = vld [vmem:[%s443 + $0x630] sm:$0xff]
        %v893 = vld [vmem:[%s443 + $0x638] sm:$0xff]
        %v894 = vld [vmem:[%s443 + $0x640] sm:$0xff]
        %v895 = vld [vmem:[%s443 + $0x648] sm:$0xff]
        %v896 = vld [vmem:[%s443 + $0x650] sm:$0xff]
        %v897 = vld [vmem:[%s443 + $0x658] sm:$0xff]
        %v898 = vld [vmem:[%s443 + $0x660] sm:$0xff]
        %v899 = vld [vmem:[%s443 + $0x668] sm:$0xff]
        %v900 = vld [vmem:[%s443 + $0x670] sm:$0xff]
        %v901 = vld [vmem:[%s443 + $0x678] sm:$0xff]
        %v902 = vld [vmem:[%s443 + $0x680] sm:$0xff]
        %v903 = vld [vmem:[%s443 + $0x688] sm:$0xff]
        %v904 = vld [vmem:[%s443 + $0x690] sm:$0xff]
        %v905 = vld [vmem:[%s443 + $0x698] sm:$0xff]
        %v906 = vld [vmem:[%s443 + $0x6a0] sm:$0xff]
        %v907 = vld [vmem:[%s443 + $0x6a8] sm:$0xff]
        %v908 = vld [vmem:[%s443 + $0x6b0] sm:$0xff]
        %v909 = vld [vmem:[%s443 + $0x6b8] sm:$0xff]
        %v910 = vld [vmem:[%s443 + $0x6c0] sm:$0xff]
        %v911 = vld [vmem:[%s443 + $0x6c8] sm:$0xff]
        %v912 = vld [vmem:[%s443 + $0x6d0] sm:$0xff]
        %v913 = vld [vmem:[%s443 + $0x6d8] sm:$0xff]
        %v914 = vld [vmem:[%s443 + $0x6e0] sm:$0xff]
        %v915 = vld [vmem:[%s443 + $0x6e8] sm:$0xff]
        %v916 = vld [vmem:[%s443 + $0x6f0] sm:$0xff]
        %v917 = vld [vmem:[%s443 + $0x6f8] sm:$0xff]
        %v918 = vadd.f32 %v694, %v695
        %v919 = vadd.f32 %v918, %v696
        %v920 = vadd.f32 %v919, %v697
        %v921 = vadd.f32 %v920, %v698
        %v922 = vadd.f32 %v921, %v699
        %vm923 = vcmask 130048
        %v924 = vsel %vm923, %v700, 0.0
        %v925 = vadd.f32 %v922, %v924
        %926 = vadd.xlane.f32.xlu0 %v925
        %v927 = vpop.xlane.xlu0 %926
        %v928 = vadd.f32 %v701, %v702
        %v929 = vadd.f32 %v928, %v703
        %v930 = vadd.f32 %v929, %v704
        %v931 = vadd.f32 %v930, %v705
        %v932 = vadd.f32 %v931, %v706
        %v933 = vsel %vm923, %v707, 0.0
        %v934 = vadd.f32 %v932, %v933
        %935 = vadd.xlane.f32.xlu0 %v934
        %v936 = vpop.xlane.xlu0 %935
        %v937 = vadd.f32 %v708, %v709
        %v938 = vadd.f32 %v937, %v710
        %v939 = vadd.f32 %v938, %v711
        %v940 = vadd.f32 %v939, %v712
        %v941 = vadd.f32 %v940, %v713
        %v942 = vsel %vm923, %v714, 0.0
        %v943 = vadd.f32 %v941, %v942
        %944 = vadd.xlane.f32.xlu0 %v943
        %v945 = vpop.xlane.xlu0 %944
        %v946 = vadd.f32 %v715, %v716
        %v947 = vadd.f32 %v946, %v717
        %v948 = vadd.f32 %v947, %v718
        %v949 = vadd.f32 %v948, %v719
        %v950 = vadd.f32 %v949, %v720
        %v951 = vsel %vm923, %v721, 0.0
        %v952 = vadd.f32 %v950, %v951
        %953 = vadd.xlane.f32.xlu0 %v952
        %v954 = vpop.xlane.xlu0 %953
        %v955 = vadd.f32 %v722, %v723
        %v956 = vadd.f32 %v955, %v724
        %v957 = vadd.f32 %v956, %v725
        %v958 = vadd.f32 %v957, %v726
        %v959 = vadd.f32 %v958, %v727
        %v960 = vsel %vm923, %v728, 0.0
        %v961 = vadd.f32 %v959, %v960
        %962 = vadd.xlane.f32.xlu0 %v961
        %v963 = vpop.xlane.xlu0 %962
        %v964 = vadd.f32 %v729, %v730
        %v965 = vadd.f32 %v964, %v731
        %v966 = vadd.f32 %v965, %v732
        %v967 = vadd.f32 %v966, %v733
        %v968 = vadd.f32 %v967, %v734
        %v969 = vsel %vm923, %v735, 0.0
        %v970 = vadd.f32 %v968, %v969
        %971 = vadd.xlane.f32.xlu0 %v970
        %v972 = vpop.xlane.xlu0 %971
        %v973 = vadd.f32 %v736, %v737
        %v974 = vadd.f32 %v973, %v738
        %v975 = vadd.f32 %v974, %v739
        %v976 = vadd.f32 %v975, %v740
        %v977 = vadd.f32 %v976, %v741
        %v978 = vsel %vm923, %v742, 0.0
        %v979 = vadd.f32 %v977, %v978
        %980 = vadd.xlane.f32.xlu0 %v979
        %v981 = vpop.xlane.xlu0 %980
        %v982 = vadd.f32 %v743, %v744
        %v983 = vadd.f32 %v982, %v745
        %v984 = vadd.f32 %v983, %v746
        %v985 = vadd.f32 %v984, %v747
        %v986 = vadd.f32 %v985, %v748
        %v987 = vsel %vm923, %v749, 0.0
        %v988 = vadd.f32 %v986, %v987
        %989 = vadd.xlane.f32.xlu0 %v988
        %v990 = vpop.xlane.xlu0 %989
        %v991 = vadd.f32 %v750, %v751
        %v992 = vadd.f32 %v991, %v752
        %v993 = vadd.f32 %v992, %v753
        %v994 = vadd.f32 %v993, %v754
        %v995 = vadd.f32 %v994, %v755
        %v996 = vsel %vm923, %v756, 0.0
        %v997 = vadd.f32 %v995, %v996
        %998 = vadd.xlane.f32.xlu0 %v997
        %v999 = vpop.xlane.xlu0 %998
        %v1000 = vadd.f32 %v757, %v758
        %v1001 = vadd.f32 %v1000, %v759
        %v1002 = vadd.f32 %v1001, %v760
        %v1003 = vadd.f32 %v1002, %v761
        %v1004 = vadd.f32 %v1003, %v762
        %v1005 = vsel %vm923, %v763, 0.0
        %v1006 = vadd.f32 %v1004, %v1005
        %1007 = vadd.xlane.f32.xlu0 %v1006
        %v1008 = vpop.xlane.xlu0 %1007
        %v1009 = vadd.f32 %v764, %v765
        %v1010 = vadd.f32 %v1009, %v766
        %v1011 = vadd.f32 %v1010, %v767
        %v1012 = vadd.f32 %v1011, %v768
        %v1013 = vadd.f32 %v1012, %v769
        %v1014 = vsel %vm923, %v770, 0.0
        %v1015 = vadd.f32 %v1013, %v1014
        %1016 = vadd.xlane.f32.xlu0 %v1015
        %v1017 = vpop.xlane.xlu0 %1016
        %v1018 = vadd.f32 %v771, %v772
        %v1019 = vadd.f32 %v1018, %v773
        %v1020 = vadd.f32 %v1019, %v774
        %v1021 = vadd.f32 %v1020, %v775
        %v1022 = vadd.f32 %v1021, %v776
        %v1023 = vsel %vm923, %v777, 0.0
        %v1024 = vadd.f32 %v1022, %v1023
        %1025 = vadd.xlane.f32.xlu0 %v1024
        %v1026 = vpop.xlane.xlu0 %1025
        %v1027 = vadd.f32 %v778, %v779
        %v1028 = vadd.f32 %v1027, %v780
        %v1029 = vadd.f32 %v1028, %v781
        %v1030 = vadd.f32 %v1029, %v782
        %v1031 = vadd.f32 %v1030, %v783
        %v1032 = vsel %vm923, %v784, 0.0
        %v1033 = vadd.f32 %v1031, %v1032
        %1034 = vadd.xlane.f32.xlu0 %v1033
        %v1035 = vpop.xlane.xlu0 %1034
        %v1036 = vadd.f32 %v785, %v786
        %v1037 = vadd.f32 %v1036, %v787
        %v1038 = vadd.f32 %v1037, %v788
        %v1039 = vadd.f32 %v1038, %v789
        %v1040 = vadd.f32 %v1039, %v790
        %v1041 = vsel %vm923, %v791, 0.0
        %v1042 = vadd.f32 %v1040, %v1041
        %1043 = vadd.xlane.f32.xlu0 %v1042
        %v1044 = vpop.xlane.xlu0 %1043
        %v1045 = vadd.f32 %v792, %v793
        %v1046 = vadd.f32 %v1045, %v794
        %v1047 = vadd.f32 %v1046, %v795
        %v1048 = vadd.f32 %v1047, %v796
        %v1049 = vadd.f32 %v1048, %v797
        %v1050 = vsel %vm923, %v798, 0.0
        %v1051 = vadd.f32 %v1049, %v1050
        %1052 = vadd.xlane.f32.xlu0 %v1051
        %v1053 = vpop.xlane.xlu0 %1052
        %v1054 = vadd.f32 %v799, %v800
        %v1055 = vadd.f32 %v1054, %v801
        %v1056 = vadd.f32 %v1055, %v802
        %v1057 = vadd.f32 %v1056, %v803
        %v1058 = vadd.f32 %v1057, %v804
        %v1059 = vsel %vm923, %v805, 0.0
        %v1060 = vadd.f32 %v1058, %v1059
        %1061 = vadd.xlane.f32.xlu0 %v1060
        %v1062 = vpop.xlane.xlu0 %1061
        %v1063 = vadd.f32 %v806, %v807
        %v1064 = vadd.f32 %v1063, %v808
        %v1065 = vadd.f32 %v1064, %v809
        %v1066 = vadd.f32 %v1065, %v810
        %v1067 = vadd.f32 %v1066, %v811
        %v1068 = vsel %vm923, %v812, 0.0
        %v1069 = vadd.f32 %v1067, %v1068
        %1070 = vadd.xlane.f32.xlu0 %v1069
        %v1071 = vpop.xlane.xlu0 %1070
        %v1072 = vadd.f32 %v813, %v814
        %v1073 = vadd.f32 %v1072, %v815
        %v1074 = vadd.f32 %v1073, %v816
        %v1075 = vadd.f32 %v1074, %v817
        %v1076 = vadd.f32 %v1075, %v818
        %v1077 = vsel %vm923, %v819, 0.0
        %v1078 = vadd.f32 %v1076, %v1077
        %1079 = vadd.xlane.f32.xlu0 %v1078
        %v1080 = vpop.xlane.xlu0 %1079
        %v1081 = vadd.f32 %v820, %v821
        %v1082 = vadd.f32 %v1081, %v822
        %v1083 = vadd.f32 %v1082, %v823
        %v1084 = vadd.f32 %v1083, %v824
        %v1085 = vadd.f32 %v1084, %v825
        %v1086 = vsel %vm923, %v826, 0.0
        %v1087 = vadd.f32 %v1085, %v1086
        %1088 = vadd.xlane.f32.xlu0 %v1087
        %v1089 = vpop.xlane.xlu0 %1088
        %v1090 = vadd.f32 %v827, %v828
        %v1091 = vadd.f32 %v1090, %v829
        %v1092 = vadd.f32 %v1091, %v830
        %v1093 = vadd.f32 %v1092, %v831
        %v1094 = vadd.f32 %v1093, %v832
        %v1095 = vsel %vm923, %v833, 0.0
        %v1096 = vadd.f32 %v1094, %v1095
        %1097 = vadd.xlane.f32.xlu0 %v1096
        %v1098 = vpop.xlane.xlu0 %1097
        %v1099 = vadd.f32 %v834, %v835
        %v1100 = vadd.f32 %v1099, %v836
        %v1101 = vadd.f32 %v1100, %v837
        %v1102 = vadd.f32 %v1101, %v838
        %v1103 = vadd.f32 %v1102, %v839
        %v1104 = vsel %vm923, %v840, 0.0
        %v1105 = vadd.f32 %v1103, %v1104
        %1106 = vadd.xlane.f32.xlu0 %v1105
        %v1107 = vpop.xlane.xlu0 %1106
        %v1108 = vadd.f32 %v841, %v842
        %v1109 = vadd.f32 %v1108, %v843
        %v1110 = vadd.f32 %v1109, %v844
        %v1111 = vadd.f32 %v1110, %v845
        %v1112 = vadd.f32 %v1111, %v846
        %v1113 = vsel %vm923, %v847, 0.0
        %v1114 = vadd.f32 %v1112, %v1113
        %1115 = vadd.xlane.f32.xlu0 %v1114
        %v1116 = vpop.xlane.xlu0 %1115
        %v1117 = vadd.f32 %v848, %v849
        %v1118 = vadd.f32 %v1117, %v850
        %v1119 = vadd.f32 %v1118, %v851
        %v1120 = vadd.f32 %v1119, %v852
        %v1121 = vadd.f32 %v1120, %v853
        %v1122 = vsel %vm923, %v854, 0.0
        %v1123 = vadd.f32 %v1121, %v1122
        %1124 = vadd.xlane.f32.xlu0 %v1123
        %v1125 = vpop.xlane.xlu0 %1124
        %v1126 = vadd.f32 %v855, %v856
        %v1127 = vadd.f32 %v1126, %v857
        %v1128 = vadd.f32 %v1127, %v858
        %v1129 = vadd.f32 %v1128, %v859
        %v1130 = vadd.f32 %v1129, %v860
        %v1131 = vsel %vm923, %v861, 0.0
        %v1132 = vadd.f32 %v1130, %v1131
        %1133 = vadd.xlane.f32.xlu0 %v1132
        %v1134 = vpop.xlane.xlu0 %1133
        %v1135 = vadd.f32 %v862, %v863
        %v1136 = vadd.f32 %v1135, %v864
        %v1137 = vadd.f32 %v1136, %v865
        %v1138 = vadd.f32 %v1137, %v866
        %v1139 = vadd.f32 %v1138, %v867
        %v1140 = vsel %vm923, %v868, 0.0
        %v1141 = vadd.f32 %v1139, %v1140
        %1142 = vadd.xlane.f32.xlu0 %v1141
        %v1143 = vpop.xlane.xlu0 %1142
        %v1144 = vadd.f32 %v869, %v870
        %v1145 = vadd.f32 %v1144, %v871
        %v1146 = vadd.f32 %v1145, %v872
        %v1147 = vadd.f32 %v1146, %v873
        %v1148 = vadd.f32 %v1147, %v874
        %v1149 = vsel %vm923, %v875, 0.0
        %v1150 = vadd.f32 %v1148, %v1149
        %1151 = vadd.xlane.f32.xlu0 %v1150
        %v1152 = vpop.xlane.xlu0 %1151
        %v1153 = vadd.f32 %v876, %v877
        %v1154 = vadd.f32 %v1153, %v878
        %v1155 = vadd.f32 %v1154, %v879
        %v1156 = vadd.f32 %v1155, %v880
        %v1157 = vadd.f32 %v1156, %v881
        %v1158 = vsel %vm923, %v882, 0.0
        %v1159 = vadd.f32 %v1157, %v1158
        %1160 = vadd.xlane.f32.xlu0 %v1159
        %v1161 = vpop.xlane.xlu0 %1160
        %v1162 = vadd.f32 %v883, %v884
        %v1163 = vadd.f32 %v1162, %v885
        %v1164 = vadd.f32 %v1163, %v886
        %v1165 = vadd.f32 %v1164, %v887
        %v1166 = vadd.f32 %v1165, %v888
        %v1167 = vsel %vm923, %v889, 0.0
        %v1168 = vadd.f32 %v1166, %v1167
        %1169 = vadd.xlane.f32.xlu0 %v1168
        %v1170 = vpop.xlane.xlu0 %1169
        %v1171 = vadd.f32 %v890, %v891
        %v1172 = vadd.f32 %v1171, %v892
        %v1173 = vadd.f32 %v1172, %v893
        %v1174 = vadd.f32 %v1173, %v894
        %v1175 = vadd.f32 %v1174, %v895
        %v1176 = vsel %vm923, %v896, 0.0
        %v1177 = vadd.f32 %v1175, %v1176
        %1178 = vadd.xlane.f32.xlu0 %v1177
        %v1179 = vpop.xlane.xlu0 %1178
        %v1180 = vadd.f32 %v897, %v898
        %v1181 = vadd.f32 %v1180, %v899
        %v1182 = vadd.f32 %v1181, %v900
        %v1183 = vadd.f32 %v1182, %v901
        %v1184 = vadd.f32 %v1183, %v902
        %v1185 = vsel %vm923, %v903, 0.0
        %v1186 = vadd.f32 %v1184, %v1185
        %1187 = vadd.xlane.f32.xlu0 %v1186
        %v1188 = vpop.xlane.xlu0 %1187
        %v1189 = vadd.f32 %v904, %v905
        %v1190 = vadd.f32 %v1189, %v906
        %v1191 = vadd.f32 %v1190, %v907
        %v1192 = vadd.f32 %v1191, %v908
        %v1193 = vadd.f32 %v1192, %v909
        %v1194 = vsel %vm923, %v910, 0.0
        %v1195 = vadd.f32 %v1193, %v1194
        %1196 = vadd.xlane.f32.xlu0 %v1195
        %v1197 = vpop.xlane.xlu0 %1196
        %v1198 = vadd.f32 %v911, %v912
        %v1199 = vadd.f32 %v1198, %v913
        %v1200 = vadd.f32 %v1199, %v914
        %v1201 = vadd.f32 %v1200, %v915
        %v1202 = vadd.f32 %v1201, %v916
        %v1203 = vsel %vm923, %v917, 0.0
        %v1204 = vadd.f32 %v1202, %v1203
        %1205 = vadd.xlane.f32.xlu0 %v1204
        %v1206 = vpop.xlane.xlu0 %1205
        %v1207 = vmul.f32 %v927, 0.0012755102
        %v1208 = vmul.f32 %v936, 0.0012755102
        %v1209 = vmul.f32 %v945, 0.0012755102
        %v1210 = vmul.f32 %v954, 0.0012755102
        %v1211 = vmul.f32 %v963, 0.0012755102
        %v1212 = vmul.f32 %v972, 0.0012755102
        %v1213 = vmul.f32 %v981, 0.0012755102
        %v1214 = vmul.f32 %v990, 0.0012755102
        %v1215 = vmul.f32 %v999, 0.0012755102
        %v1216 = vmul.f32 %v1008, 0.0012755102
        %v1217 = vmul.f32 %v1017, 0.0012755102
        %v1218 = vmul.f32 %v1026, 0.0012755102
        %v1219 = vmul.f32 %v1035, 0.0012755102
        %v1220 = vmul.f32 %v1044, 0.0012755102
        %v1221 = vmul.f32 %v1053, 0.0012755102
        %v1222 = vmul.f32 %v1062, 0.0012755102
        %v1223 = vmul.f32 %v1071, 0.0012755102
        %v1224 = vmul.f32 %v1080, 0.0012755102
        %v1225 = vmul.f32 %v1089, 0.0012755102
        %v1226 = vmul.f32 %v1098, 0.0012755102
        %v1227 = vmul.f32 %v1107, 0.0012755102
        %v1228 = vmul.f32 %v1116, 0.0012755102
        %v1229 = vmul.f32 %v1125, 0.0012755102
        %v1230 = vmul.f32 %v1134, 0.0012755102
        %v1231 = vmul.f32 %v1143, 0.0012755102
        %v1232 = vmul.f32 %v1152, 0.0012755102
        %v1233 = vmul.f32 %v1161, 0.0012755102
        %v1234 = vmul.f32 %v1170, 0.0012755102
        %v1235 = vmul.f32 %v1179, 0.0012755102
        %v1236 = vmul.f32 %v1188, 0.0012755102
        %v1237 = vmul.f32 %v1197, 0.0012755102
        %v1238 = vmul.f32 %v1206, 0.0012755102
        %v1239 = vsub.f32 %v694, %v1207
        %v1240 = vsub.f32 %v695, %v1207
        %v1241 = vsub.f32 %v696, %v1207
        %v1242 = vsub.f32 %v697, %v1207
        %v1243 = vsub.f32 %v698, %v1207
        %v1244 = vsub.f32 %v699, %v1207
        %v1245 = vsub.f32 %v700, %v1207
        %v1246 = vsub.f32 %v701, %v1208
        %v1247 = vsub.f32 %v702, %v1208
        %v1248 = vsub.f32 %v703, %v1208
        %v1249 = vsub.f32 %v704, %v1208
        %v1250 = vsub.f32 %v705, %v1208
        %v1251 = vsub.f32 %v706, %v1208
        %v1252 = vsub.f32 %v707, %v1208
        %v1253 = vsub.f32 %v708, %v1209
        %v1254 = vsub.f32 %v709, %v1209
        %v1255 = vsub.f32 %v710, %v1209
        %v1256 = vsub.f32 %v711, %v1209
        %v1257 = vsub.f32 %v712, %v1209
        %v1258 = vsub.f32 %v713, %v1209
        %v1259 = vsub.f32 %v714, %v1209
        %v1260 = vsub.f32 %v715, %v1210
        %v1261 = vsub.f32 %v716, %v1210
        %v1262 = vsub.f32 %v717, %v1210
        %v1263 = vsub.f32 %v718, %v1210
        %v1264 = vsub.f32 %v719, %v1210
        %v1265 = vsub.f32 %v720, %v1210
        %v1266 = vsub.f32 %v721, %v1210
        %v1267 = vsub.f32 %v722, %v1211
        %v1268 = vsub.f32 %v723, %v1211
        %v1269 = vsub.f32 %v724, %v1211
        %v1270 = vsub.f32 %v725, %v1211
        %v1271 = vsub.f32 %v726, %v1211
        %v1272 = vsub.f32 %v727, %v1211
        %v1273 = vsub.f32 %v728, %v1211
        %v1274 = vsub.f32 %v729, %v1212
        %v1275 = vsub.f32 %v730, %v1212
        %v1276 = vsub.f32 %v731, %v1212
        %v1277 = vsub.f32 %v732, %v1212
        %v1278 = vsub.f32 %v733, %v1212
        %v1279 = vsub.f32 %v734, %v1212
        %v1280 = vsub.f32 %v735, %v1212
        %v1281 = vsub.f32 %v736, %v1213
        %v1282 = vsub.f32 %v737, %v1213
        %v1283 = vsub.f32 %v738, %v1213
        %v1284 = vsub.f32 %v739, %v1213
        %v1285 = vsub.f32 %v740, %v1213
        %v1286 = vsub.f32 %v741, %v1213
        %v1287 = vsub.f32 %v742, %v1213
        %v1288 = vsub.f32 %v743, %v1214
        %v1289 = vsub.f32 %v744, %v1214
        %v1290 = vsub.f32 %v745, %v1214
        %v1291 = vsub.f32 %v746, %v1214
        %v1292 = vsub.f32 %v747, %v1214
        %v1293 = vsub.f32 %v748, %v1214
        %v1294 = vsub.f32 %v749, %v1214
        %v1295 = vsub.f32 %v750, %v1215
        %v1296 = vsub.f32 %v751, %v1215
        %v1297 = vsub.f32 %v752, %v1215
        %v1298 = vsub.f32 %v753, %v1215
        %v1299 = vsub.f32 %v754, %v1215
        %v1300 = vsub.f32 %v755, %v1215
        %v1301 = vsub.f32 %v756, %v1215
        %v1302 = vsub.f32 %v757, %v1216
        %v1303 = vsub.f32 %v758, %v1216
        %v1304 = vsub.f32 %v759, %v1216
        %v1305 = vsub.f32 %v760, %v1216
        %v1306 = vsub.f32 %v761, %v1216
        %v1307 = vsub.f32 %v762, %v1216
        %v1308 = vsub.f32 %v763, %v1216
        %v1309 = vsub.f32 %v764, %v1217
        %v1310 = vsub.f32 %v765, %v1217
        %v1311 = vsub.f32 %v766, %v1217
        %v1312 = vsub.f32 %v767, %v1217
        %v1313 = vsub.f32 %v768, %v1217
        %v1314 = vsub.f32 %v769, %v1217
        %v1315 = vsub.f32 %v770, %v1217
        %v1316 = vsub.f32 %v771, %v1218
        %v1317 = vsub.f32 %v772, %v1218
        %v1318 = vsub.f32 %v773, %v1218
        %v1319 = vsub.f32 %v774, %v1218
        %v1320 = vsub.f32 %v775, %v1218
        %v1321 = vsub.f32 %v776, %v1218
        %v1322 = vsub.f32 %v777, %v1218
        %v1323 = vsub.f32 %v778, %v1219
        %v1324 = vsub.f32 %v779, %v1219
        %v1325 = vsub.f32 %v780, %v1219
        %v1326 = vsub.f32 %v781, %v1219
        %v1327 = vsub.f32 %v782, %v1219
        %v1328 = vsub.f32 %v783, %v1219
        %v1329 = vsub.f32 %v784, %v1219
        %v1330 = vsub.f32 %v785, %v1220
        %v1331 = vsub.f32 %v786, %v1220
        %v1332 = vsub.f32 %v787, %v1220
        %v1333 = vsub.f32 %v788, %v1220
        %v1334 = vsub.f32 %v789, %v1220
        %v1335 = vsub.f32 %v790, %v1220
        %v1336 = vsub.f32 %v791, %v1220
        %v1337 = vsub.f32 %v792, %v1221
        %v1338 = vsub.f32 %v793, %v1221
        %v1339 = vsub.f32 %v794, %v1221
        %v1340 = vsub.f32 %v795, %v1221
        %v1341 = vsub.f32 %v796, %v1221
        %v1342 = vsub.f32 %v797, %v1221
        %v1343 = vsub.f32 %v798, %v1221
        %v1344 = vsub.f32 %v799, %v1222
        %v1345 = vsub.f32 %v800, %v1222
        %v1346 = vsub.f32 %v801, %v1222
        %v1347 = vsub.f32 %v802, %v1222
        %v1348 = vsub.f32 %v803, %v1222
        %v1349 = vsub.f32 %v804, %v1222
        %v1350 = vsub.f32 %v805, %v1222
        %v1351 = vsub.f32 %v806, %v1223
        %v1352 = vsub.f32 %v807, %v1223
        %v1353 = vsub.f32 %v808, %v1223
        %v1354 = vsub.f32 %v809, %v1223
        %v1355 = vsub.f32 %v810, %v1223
        %v1356 = vsub.f32 %v811, %v1223
        %v1357 = vsub.f32 %v812, %v1223
        %v1358 = vsub.f32 %v813, %v1224
        %v1359 = vsub.f32 %v814, %v1224
        %v1360 = vsub.f32 %v815, %v1224
        %v1361 = vsub.f32 %v816, %v1224
        %v1362 = vsub.f32 %v817, %v1224
        %v1363 = vsub.f32 %v818, %v1224
        %v1364 = vsub.f32 %v819, %v1224
        %v1365 = vsub.f32 %v820, %v1225
        %v1366 = vsub.f32 %v821, %v1225
        %v1367 = vsub.f32 %v822, %v1225
        %v1368 = vsub.f32 %v823, %v1225
        %v1369 = vsub.f32 %v824, %v1225
        %v1370 = vsub.f32 %v825, %v1225
        %v1371 = vsub.f32 %v826, %v1225
        %v1372 = vsub.f32 %v827, %v1226
        %v1373 = vsub.f32 %v828, %v1226
        %v1374 = vsub.f32 %v829, %v1226
        %v1375 = vsub.f32 %v830, %v1226
        %v1376 = vsub.f32 %v831, %v1226
        %v1377 = vsub.f32 %v832, %v1226
        %v1378 = vsub.f32 %v833, %v1226
        %v1379 = vsub.f32 %v834, %v1227
        %v1380 = vsub.f32 %v835, %v1227
        %v1381 = vsub.f32 %v836, %v1227
        %v1382 = vsub.f32 %v837, %v1227
        %v1383 = vsub.f32 %v838, %v1227
        %v1384 = vsub.f32 %v839, %v1227
        %v1385 = vsub.f32 %v840, %v1227
        %v1386 = vsub.f32 %v841, %v1228
        %v1387 = vsub.f32 %v842, %v1228
        %v1388 = vsub.f32 %v843, %v1228
        %v1389 = vsub.f32 %v844, %v1228
        %v1390 = vsub.f32 %v845, %v1228
        %v1391 = vsub.f32 %v846, %v1228
        %v1392 = vsub.f32 %v847, %v1228
        %v1393 = vsub.f32 %v848, %v1229
        %v1394 = vsub.f32 %v849, %v1229
        %v1395 = vsub.f32 %v850, %v1229
        %v1396 = vsub.f32 %v851, %v1229
        %v1397 = vsub.f32 %v852, %v1229
        %v1398 = vsub.f32 %v853, %v1229
        %v1399 = vsub.f32 %v854, %v1229
        %v1400 = vsub.f32 %v855, %v1230
        %v1401 = vsub.f32 %v856, %v1230
        %v1402 = vsub.f32 %v857, %v1230
        %v1403 = vsub.f32 %v858, %v1230
        %v1404 = vsub.f32 %v859, %v1230
        %v1405 = vsub.f32 %v860, %v1230
        %v1406 = vsub.f32 %v861, %v1230
        %v1407 = vsub.f32 %v862, %v1231
        %v1408 = vsub.f32 %v863, %v1231
        %v1409 = vsub.f32 %v864, %v1231
        %v1410 = vsub.f32 %v865, %v1231
        %v1411 = vsub.f32 %v866, %v1231
        %v1412 = vsub.f32 %v867, %v1231
        %v1413 = vsub.f32 %v868, %v1231
        %v1414 = vsub.f32 %v869, %v1232
        %v1415 = vsub.f32 %v870, %v1232
        %v1416 = vsub.f32 %v871, %v1232
        %v1417 = vsub.f32 %v872, %v1232
        %v1418 = vsub.f32 %v873, %v1232
        %v1419 = vsub.f32 %v874, %v1232
        %v1420 = vsub.f32 %v875, %v1232
        %v1421 = vsub.f32 %v876, %v1233
        %v1422 = vsub.f32 %v877, %v1233
        %v1423 = vsub.f32 %v878, %v1233
        %v1424 = vsub.f32 %v879, %v1233
        %v1425 = vsub.f32 %v880, %v1233
        %v1426 = vsub.f32 %v881, %v1233
        %v1427 = vsub.f32 %v882, %v1233
        %v1428 = vsub.f32 %v883, %v1234
        %v1429 = vsub.f32 %v884, %v1234
        %v1430 = vsub.f32 %v885, %v1234
        %v1431 = vsub.f32 %v886, %v1234
        %v1432 = vsub.f32 %v887, %v1234
        %v1433 = vsub.f32 %v888, %v1234
        %v1434 = vsub.f32 %v889, %v1234
        %v1435 = vsub.f32 %v890, %v1235
        %v1436 = vsub.f32 %v891, %v1235
        %v1437 = vsub.f32 %v892, %v1235
        %v1438 = vsub.f32 %v893, %v1235
        %v1439 = vsub.f32 %v894, %v1235
        %v1440 = vsub.f32 %v895, %v1235
        %v1441 = vsub.f32 %v896, %v1235
        %v1442 = vsub.f32 %v897, %v1236
        %v1443 = vsub.f32 %v898, %v1236
        %v1444 = vsub.f32 %v899, %v1236
        %v1445 = vsub.f32 %v900, %v1236
        %v1446 = vsub.f32 %v901, %v1236
        %v1447 = vsub.f32 %v902, %v1236
        %v1448 = vsub.f32 %v903, %v1236
        %v1449 = vsub.f32 %v904, %v1237
        %v1450 = vsub.f32 %v905, %v1237
        %v1451 = vsub.f32 %v906, %v1237
        %v1452 = vsub.f32 %v907, %v1237
        %v1453 = vsub.f32 %v908, %v1237
        %v1454 = vsub.f32 %v909, %v1237
        %v1455 = vsub.f32 %v910, %v1237
        %v1456 = vsub.f32 %v911, %v1238
        %v1457 = vsub.f32 %v912, %v1238
        %v1458 = vsub.f32 %v913, %v1238
        %v1459 = vsub.f32 %v914, %v1238
        %v1460 = vsub.f32 %v915, %v1238
        %v1461 = vsub.f32 %v916, %v1238
        %v1462 = vsub.f32 %v917, %v1238
        %v1463 = vmul.f32 %v1239, %v1239
        %v1464 = vmul.f32 %v1240, %v1240
        %v1465 = vmul.f32 %v1241, %v1241
        %v1466 = vmul.f32 %v1242, %v1242
        %v1467 = vmul.f32 %v1243, %v1243
        %v1468 = vmul.f32 %v1244, %v1244
        %v1469 = vmul.f32 %v1245, %v1245
        %v1470 = vmul.f32 %v1246, %v1246
        %v1471 = vmul.f32 %v1247, %v1247
        %v1472 = vmul.f32 %v1248, %v1248
        %v1473 = vmul.f32 %v1249, %v1249
        %v1474 = vmul.f32 %v1250, %v1250
        %v1475 = vmul.f32 %v1251, %v1251
        %v1476 = vmul.f32 %v1252, %v1252
        %v1477 = vmul.f32 %v1253, %v1253
        %v1478 = vmul.f32 %v1254, %v1254
        %v1479 = vmul.f32 %v1255, %v1255
        %v1480 = vmul.f32 %v1256, %v1256
        %v1481 = vmul.f32 %v1257, %v1257
        %v1482 = vmul.f32 %v1258, %v1258
        %v1483 = vmul.f32 %v1259, %v1259
        %v1484 = vmul.f32 %v1260, %v1260
        %v1485 = vmul.f32 %v1261, %v1261
        %v1486 = vmul.f32 %v1262, %v1262
        %v1487 = vmul.f32 %v1263, %v1263
        %v1488 = vmul.f32 %v1264, %v1264
        %v1489 = vmul.f32 %v1265, %v1265
        %v1490 = vmul.f32 %v1266, %v1266
        %v1491 = vmul.f32 %v1267, %v1267
        %v1492 = vmul.f32 %v1268, %v1268
        %v1493 = vmul.f32 %v1269, %v1269
        %v1494 = vmul.f32 %v1270, %v1270
        %v1495 = vmul.f32 %v1271, %v1271
        %v1496 = vmul.f32 %v1272, %v1272
        %v1497 = vmul.f32 %v1273, %v1273
        %v1498 = vmul.f32 %v1274, %v1274
        %v1499 = vmul.f32 %v1275, %v1275
        %v1500 = vmul.f32 %v1276, %v1276
        %v1501 = vmul.f32 %v1277, %v1277
        %v1502 = vmul.f32 %v1278, %v1278
        %v1503 = vmul.f32 %v1279, %v1279
        %v1504 = vmul.f32 %v1280, %v1280
        %v1505 = vmul.f32 %v1281, %v1281
        %v1506 = vmul.f32 %v1282, %v1282
        %v1507 = vmul.f32 %v1283, %v1283
        %v1508 = vmul.f32 %v1284, %v1284
        %v1509 = vmul.f32 %v1285, %v1285
        %v1510 = vmul.f32 %v1286, %v1286
        %v1511 = vmul.f32 %v1287, %v1287
        %v1512 = vmul.f32 %v1288, %v1288
        %v1513 = vmul.f32 %v1289, %v1289
        %v1514 = vmul.f32 %v1290, %v1290
        %v1515 = vmul.f32 %v1291, %v1291
        %v1516 = vmul.f32 %v1292, %v1292
        %v1517 = vmul.f32 %v1293, %v1293
        %v1518 = vmul.f32 %v1294, %v1294
        %v1519 = vmul.f32 %v1295, %v1295
        %v1520 = vmul.f32 %v1296, %v1296
        %v1521 = vmul.f32 %v1297, %v1297
        %v1522 = vmul.f32 %v1298, %v1298
        %v1523 = vmul.f32 %v1299, %v1299
        %v1524 = vmul.f32 %v1300, %v1300
        %v1525 = vmul.f32 %v1301, %v1301
        %v1526 = vmul.f32 %v1302, %v1302
        %v1527 = vmul.f32 %v1303, %v1303
        %v1528 = vmul.f32 %v1304, %v1304
        %v1529 = vmul.f32 %v1305, %v1305
        %v1530 = vmul.f32 %v1306, %v1306
        %v1531 = vmul.f32 %v1307, %v1307
        %v1532 = vmul.f32 %v1308, %v1308
        %v1533 = vmul.f32 %v1309, %v1309
        %v1534 = vmul.f32 %v1310, %v1310
        %v1535 = vmul.f32 %v1311, %v1311
        %v1536 = vmul.f32 %v1312, %v1312
        %v1537 = vmul.f32 %v1313, %v1313
        %v1538 = vmul.f32 %v1314, %v1314
        %v1539 = vmul.f32 %v1315, %v1315
        %v1540 = vmul.f32 %v1316, %v1316
        %v1541 = vmul.f32 %v1317, %v1317
        %v1542 = vmul.f32 %v1318, %v1318
        %v1543 = vmul.f32 %v1319, %v1319
        %v1544 = vmul.f32 %v1320, %v1320
        %v1545 = vmul.f32 %v1321, %v1321
        %v1546 = vmul.f32 %v1322, %v1322
        %v1547 = vmul.f32 %v1323, %v1323
        %v1548 = vmul.f32 %v1324, %v1324
        %v1549 = vmul.f32 %v1325, %v1325
        %v1550 = vmul.f32 %v1326, %v1326
        %v1551 = vmul.f32 %v1327, %v1327
        %v1552 = vmul.f32 %v1328, %v1328
        %v1553 = vmul.f32 %v1329, %v1329
        %v1554 = vmul.f32 %v1330, %v1330
        %v1555 = vmul.f32 %v1331, %v1331
        %v1556 = vmul.f32 %v1332, %v1332
        %v1557 = vmul.f32 %v1333, %v1333
        %v1558 = vmul.f32 %v1334, %v1334
        %v1559 = vmul.f32 %v1335, %v1335
        %v1560 = vmul.f32 %v1336, %v1336
        %v1561 = vmul.f32 %v1337, %v1337
        %v1562 = vmul.f32 %v1338, %v1338
        %v1563 = vmul.f32 %v1339, %v1339
        %v1564 = vmul.f32 %v1340, %v1340
        %v1565 = vmul.f32 %v1341, %v1341
        %v1566 = vmul.f32 %v1342, %v1342
        %v1567 = vmul.f32 %v1343, %v1343
        %v1568 = vmul.f32 %v1344, %v1344
        %v1569 = vmul.f32 %v1345, %v1345
        %v1570 = vmul.f32 %v1346, %v1346
        %v1571 = vmul.f32 %v1347, %v1347
        %v1572 = vmul.f32 %v1348, %v1348
        %v1573 = vmul.f32 %v1349, %v1349
        %v1574 = vmul.f32 %v1350, %v1350
        %v1575 = vmul.f32 %v1351, %v1351
        %v1576 = vmul.f32 %v1352, %v1352
        %v1577 = vmul.f32 %v1353, %v1353
        %v1578 = vmul.f32 %v1354, %v1354
        %v1579 = vmul.f32 %v1355, %v1355
        %v1580 = vmul.f32 %v1356, %v1356
        %v1581 = vmul.f32 %v1357, %v1357
        %v1582 = vmul.f32 %v1358, %v1358
        %v1583 = vmul.f32 %v1359, %v1359
        %v1584 = vmul.f32 %v1360, %v1360
        %v1585 = vmul.f32 %v1361, %v1361
        %v1586 = vmul.f32 %v1362, %v1362
        %v1587 = vmul.f32 %v1363, %v1363
        %v1588 = vmul.f32 %v1364, %v1364
        %v1589 = vmul.f32 %v1365, %v1365
        %v1590 = vmul.f32 %v1366, %v1366
        %v1591 = vmul.f32 %v1367, %v1367
        %v1592 = vmul.f32 %v1368, %v1368
        %v1593 = vmul.f32 %v1369, %v1369
        %v1594 = vmul.f32 %v1370, %v1370
        %v1595 = vmul.f32 %v1371, %v1371
        %v1596 = vmul.f32 %v1372, %v1372
        %v1597 = vmul.f32 %v1373, %v1373
        %v1598 = vmul.f32 %v1374, %v1374
        %v1599 = vmul.f32 %v1375, %v1375
        %v1600 = vmul.f32 %v1376, %v1376
        %v1601 = vmul.f32 %v1377, %v1377
        %v1602 = vmul.f32 %v1378, %v1378
        %v1603 = vmul.f32 %v1379, %v1379
        %v1604 = vmul.f32 %v1380, %v1380
        %v1605 = vmul.f32 %v1381, %v1381
        %v1606 = vmul.f32 %v1382, %v1382
        %v1607 = vmul.f32 %v1383, %v1383
        %v1608 = vmul.f32 %v1384, %v1384
        %v1609 = vmul.f32 %v1385, %v1385
        %v1610 = vmul.f32 %v1386, %v1386
        %v1611 = vmul.f32 %v1387, %v1387
        %v1612 = vmul.f32 %v1388, %v1388
        %v1613 = vmul.f32 %v1389, %v1389
        %v1614 = vmul.f32 %v1390, %v1390
        %v1615 = vmul.f32 %v1391, %v1391
        %v1616 = vmul.f32 %v1392, %v1392
        %v1617 = vmul.f32 %v1393, %v1393
        %v1618 = vmul.f32 %v1394, %v1394
        %v1619 = vmul.f32 %v1395, %v1395
        %v1620 = vmul.f32 %v1396, %v1396
        %v1621 = vmul.f32 %v1397, %v1397
        %v1622 = vmul.f32 %v1398, %v1398
        %v1623 = vmul.f32 %v1399, %v1399
        %v1624 = vmul.f32 %v1400, %v1400
        %v1625 = vmul.f32 %v1401, %v1401
        %v1626 = vmul.f32 %v1402, %v1402
        %v1627 = vmul.f32 %v1403, %v1403
        %v1628 = vmul.f32 %v1404, %v1404
        %v1629 = vmul.f32 %v1405, %v1405
        %v1630 = vmul.f32 %v1406, %v1406
        %v1631 = vmul.f32 %v1407, %v1407
        %v1632 = vmul.f32 %v1408, %v1408
        %v1633 = vmul.f32 %v1409, %v1409
        %v1634 = vmul.f32 %v1410, %v1410
        %v1635 = vmul.f32 %v1411, %v1411
        %v1636 = vmul.f32 %v1412, %v1412
        %v1637 = vmul.f32 %v1413, %v1413
        %v1638 = vmul.f32 %v1414, %v1414
        %v1639 = vmul.f32 %v1415, %v1415
        %v1640 = vmul.f32 %v1416, %v1416
        %v1641 = vmul.f32 %v1417, %v1417
        %v1642 = vmul.f32 %v1418, %v1418
        %v1643 = vmul.f32 %v1419, %v1419
        %v1644 = vmul.f32 %v1420, %v1420
        %v1645 = vmul.f32 %v1421, %v1421
        %v1646 = vmul.f32 %v1422, %v1422
        %v1647 = vmul.f32 %v1423, %v1423
        %v1648 = vmul.f32 %v1424, %v1424
        %v1649 = vmul.f32 %v1425, %v1425
        %v1650 = vmul.f32 %v1426, %v1426
        %v1651 = vmul.f32 %v1427, %v1427
        %v1652 = vmul.f32 %v1428, %v1428
        %v1653 = vmul.f32 %v1429, %v1429
        %v1654 = vmul.f32 %v1430, %v1430
        %v1655 = vmul.f32 %v1431, %v1431
        %v1656 = vmul.f32 %v1432, %v1432
        %v1657 = vmul.f32 %v1433, %v1433
        %v1658 = vmul.f32 %v1434, %v1434
        %v1659 = vmul.f32 %v1435, %v1435
        %v1660 = vmul.f32 %v1436, %v1436
        %v1661 = vmul.f32 %v1437, %v1437
        %v1662 = vmul.f32 %v1438, %v1438
        %v1663 = vmul.f32 %v1439, %v1439
        %v1664 = vmul.f32 %v1440, %v1440
        %v1665 = vmul.f32 %v1441, %v1441
        %v1666 = vmul.f32 %v1442, %v1442
        %v1667 = vmul.f32 %v1443, %v1443
        %v1668 = vmul.f32 %v1444, %v1444
        %v1669 = vmul.f32 %v1445, %v1445
        %v1670 = vmul.f32 %v1446, %v1446
        %v1671 = vmul.f32 %v1447, %v1447
        %v1672 = vmul.f32 %v1448, %v1448
        %v1673 = vmul.f32 %v1449, %v1449
        %v1674 = vmul.f32 %v1450, %v1450
        %v1675 = vmul.f32 %v1451, %v1451
        %v1676 = vmul.f32 %v1452, %v1452
        %v1677 = vmul.f32 %v1453, %v1453
        %v1678 = vmul.f32 %v1454, %v1454
        %v1679 = vmul.f32 %v1455, %v1455
        %v1680 = vmul.f32 %v1456, %v1456
        %v1681 = vmul.f32 %v1457, %v1457
        %v1682 = vmul.f32 %v1458, %v1458
        %v1683 = vmul.f32 %v1459, %v1459
        %v1684 = vmul.f32 %v1460, %v1460
        %v1685 = vmul.f32 %v1461, %v1461
        %v1686 = vmul.f32 %v1462, %v1462
        %v1687 = vadd.f32 %v1463, %v1464
        %v1688 = vadd.f32 %v1687, %v1465
        %v1689 = vadd.f32 %v1688, %v1466
        %v1690 = vadd.f32 %v1689, %v1467
        %v1691 = vadd.f32 %v1690, %v1468
        %v1692 = vsel %vm923, %v1469, 0.0
        %v1693 = vadd.f32 %v1691, %v1692
        %1694 = vadd.xlane.f32.xlu0 %v1693
        %v1695 = vpop.xlane.xlu0 %1694
        %v1696 = vadd.f32 %v1470, %v1471
        %v1697 = vadd.f32 %v1696, %v1472
        %v1698 = vadd.f32 %v1697, %v1473
        %v1699 = vadd.f32 %v1698, %v1474
        %v1700 = vadd.f32 %v1699, %v1475
        %v1701 = vsel %vm923, %v1476, 0.0
        %v1702 = vadd.f32 %v1700, %v1701
        %1703 = vadd.xlane.f32.xlu0 %v1702
        %v1704 = vpop.xlane.xlu0 %1703
        %v1705 = vadd.f32 %v1477, %v1478
        %v1706 = vadd.f32 %v1705, %v1479
        %v1707 = vadd.f32 %v1706, %v1480
        %v1708 = vadd.f32 %v1707, %v1481
        %v1709 = vadd.f32 %v1708, %v1482
        %v1710 = vsel %vm923, %v1483, 0.0
        %v1711 = vadd.f32 %v1709, %v1710
        %1712 = vadd.xlane.f32.xlu0 %v1711
        %v1713 = vpop.xlane.xlu0 %1712
        %v1714 = vadd.f32 %v1484, %v1485
        %v1715 = vadd.f32 %v1714, %v1486
        %v1716 = vadd.f32 %v1715, %v1487
        %v1717 = vadd.f32 %v1716, %v1488
        %v1718 = vadd.f32 %v1717, %v1489
        %v1719 = vsel %vm923, %v1490, 0.0
        %v1720 = vadd.f32 %v1718, %v1719
        %1721 = vadd.xlane.f32.xlu0 %v1720
        %v1722 = vpop.xlane.xlu0 %1721
        %v1723 = vadd.f32 %v1491, %v1492
        %v1724 = vadd.f32 %v1723, %v1493
        %v1725 = vadd.f32 %v1724, %v1494
        %v1726 = vadd.f32 %v1725, %v1495
        %v1727 = vadd.f32 %v1726, %v1496
        %v1728 = vsel %vm923, %v1497, 0.0
        %v1729 = vadd.f32 %v1727, %v1728
        %1730 = vadd.xlane.f32.xlu0 %v1729
        %v1731 = vpop.xlane.xlu0 %1730
        %v1732 = vadd.f32 %v1498, %v1499
        %v1733 = vadd.f32 %v1732, %v1500
        %v1734 = vadd.f32 %v1733, %v1501
        %v1735 = vadd.f32 %v1734, %v1502
        %v1736 = vadd.f32 %v1735, %v1503
        %v1737 = vsel %vm923, %v1504, 0.0
        %v1738 = vadd.f32 %v1736, %v1737
        %1739 = vadd.xlane.f32.xlu0 %v1738
        %v1740 = vpop.xlane.xlu0 %1739
        %v1741 = vadd.f32 %v1505, %v1506
        %v1742 = vadd.f32 %v1741, %v1507
        %v1743 = vadd.f32 %v1742, %v1508
        %v1744 = vadd.f32 %v1743, %v1509
        %v1745 = vadd.f32 %v1744, %v1510
        %v1746 = vsel %vm923, %v1511, 0.0
        %v1747 = vadd.f32 %v1745, %v1746
        %1748 = vadd.xlane.f32.xlu0 %v1747
        %v1749 = vpop.xlane.xlu0 %1748
        %v1750 = vadd.f32 %v1512, %v1513
        %v1751 = vadd.f32 %v1750, %v1514
        %v1752 = vadd.f32 %v1751, %v1515
        %v1753 = vadd.f32 %v1752, %v1516
        %v1754 = vadd.f32 %v1753, %v1517
        %v1755 = vsel %vm923, %v1518, 0.0
        %v1756 = vadd.f32 %v1754, %v1755
        %1757 = vadd.xlane.f32.xlu0 %v1756
        %v1758 = vpop.xlane.xlu0 %1757
        %v1759 = vadd.f32 %v1519, %v1520
        %v1760 = vadd.f32 %v1759, %v1521
        %v1761 = vadd.f32 %v1760, %v1522
        %v1762 = vadd.f32 %v1761, %v1523
        %v1763 = vadd.f32 %v1762, %v1524
        %v1764 = vsel %vm923, %v1525, 0.0
        %v1765 = vadd.f32 %v1763, %v1764
        %1766 = vadd.xlane.f32.xlu0 %v1765
        %v1767 = vpop.xlane.xlu0 %1766
        %v1768 = vadd.f32 %v1526, %v1527
        %v1769 = vadd.f32 %v1768, %v1528
        %v1770 = vadd.f32 %v1769, %v1529
        %v1771 = vadd.f32 %v1770, %v1530
        %v1772 = vadd.f32 %v1771, %v1531
        %v1773 = vsel %vm923, %v1532, 0.0
        %v1774 = vadd.f32 %v1772, %v1773
        %1775 = vadd.xlane.f32.xlu0 %v1774
        %v1776 = vpop.xlane.xlu0 %1775
        %v1777 = vadd.f32 %v1533, %v1534
        %v1778 = vadd.f32 %v1777, %v1535
        %v1779 = vadd.f32 %v1778, %v1536
        %v1780 = vadd.f32 %v1779, %v1537
        %v1781 = vadd.f32 %v1780, %v1538
        %v1782 = vsel %vm923, %v1539, 0.0
        %v1783 = vadd.f32 %v1781, %v1782
        %1784 = vadd.xlane.f32.xlu0 %v1783
        %v1785 = vpop.xlane.xlu0 %1784
        %v1786 = vadd.f32 %v1540, %v1541
        %v1787 = vadd.f32 %v1786, %v1542
        %v1788 = vadd.f32 %v1787, %v1543
        %v1789 = vadd.f32 %v1788, %v1544
        %v1790 = vadd.f32 %v1789, %v1545
        %v1791 = vsel %vm923, %v1546, 0.0
        %v1792 = vadd.f32 %v1790, %v1791
        %1793 = vadd.xlane.f32.xlu0 %v1792
        %v1794 = vpop.xlane.xlu0 %1793
        %v1795 = vadd.f32 %v1547, %v1548
        %v1796 = vadd.f32 %v1795, %v1549
        %v1797 = vadd.f32 %v1796, %v1550
        %v1798 = vadd.f32 %v1797, %v1551
        %v1799 = vadd.f32 %v1798, %v1552
        %v1800 = vsel %vm923, %v1553, 0.0
        %v1801 = vadd.f32 %v1799, %v1800
        %1802 = vadd.xlane.f32.xlu0 %v1801
        %v1803 = vpop.xlane.xlu0 %1802
        %v1804 = vadd.f32 %v1554, %v1555
        %v1805 = vadd.f32 %v1804, %v1556
        %v1806 = vadd.f32 %v1805, %v1557
        %v1807 = vadd.f32 %v1806, %v1558
        %v1808 = vadd.f32 %v1807, %v1559
        %v1809 = vsel %vm923, %v1560, 0.0
        %v1810 = vadd.f32 %v1808, %v1809
        %1811 = vadd.xlane.f32.xlu0 %v1810
        %v1812 = vpop.xlane.xlu0 %1811
        %v1813 = vadd.f32 %v1561, %v1562
        %v1814 = vadd.f32 %v1813, %v1563
        %v1815 = vadd.f32 %v1814, %v1564
        %v1816 = vadd.f32 %v1815, %v1565
        %v1817 = vadd.f32 %v1816, %v1566
        %v1818 = vsel %vm923, %v1567, 0.0
        %v1819 = vadd.f32 %v1817, %v1818
        %1820 = vadd.xlane.f32.xlu0 %v1819
        %v1821 = vpop.xlane.xlu0 %1820
        %v1822 = vadd.f32 %v1568, %v1569
        %v1823 = vadd.f32 %v1822, %v1570
        %v1824 = vadd.f32 %v1823, %v1571
        %v1825 = vadd.f32 %v1824, %v1572
        %v1826 = vadd.f32 %v1825, %v1573
        %v1827 = vsel %vm923, %v1574, 0.0
        %v1828 = vadd.f32 %v1826, %v1827
        %1829 = vadd.xlane.f32.xlu0 %v1828
        %v1830 = vpop.xlane.xlu0 %1829
        %v1831 = vadd.f32 %v1575, %v1576
        %v1832 = vadd.f32 %v1831, %v1577
        %v1833 = vadd.f32 %v1832, %v1578
        %v1834 = vadd.f32 %v1833, %v1579
        %v1835 = vadd.f32 %v1834, %v1580
        %v1836 = vsel %vm923, %v1581, 0.0
        %v1837 = vadd.f32 %v1835, %v1836
        %1838 = vadd.xlane.f32.xlu0 %v1837
        %v1839 = vpop.xlane.xlu0 %1838
        %v1840 = vadd.f32 %v1582, %v1583
        %v1841 = vadd.f32 %v1840, %v1584
        %v1842 = vadd.f32 %v1841, %v1585
        %v1843 = vadd.f32 %v1842, %v1586
        %v1844 = vadd.f32 %v1843, %v1587
        %v1845 = vsel %vm923, %v1588, 0.0
        %v1846 = vadd.f32 %v1844, %v1845
        %1847 = vadd.xlane.f32.xlu0 %v1846
        %v1848 = vpop.xlane.xlu0 %1847
        %v1849 = vadd.f32 %v1589, %v1590
        %v1850 = vadd.f32 %v1849, %v1591
        %v1851 = vadd.f32 %v1850, %v1592
        %v1852 = vadd.f32 %v1851, %v1593
        %v1853 = vadd.f32 %v1852, %v1594
        %v1854 = vsel %vm923, %v1595, 0.0
        %v1855 = vadd.f32 %v1853, %v1854
        %1856 = vadd.xlane.f32.xlu0 %v1855
        %v1857 = vpop.xlane.xlu0 %1856
        %v1858 = vadd.f32 %v1596, %v1597
        %v1859 = vadd.f32 %v1858, %v1598
        %v1860 = vadd.f32 %v1859, %v1599
        %v1861 = vadd.f32 %v1860, %v1600
        %v1862 = vadd.f32 %v1861, %v1601
        %v1863 = vsel %vm923, %v1602, 0.0
        %v1864 = vadd.f32 %v1862, %v1863
        %1865 = vadd.xlane.f32.xlu0 %v1864
        %v1866 = vpop.xlane.xlu0 %1865
        %v1867 = vadd.f32 %v1603, %v1604
        %v1868 = vadd.f32 %v1867, %v1605
        %v1869 = vadd.f32 %v1868, %v1606
        %v1870 = vadd.f32 %v1869, %v1607
        %v1871 = vadd.f32 %v1870, %v1608
        %v1872 = vsel %vm923, %v1609, 0.0
        %v1873 = vadd.f32 %v1871, %v1872
        %1874 = vadd.xlane.f32.xlu0 %v1873
        %v1875 = vpop.xlane.xlu0 %1874
        %v1876 = vadd.f32 %v1610, %v1611
        %v1877 = vadd.f32 %v1876, %v1612
        %v1878 = vadd.f32 %v1877, %v1613
        %v1879 = vadd.f32 %v1878, %v1614
        %v1880 = vadd.f32 %v1879, %v1615
        %v1881 = vsel %vm923, %v1616, 0.0
        %v1882 = vadd.f32 %v1880, %v1881
        %1883 = vadd.xlane.f32.xlu0 %v1882
        %v1884 = vpop.xlane.xlu0 %1883
        %v1885 = vadd.f32 %v1617, %v1618
        %v1886 = vadd.f32 %v1885, %v1619
        %v1887 = vadd.f32 %v1886, %v1620
        %v1888 = vadd.f32 %v1887, %v1621
        %v1889 = vadd.f32 %v1888, %v1622
        %v1890 = vsel %vm923, %v1623, 0.0
        %v1891 = vadd.f32 %v1889, %v1890
        %1892 = vadd.xlane.f32.xlu0 %v1891
        %v1893 = vpop.xlane.xlu0 %1892
        %v1894 = vadd.f32 %v1624, %v1625
        %v1895 = vadd.f32 %v1894, %v1626
        %v1896 = vadd.f32 %v1895, %v1627
        %v1897 = vadd.f32 %v1896, %v1628
        %v1898 = vadd.f32 %v1897, %v1629
        %v1899 = vsel %vm923, %v1630, 0.0
        %v1900 = vadd.f32 %v1898, %v1899
        %1901 = vadd.xlane.f32.xlu0 %v1900
        %v1902 = vpop.xlane.xlu0 %1901
        %v1903 = vadd.f32 %v1631, %v1632
        %v1904 = vadd.f32 %v1903, %v1633
        %v1905 = vadd.f32 %v1904, %v1634
        %v1906 = vadd.f32 %v1905, %v1635
        %v1907 = vadd.f32 %v1906, %v1636
        %v1908 = vsel %vm923, %v1637, 0.0
        %v1909 = vadd.f32 %v1907, %v1908
        %1910 = vadd.xlane.f32.xlu0 %v1909
        %v1911 = vpop.xlane.xlu0 %1910
        %v1912 = vadd.f32 %v1638, %v1639
        %v1913 = vadd.f32 %v1912, %v1640
        %v1914 = vadd.f32 %v1913, %v1641
        %v1915 = vadd.f32 %v1914, %v1642
        %v1916 = vadd.f32 %v1915, %v1643
        %v1917 = vsel %vm923, %v1644, 0.0
        %v1918 = vadd.f32 %v1916, %v1917
        %1919 = vadd.xlane.f32.xlu0 %v1918
        %v1920 = vpop.xlane.xlu0 %1919
        %v1921 = vadd.f32 %v1645, %v1646
        %v1922 = vadd.f32 %v1921, %v1647
        %v1923 = vadd.f32 %v1922, %v1648
        %v1924 = vadd.f32 %v1923, %v1649
        %v1925 = vadd.f32 %v1924, %v1650
        %v1926 = vsel %vm923, %v1651, 0.0
        %v1927 = vadd.f32 %v1925, %v1926
        %1928 = vadd.xlane.f32.xlu0 %v1927
        %v1929 = vpop.xlane.xlu0 %1928
        %v1930 = vadd.f32 %v1652, %v1653
        %v1931 = vadd.f32 %v1930, %v1654
        %v1932 = vadd.f32 %v1931, %v1655
        %v1933 = vadd.f32 %v1932, %v1656
        %v1934 = vadd.f32 %v1933, %v1657
        %v1935 = vsel %vm923, %v1658, 0.0
        %v1936 = vadd.f32 %v1934, %v1935
        %1937 = vadd.xlane.f32.xlu0 %v1936
        %v1938 = vpop.xlane.xlu0 %1937
        %v1939 = vadd.f32 %v1659, %v1660
        %v1940 = vadd.f32 %v1939, %v1661
        %v1941 = vadd.f32 %v1940, %v1662
        %v1942 = vadd.f32 %v1941, %v1663
        %v1943 = vadd.f32 %v1942, %v1664
        %v1944 = vsel %vm923, %v1665, 0.0
        %v1945 = vadd.f32 %v1943, %v1944
        %1946 = vadd.xlane.f32.xlu0 %v1945
        %v1947 = vpop.xlane.xlu0 %1946
        %v1948 = vadd.f32 %v1666, %v1667
        %v1949 = vadd.f32 %v1948, %v1668
        %v1950 = vadd.f32 %v1949, %v1669
        %v1951 = vadd.f32 %v1950, %v1670
        %v1952 = vadd.f32 %v1951, %v1671
        %v1953 = vsel %vm923, %v1672, 0.0
        %v1954 = vadd.f32 %v1952, %v1953
        %1955 = vadd.xlane.f32.xlu0 %v1954
        %v1956 = vpop.xlane.xlu0 %1955
        %v1957 = vadd.f32 %v1673, %v1674
        %v1958 = vadd.f32 %v1957, %v1675
        %v1959 = vadd.f32 %v1958, %v1676
        %v1960 = vadd.f32 %v1959, %v1677
        %v1961 = vadd.f32 %v1960, %v1678
        %v1962 = vsel %vm923, %v1679, 0.0
        %v1963 = vadd.f32 %v1961, %v1962
        %1964 = vadd.xlane.f32.xlu0 %v1963
        %v1965 = vpop.xlane.xlu0 %1964
        %v1966 = vadd.f32 %v1680, %v1681
        %v1967 = vadd.f32 %v1966, %v1682
        %v1968 = vadd.f32 %v1967, %v1683
        %v1969 = vadd.f32 %v1968, %v1684
        %v1970 = vadd.f32 %v1969, %v1685
        %v1971 = vsel %vm923, %v1686, 0.0
        %v1972 = vadd.f32 %v1970, %v1971
        %1973 = vadd.xlane.f32.xlu0 %v1972
        %v1974 = vpop.xlane.xlu0 %1973
        %v1975 = vmul.f32 %v1695, 0.0012755102
        %v1976 = vmul.f32 %v1704, 0.0012755102
        %v1977 = vmul.f32 %v1713, 0.0012755102
        %v1978 = vmul.f32 %v1722, 0.0012755102
        %v1979 = vmul.f32 %v1731, 0.0012755102
        %v1980 = vmul.f32 %v1740, 0.0012755102
        %v1981 = vmul.f32 %v1749, 0.0012755102
        %v1982 = vmul.f32 %v1758, 0.0012755102
        %v1983 = vmul.f32 %v1767, 0.0012755102
        %v1984 = vmul.f32 %v1776, 0.0012755102
        %v1985 = vmul.f32 %v1785, 0.0012755102
        %v1986 = vmul.f32 %v1794, 0.0012755102
        %v1987 = vmul.f32 %v1803, 0.0012755102
        %v1988 = vmul.f32 %v1812, 0.0012755102
        %v1989 = vmul.f32 %v1821, 0.0012755102
        %v1990 = vmul.f32 %v1830, 0.0012755102
        %v1991 = vmul.f32 %v1839, 0.0012755102
        %v1992 = vmul.f32 %v1848, 0.0012755102
        %v1993 = vmul.f32 %v1857, 0.0012755102
        %v1994 = vmul.f32 %v1866, 0.0012755102
        %v1995 = vmul.f32 %v1875, 0.0012755102
        %v1996 = vmul.f32 %v1884, 0.0012755102
        %v1997 = vmul.f32 %v1893, 0.0012755102
        %v1998 = vmul.f32 %v1902, 0.0012755102
        %v1999 = vmul.f32 %v1911, 0.0012755102
        %v2000 = vmul.f32 %v1920, 0.0012755102
        %v2001 = vmul.f32 %v1929, 0.0012755102
        %v2002 = vmul.f32 %v1938, 0.0012755102
        %v2003 = vmul.f32 %v1947, 0.0012755102
        %v2004 = vmul.f32 %v1956, 0.0012755102
        %v2005 = vmul.f32 %v1965, 0.0012755102
        %v2006 = vmul.f32 %v1974, 0.0012755102
        %v2007 = vmax.f32 %v1975, 0.0
        %v2008 = vmax.f32 %v1976, 0.0
        %v2009 = vmax.f32 %v1977, 0.0
        %v2010 = vmax.f32 %v1978, 0.0
        %v2011 = vmax.f32 %v1979, 0.0
        %v2012 = vmax.f32 %v1980, 0.0
        %v2013 = vmax.f32 %v1981, 0.0
        %v2014 = vmax.f32 %v1982, 0.0
        %v2015 = vmax.f32 %v1983, 0.0
        %v2016 = vmax.f32 %v1984, 0.0
        %v2017 = vmax.f32 %v1985, 0.0
        %v2018 = vmax.f32 %v1986, 0.0
        %v2019 = vmax.f32 %v1987, 0.0
        %v2020 = vmax.f32 %v1988, 0.0
        %v2021 = vmax.f32 %v1989, 0.0
        %v2022 = vmax.f32 %v1990, 0.0
        %v2023 = vmax.f32 %v1991, 0.0
        %v2024 = vmax.f32 %v1992, 0.0
        %v2025 = vmax.f32 %v1993, 0.0
        %v2026 = vmax.f32 %v1994, 0.0
        %v2027 = vmax.f32 %v1995, 0.0
        %v2028 = vmax.f32 %v1996, 0.0
        %v2029 = vmax.f32 %v1997, 0.0
        %v2030 = vmax.f32 %v1998, 0.0
        %v2031 = vmax.f32 %v1999, 0.0
        %v2032 = vmax.f32 %v2000, 0.0
        %v2033 = vmax.f32 %v2001, 0.0
        %v2034 = vmax.f32 %v2002, 0.0
        %v2035 = vmax.f32 %v2003, 0.0
        %v2036 = vmax.f32 %v2004, 0.0
        %v2037 = vmax.f32 %v2005, 0.0
        %v2038 = vmax.f32 %v2006, 0.0
        %v2039 = vadd.f32 %v2007, 1e-05
        %v2040 = vadd.f32 %v2008, 1e-05
        %v2041 = vadd.f32 %v2009, 1e-05
        %v2042 = vadd.f32 %v2010, 1e-05
        %v2043 = vadd.f32 %v2011, 1e-05
        %v2044 = vadd.f32 %v2012, 1e-05
        %v2045 = vadd.f32 %v2013, 1e-05
        %v2046 = vadd.f32 %v2014, 1e-05
        %v2047 = vadd.f32 %v2015, 1e-05
        %v2048 = vadd.f32 %v2016, 1e-05
        %v2049 = vadd.f32 %v2017, 1e-05
        %v2050 = vadd.f32 %v2018, 1e-05
        %v2051 = vadd.f32 %v2019, 1e-05
        %v2052 = vadd.f32 %v2020, 1e-05
        %v2053 = vadd.f32 %v2021, 1e-05
        %v2054 = vadd.f32 %v2022, 1e-05
        %v2055 = vadd.f32 %v2023, 1e-05
        %v2056 = vadd.f32 %v2024, 1e-05
        %v2057 = vadd.f32 %v2025, 1e-05
        %v2058 = vadd.f32 %v2026, 1e-05
        %v2059 = vadd.f32 %v2027, 1e-05
        %v2060 = vadd.f32 %v2028, 1e-05
        %v2061 = vadd.f32 %v2029, 1e-05
        %v2062 = vadd.f32 %v2030, 1e-05
        %v2063 = vadd.f32 %v2031, 1e-05
        %v2064 = vadd.f32 %v2032, 1e-05
        %v2065 = vadd.f32 %v2033, 1e-05
        %v2066 = vadd.f32 %v2034, 1e-05
        %v2067 = vadd.f32 %v2035, 1e-05
        %v2068 = vadd.f32 %v2036, 1e-05
        %v2069 = vadd.f32 %v2037, 1e-05
        %v2070 = vadd.f32 %v2038, 1e-05
        %v2071 = vrsqrt.pop %v2039
        %v2072 = vmul.f32 %v2071, %v2039
        %v2073 = vmul.f32 %v2072, %v2071
        %v2074 = vmul.f32 0.5, %v2073
        %v2075 = vsub.f32 1.5, %v2074
        %v2076 = vmul.f32 %v2071, %v2075
        %vm2077 = vweird.f32 %v2039
        %vm2078 = vweird.f32 %v2071
        %vm2079 = vmor %vm2077, %vm2078
        %v2080 = vsel %vm2079, %v2071, %v2076
        %v2081 = vrsqrt.pop %v2040
        %v2082 = vmul.f32 %v2081, %v2040
        %v2083 = vmul.f32 %v2082, %v2081
        %v2084 = vmul.f32 0.5, %v2083
        %v2085 = vsub.f32 1.5, %v2084
        %v2086 = vmul.f32 %v2081, %v2085
        %vm2087 = vweird.f32 %v2040
        %vm2088 = vweird.f32 %v2081
        %vm2089 = vmor %vm2087, %vm2088
        %v2090 = vsel %vm2089, %v2081, %v2086
        %v2091 = vrsqrt.pop %v2041
        %v2092 = vmul.f32 %v2091, %v2041
        %v2093 = vmul.f32 %v2092, %v2091
        %v2094 = vmul.f32 0.5, %v2093
        %v2095 = vsub.f32 1.5, %v2094
        %v2096 = vmul.f32 %v2091, %v2095
        %vm2097 = vweird.f32 %v2041
        %vm2098 = vweird.f32 %v2091
        %vm2099 = vmor %vm2097, %vm2098
        %v2100 = vsel %vm2099, %v2091, %v2096
        %v2101 = vrsqrt.pop %v2042
        %v2102 = vmul.f32 %v2101, %v2042
        %v2103 = vmul.f32 %v2102, %v2101
        %v2104 = vmul.f32 0.5, %v2103
        %v2105 = vsub.f32 1.5, %v2104
        %v2106 = vmul.f32 %v2101, %v2105
        %vm2107 = vweird.f32 %v2042
        %vm2108 = vweird.f32 %v2101
        %vm2109 = vmor %vm2107, %vm2108
        %v2110 = vsel %vm2109, %v2101, %v2106
        %v2111 = vrsqrt.pop %v2043
        %v2112 = vmul.f32 %v2111, %v2043
        %v2113 = vmul.f32 %v2112, %v2111
        %v2114 = vmul.f32 0.5, %v2113
        %v2115 = vsub.f32 1.5, %v2114
        %v2116 = vmul.f32 %v2111, %v2115
        %vm2117 = vweird.f32 %v2043
        %vm2118 = vweird.f32 %v2111
        %vm2119 = vmor %vm2117, %vm2118
        %v2120 = vsel %vm2119, %v2111, %v2116
        %v2121 = vrsqrt.pop %v2044
        %v2122 = vmul.f32 %v2121, %v2044
        %v2123 = vmul.f32 %v2122, %v2121
        %v2124 = vmul.f32 0.5, %v2123
        %v2125 = vsub.f32 1.5, %v2124
        %v2126 = vmul.f32 %v2121, %v2125
        %vm2127 = vweird.f32 %v2044
        %vm2128 = vweird.f32 %v2121
        %vm2129 = vmor %vm2127, %vm2128
        %v2130 = vsel %vm2129, %v2121, %v2126
        %v2131 = vrsqrt.pop %v2045
        %v2132 = vmul.f32 %v2131, %v2045
        %v2133 = vmul.f32 %v2132, %v2131
        %v2134 = vmul.f32 0.5, %v2133
        %v2135 = vsub.f32 1.5, %v2134
        %v2136 = vmul.f32 %v2131, %v2135
        %vm2137 = vweird.f32 %v2045
        %vm2138 = vweird.f32 %v2131
        %vm2139 = vmor %vm2137, %vm2138
        %v2140 = vsel %vm2139, %v2131, %v2136
        %v2141 = vrsqrt.pop %v2046
        %v2142 = vmul.f32 %v2141, %v2046
        %v2143 = vmul.f32 %v2142, %v2141
        %v2144 = vmul.f32 0.5, %v2143
        %v2145 = vsub.f32 1.5, %v2144
        %v2146 = vmul.f32 %v2141, %v2145
        %vm2147 = vweird.f32 %v2046
        %vm2148 = vweird.f32 %v2141
        %vm2149 = vmor %vm2147, %vm2148
        %v2150 = vsel %vm2149, %v2141, %v2146
        %v2151 = vrsqrt.pop %v2047
        %v2152 = vmul.f32 %v2151, %v2047
        %v2153 = vmul.f32 %v2152, %v2151
        %v2154 = vmul.f32 0.5, %v2153
        %v2155 = vsub.f32 1.5, %v2154
        %v2156 = vmul.f32 %v2151, %v2155
        %vm2157 = vweird.f32 %v2047
        %vm2158 = vweird.f32 %v2151
        %vm2159 = vmor %vm2157, %vm2158
        %v2160 = vsel %vm2159, %v2151, %v2156
        %v2161 = vrsqrt.pop %v2048
        %v2162 = vmul.f32 %v2161, %v2048
        %v2163 = vmul.f32 %v2162, %v2161
        %v2164 = vmul.f32 0.5, %v2163
        %v2165 = vsub.f32 1.5, %v2164
        %v2166 = vmul.f32 %v2161, %v2165
        %vm2167 = vweird.f32 %v2048
        %vm2168 = vweird.f32 %v2161
        %vm2169 = vmor %vm2167, %vm2168
        %v2170 = vsel %vm2169, %v2161, %v2166
        %v2171 = vrsqrt.pop %v2049
        %v2172 = vmul.f32 %v2171, %v2049
        %v2173 = vmul.f32 %v2172, %v2171
        %v2174 = vmul.f32 0.5, %v2173
        %v2175 = vsub.f32 1.5, %v2174
        %v2176 = vmul.f32 %v2171, %v2175
        %vm2177 = vweird.f32 %v2049
        %vm2178 = vweird.f32 %v2171
        %vm2179 = vmor %vm2177, %vm2178
        %v2180 = vsel %vm2179, %v2171, %v2176
        %v2181 = vrsqrt.pop %v2050
        %v2182 = vmul.f32 %v2181, %v2050
        %v2183 = vmul.f32 %v2182, %v2181
        %v2184 = vmul.f32 0.5, %v2183
        %v2185 = vsub.f32 1.5, %v2184
        %v2186 = vmul.f32 %v2181, %v2185
        %vm2187 = vweird.f32 %v2050
        %vm2188 = vweird.f32 %v2181
        %vm2189 = vmor %vm2187, %vm2188
        %v2190 = vsel %vm2189, %v2181, %v2186
        %v2191 = vrsqrt.pop %v2051
        %v2192 = vmul.f32 %v2191, %v2051
        %v2193 = vmul.f32 %v2192, %v2191
        %v2194 = vmul.f32 0.5, %v2193
        %v2195 = vsub.f32 1.5, %v2194
        %v2196 = vmul.f32 %v2191, %v2195
        %vm2197 = vweird.f32 %v2051
        %vm2198 = vweird.f32 %v2191
        %vm2199 = vmor %vm2197, %vm2198
        %v2200 = vsel %vm2199, %v2191, %v2196
        %v2201 = vrsqrt.pop %v2052
        %v2202 = vmul.f32 %v2201, %v2052
        %v2203 = vmul.f32 %v2202, %v2201
        %v2204 = vmul.f32 0.5, %v2203
        %v2205 = vsub.f32 1.5, %v2204
        %v2206 = vmul.f32 %v2201, %v2205
        %vm2207 = vweird.f32 %v2052
        %vm2208 = vweird.f32 %v2201
        %vm2209 = vmor %vm2207, %vm2208
        %v2210 = vsel %vm2209, %v2201, %v2206
        %v2211 = vrsqrt.pop %v2053
        %v2212 = vmul.f32 %v2211, %v2053
        %v2213 = vmul.f32 %v2212, %v2211
        %v2214 = vmul.f32 0.5, %v2213
        %v2215 = vsub.f32 1.5, %v2214
        %v2216 = vmul.f32 %v2211, %v2215
        %vm2217 = vweird.f32 %v2053
        %vm2218 = vweird.f32 %v2211
        %vm2219 = vmor %vm2217, %vm2218
        %v2220 = vsel %vm2219, %v2211, %v2216
        %v2221 = vrsqrt.pop %v2054
        %v2222 = vmul.f32 %v2221, %v2054
        %v2223 = vmul.f32 %v2222, %v2221
        %v2224 = vmul.f32 0.5, %v2223
        %v2225 = vsub.f32 1.5, %v2224
        %v2226 = vmul.f32 %v2221, %v2225
        %vm2227 = vweird.f32 %v2054
        %vm2228 = vweird.f32 %v2221
        %vm2229 = vmor %vm2227, %vm2228
        %v2230 = vsel %vm2229, %v2221, %v2226
        %v2231 = vrsqrt.pop %v2055
        %v2232 = vmul.f32 %v2231, %v2055
        %v2233 = vmul.f32 %v2232, %v2231
        %v2234 = vmul.f32 0.5, %v2233
        %v2235 = vsub.f32 1.5, %v2234
        %v2236 = vmul.f32 %v2231, %v2235
        %vm2237 = vweird.f32 %v2055
        %vm2238 = vweird.f32 %v2231
        %vm2239 = vmor %vm2237, %vm2238
        %v2240 = vsel %vm2239, %v2231, %v2236
        %v2241 = vrsqrt.pop %v2056
        %v2242 = vmul.f32 %v2241, %v2056
        %v2243 = vmul.f32 %v2242, %v2241
        %v2244 = vmul.f32 0.5, %v2243
        %v2245 = vsub.f32 1.5, %v2244
        %v2246 = vmul.f32 %v2241, %v2245
        %vm2247 = vweird.f32 %v2056
        %vm2248 = vweird.f32 %v2241
        %vm2249 = vmor %vm2247, %vm2248
        %v2250 = vsel %vm2249, %v2241, %v2246
        %v2251 = vrsqrt.pop %v2057
        %v2252 = vmul.f32 %v2251, %v2057
        %v2253 = vmul.f32 %v2252, %v2251
        %v2254 = vmul.f32 0.5, %v2253
        %v2255 = vsub.f32 1.5, %v2254
        %v2256 = vmul.f32 %v2251, %v2255
        %vm2257 = vweird.f32 %v2057
        %vm2258 = vweird.f32 %v2251
        %vm2259 = vmor %vm2257, %vm2258
        %v2260 = vsel %vm2259, %v2251, %v2256
        %v2261 = vrsqrt.pop %v2058
        %v2262 = vmul.f32 %v2261, %v2058
        %v2263 = vmul.f32 %v2262, %v2261
        %v2264 = vmul.f32 0.5, %v2263
        %v2265 = vsub.f32 1.5, %v2264
        %v2266 = vmul.f32 %v2261, %v2265
        %vm2267 = vweird.f32 %v2058
        %vm2268 = vweird.f32 %v2261
        %vm2269 = vmor %vm2267, %vm2268
        %v2270 = vsel %vm2269, %v2261, %v2266
        %v2271 = vrsqrt.pop %v2059
        %v2272 = vmul.f32 %v2271, %v2059
        %v2273 = vmul.f32 %v2272, %v2271
        %v2274 = vmul.f32 0.5, %v2273
        %v2275 = vsub.f32 1.5, %v2274
        %v2276 = vmul.f32 %v2271, %v2275
        %vm2277 = vweird.f32 %v2059
        %vm2278 = vweird.f32 %v2271
        %vm2279 = vmor %vm2277, %vm2278
        %v2280 = vsel %vm2279, %v2271, %v2276
        %v2281 = vrsqrt.pop %v2060
        %v2282 = vmul.f32 %v2281, %v2060
        %v2283 = vmul.f32 %v2282, %v2281
        %v2284 = vmul.f32 0.5, %v2283
        %v2285 = vsub.f32 1.5, %v2284
        %v2286 = vmul.f32 %v2281, %v2285
        %vm2287 = vweird.f32 %v2060
        %vm2288 = vweird.f32 %v2281
        %vm2289 = vmor %vm2287, %vm2288
        %v2290 = vsel %vm2289, %v2281, %v2286
        %v2291 = vrsqrt.pop %v2061
        %v2292 = vmul.f32 %v2291, %v2061
        %v2293 = vmul.f32 %v2292, %v2291
        %v2294 = vmul.f32 0.5, %v2293
        %v2295 = vsub.f32 1.5, %v2294
        %v2296 = vmul.f32 %v2291, %v2295
        %vm2297 = vweird.f32 %v2061
        %vm2298 = vweird.f32 %v2291
        %vm2299 = vmor %vm2297, %vm2298
        %v2300 = vsel %vm2299, %v2291, %v2296
        %v2301 = vrsqrt.pop %v2062
        %v2302 = vmul.f32 %v2301, %v2062
        %v2303 = vmul.f32 %v2302, %v2301
        %v2304 = vmul.f32 0.5, %v2303
        %v2305 = vsub.f32 1.5, %v2304
        %v2306 = vmul.f32 %v2301, %v2305
        %vm2307 = vweird.f32 %v2062
        %vm2308 = vweird.f32 %v2301
        %vm2309 = vmor %vm2307, %vm2308
        %v2310 = vsel %vm2309, %v2301, %v2306
        %v2311 = vrsqrt.pop %v2063
        %v2312 = vmul.f32 %v2311, %v2063
        %v2313 = vmul.f32 %v2312, %v2311
        %v2314 = vmul.f32 0.5, %v2313
        %v2315 = vsub.f32 1.5, %v2314
        %v2316 = vmul.f32 %v2311, %v2315
        %vm2317 = vweird.f32 %v2063
        %vm2318 = vweird.f32 %v2311
        %vm2319 = vmor %vm2317, %vm2318
        %v2320 = vsel %vm2319, %v2311, %v2316
        %v2321 = vrsqrt.pop %v2064
        %v2322 = vmul.f32 %v2321, %v2064
        %v2323 = vmul.f32 %v2322, %v2321
        %v2324 = vmul.f32 0.5, %v2323
        %v2325 = vsub.f32 1.5, %v2324
        %v2326 = vmul.f32 %v2321, %v2325
        %vm2327 = vweird.f32 %v2064
        %vm2328 = vweird.f32 %v2321
        %vm2329 = vmor %vm2327, %vm2328
        %v2330 = vsel %vm2329, %v2321, %v2326
        %v2331 = vrsqrt.pop %v2065
        %v2332 = vmul.f32 %v2331, %v2065
        %v2333 = vmul.f32 %v2332, %v2331
        %v2334 = vmul.f32 0.5, %v2333
        %v2335 = vsub.f32 1.5, %v2334
        %v2336 = vmul.f32 %v2331, %v2335
        %vm2337 = vweird.f32 %v2065
        %vm2338 = vweird.f32 %v2331
        %vm2339 = vmor %vm2337, %vm2338
        %v2340 = vsel %vm2339, %v2331, %v2336
        %v2341 = vrsqrt.pop %v2066
        %v2342 = vmul.f32 %v2341, %v2066
        %v2343 = vmul.f32 %v2342, %v2341
        %v2344 = vmul.f32 0.5, %v2343
        %v2345 = vsub.f32 1.5, %v2344
        %v2346 = vmul.f32 %v2341, %v2345
        %vm2347 = vweird.f32 %v2066
        %vm2348 = vweird.f32 %v2341
        %vm2349 = vmor %vm2347, %vm2348
        %v2350 = vsel %vm2349, %v2341, %v2346
        %v2351 = vrsqrt.pop %v2067
        %v2352 = vmul.f32 %v2351, %v2067
        %v2353 = vmul.f32 %v2352, %v2351
        %v2354 = vmul.f32 0.5, %v2353
        %v2355 = vsub.f32 1.5, %v2354
        %v2356 = vmul.f32 %v2351, %v2355
        %vm2357 = vweird.f32 %v2067
        %vm2358 = vweird.f32 %v2351
        %vm2359 = vmor %vm2357, %vm2358
        %v2360 = vsel %vm2359, %v2351, %v2356
        %v2361 = vrsqrt.pop %v2068
        %v2362 = vmul.f32 %v2361, %v2068
        %v2363 = vmul.f32 %v2362, %v2361
        %v2364 = vmul.f32 0.5, %v2363
        %v2365 = vsub.f32 1.5, %v2364
        %v2366 = vmul.f32 %v2361, %v2365
        %vm2367 = vweird.f32 %v2068
        %vm2368 = vweird.f32 %v2361
        %vm2369 = vmor %vm2367, %vm2368
        %v2370 = vsel %vm2369, %v2361, %v2366
        %v2371 = vrsqrt.pop %v2069
        %v2372 = vmul.f32 %v2371, %v2069
        %v2373 = vmul.f32 %v2372, %v2371
        %v2374 = vmul.f32 0.5, %v2373
        %v2375 = vsub.f32 1.5, %v2374
        %v2376 = vmul.f32 %v2371, %v2375
        %vm2377 = vweird.f32 %v2069
        %vm2378 = vweird.f32 %v2371
        %vm2379 = vmor %vm2377, %vm2378
        %v2380 = vsel %vm2379, %v2371, %v2376
        %v2381 = vrsqrt.pop %v2070
        %v2382 = vmul.f32 %v2381, %v2070
        %v2383 = vmul.f32 %v2382, %v2381
        %v2384 = vmul.f32 0.5, %v2383
        %v2385 = vsub.f32 1.5, %v2384
        %v2386 = vmul.f32 %v2381, %v2385
        %vm2387 = vweird.f32 %v2070
        %vm2388 = vweird.f32 %v2381
        %vm2389 = vmor %vm2387, %vm2388
        %v2390 = vsel %vm2389, %v2381, %v2386
        %v2391 = vld [vmem:[%s456] sm:$0xff]
        %v2392 = vld [vmem:[%s456 + $0x8] sm:$0xff]
        %v2393 = vld [vmem:[%s456 + $0x10] sm:$0xff]
        %v2394 = vld [vmem:[%s456 + $0x18] sm:$0xff]
        %v2395 = vld [vmem:[%s456 + $0x20] sm:$0xff]
        %v2396 = vld [vmem:[%s456 + $0x28] sm:$0xff]
        %v2397 = vld [vmem:[%s456 + $0x30] sm:$0xff]
        %v2398 = vld [vmem:[%s456 + $0x38] sm:$0xff]
        %v2399 = vld [vmem:[%s456 + $0x40] sm:$0xff]
        %v2400 = vld [vmem:[%s456 + $0x48] sm:$0xff]
        %v2401 = vld [vmem:[%s456 + $0x50] sm:$0xff]
        %v2402 = vld [vmem:[%s456 + $0x58] sm:$0xff]
        %v2403 = vld [vmem:[%s456 + $0x60] sm:$0xff]
        %v2404 = vld [vmem:[%s456 + $0x68] sm:$0xff]
        %v2405 = vld [vmem:[%s456 + $0x70] sm:$0xff]
        %v2406 = vld [vmem:[%s456 + $0x78] sm:$0xff]
        %v2407 = vld [vmem:[%s456 + $0x80] sm:$0xff]
        %v2408 = vld [vmem:[%s456 + $0x88] sm:$0xff]
        %v2409 = vld [vmem:[%s456 + $0x90] sm:$0xff]
        %v2410 = vld [vmem:[%s456 + $0x98] sm:$0xff]
        %v2411 = vld [vmem:[%s456 + $0xa0] sm:$0xff]
        %v2412 = vld [vmem:[%s456 + $0xa8] sm:$0xff]
        %v2413 = vld [vmem:[%s456 + $0xb0] sm:$0xff]
        %v2414 = vld [vmem:[%s456 + $0xb8] sm:$0xff]
        %v2415 = vld [vmem:[%s456 + $0xc0] sm:$0xff]
        %v2416 = vld [vmem:[%s456 + $0xc8] sm:$0xff]
        %v2417 = vld [vmem:[%s456 + $0xd0] sm:$0xff]
        %v2418 = vld [vmem:[%s456 + $0xd8] sm:$0xff]
        %v2419 = vld [vmem:[%s456 + $0xe0] sm:$0xff]
        %v2420 = vld [vmem:[%s456 + $0xe8] sm:$0xff]
        %v2421 = vld [vmem:[%s456 + $0xf0] sm:$0xff]
        %v2422 = vld [vmem:[%s456 + $0xf8] sm:$0xff]
        %v2423 = vmul.f32 %v2391, %v2080
        %v2424 = vmul.f32 %v2392, %v2090
        %v2425 = vmul.f32 %v2393, %v2100
        %v2426 = vmul.f32 %v2394, %v2110
        %v2427 = vmul.f32 %v2395, %v2120
        %v2428 = vmul.f32 %v2396, %v2130
        %v2429 = vmul.f32 %v2397, %v2140
        %v2430 = vmul.f32 %v2398, %v2150
        %v2431 = vmul.f32 %v2399, %v2160
        %v2432 = vmul.f32 %v2400, %v2170
        %v2433 = vmul.f32 %v2401, %v2180
        %v2434 = vmul.f32 %v2402, %v2190
        %v2435 = vmul.f32 %v2403, %v2200
        %v2436 = vmul.f32 %v2404, %v2210
        %v2437 = vmul.f32 %v2405, %v2220
        %v2438 = vmul.f32 %v2406, %v2230
        %v2439 = vmul.f32 %v2407, %v2240
        %v2440 = vmul.f32 %v2408, %v2250
        %v2441 = vmul.f32 %v2409, %v2260
        %v2442 = vmul.f32 %v2410, %v2270
        %v2443 = vmul.f32 %v2411, %v2280
        %v2444 = vmul.f32 %v2412, %v2290
        %v2445 = vmul.f32 %v2413, %v2300
        %v2446 = vmul.f32 %v2414, %v2310
        %v2447 = vmul.f32 %v2415, %v2320
        %v2448 = vmul.f32 %v2416, %v2330
        %v2449 = vmul.f32 %v2417, %v2340
        %v2450 = vmul.f32 %v2418, %v2350
        %v2451 = vmul.f32 %v2419, %v2360
        %v2452 = vmul.f32 %v2420, %v2370
        %v2453 = vmul.f32 %v2421, %v2380
        %v2454 = vmul.f32 %v2422, %v2390
        %v2455 = vld [vmem:[%s450] sm:$0xff]
        %v2456 = vld [vmem:[%s450 + $0x8] sm:$0xff]
        %v2457 = vld [vmem:[%s450 + $0x10] sm:$0xff]
        %v2458 = vld [vmem:[%s450 + $0x18] sm:$0xff]
        %v2459 = vld [vmem:[%s450 + $0x20] sm:$0xff]
        %v2460 = vld [vmem:[%s450 + $0x28] sm:$0xff]
        %v2461 = vld [vmem:[%s450 + $0x30] sm:$0xff]
        %v2462 = vld [vmem:[%s450 + $0x38] sm:$0xff]
        %v2463 = vld [vmem:[%s450 + $0x40] sm:$0xff]
        %v2464 = vld [vmem:[%s450 + $0x48] sm:$0xff]
        %v2465 = vld [vmem:[%s450 + $0x50] sm:$0xff]
        %v2466 = vld [vmem:[%s450 + $0x58] sm:$0xff]
        %v2467 = vld [vmem:[%s450 + $0x60] sm:$0xff]
        %v2468 = vld [vmem:[%s450 + $0x68] sm:$0xff]
        %v2469 = vld [vmem:[%s450 + $0x70] sm:$0xff]
        %v2470 = vld [vmem:[%s450 + $0x78] sm:$0xff]
        %v2471 = vld [vmem:[%s450 + $0x80] sm:$0xff]
        %v2472 = vld [vmem:[%s450 + $0x88] sm:$0xff]
        %v2473 = vld [vmem:[%s450 + $0x90] sm:$0xff]
        %v2474 = vld [vmem:[%s450 + $0x98] sm:$0xff]
        %v2475 = vld [vmem:[%s450 + $0xa0] sm:$0xff]
        %v2476 = vld [vmem:[%s450 + $0xa8] sm:$0xff]
        %v2477 = vld [vmem:[%s450 + $0xb0] sm:$0xff]
        %v2478 = vld [vmem:[%s450 + $0xb8] sm:$0xff]
        %v2479 = vld [vmem:[%s450 + $0xc0] sm:$0xff]
        %v2480 = vld [vmem:[%s450 + $0xc8] sm:$0xff]
        %v2481 = vld [vmem:[%s450 + $0xd0] sm:$0xff]
        %v2482 = vld [vmem:[%s450 + $0xd8] sm:$0xff]
        %v2483 = vld [vmem:[%s450 + $0xe0] sm:$0xff]
        %v2484 = vld [vmem:[%s450 + $0xe8] sm:$0xff]
        %v2485 = vld [vmem:[%s450 + $0xf0] sm:$0xff]
        %v2486 = vld [vmem:[%s450 + $0xf8] sm:$0xff]
        %v2487 = vld [vmem:[%s450 + $0x100] sm:$0xff]
        %v2488 = vld [vmem:[%s450 + $0x108] sm:$0xff]
        %v2489 = vld [vmem:[%s450 + $0x110] sm:$0xff]
        %v2490 = vld [vmem:[%s450 + $0x118] sm:$0xff]
        %v2491 = vld [vmem:[%s450 + $0x120] sm:$0xff]
        %v2492 = vld [vmem:[%s450 + $0x128] sm:$0xff]
        %v2493 = vld [vmem:[%s450 + $0x130] sm:$0xff]
        %v2494 = vld [vmem:[%s450 + $0x138] sm:$0xff]
        %v2495 = vld [vmem:[%s450 + $0x140] sm:$0xff]
        %v2496 = vld [vmem:[%s450 + $0x148] sm:$0xff]
        %v2497 = vld [vmem:[%s450 + $0x150] sm:$0xff]
        %v2498 = vld [vmem:[%s450 + $0x158] sm:$0xff]
        %v2499 = vld [vmem:[%s450 + $0x160] sm:$0xff]
        %v2500 = vld [vmem:[%s450 + $0x168] sm:$0xff]
        %v2501 = vld [vmem:[%s450 + $0x170] sm:$0xff]
        %v2502 = vld [vmem:[%s450 + $0x178] sm:$0xff]
        %v2503 = vld [vmem:[%s450 + $0x180] sm:$0xff]
        %v2504 = vld [vmem:[%s450 + $0x188] sm:$0xff]
        %v2505 = vld [vmem:[%s450 + $0x190] sm:$0xff]
        %v2506 = vld [vmem:[%s450 + $0x198] sm:$0xff]
        %v2507 = vld [vmem:[%s450 + $0x1a0] sm:$0xff]
        %v2508 = vld [vmem:[%s450 + $0x1a8] sm:$0xff]
        %v2509 = vld [vmem:[%s450 + $0x1b0] sm:$0xff]
        %v2510 = vld [vmem:[%s450 + $0x1b8] sm:$0xff]
        %v2511 = vld [vmem:[%s450 + $0x1c0] sm:$0xff]
        %v2512 = vld [vmem:[%s450 + $0x1c8] sm:$0xff]
        %v2513 = vld [vmem:[%s450 + $0x1d0] sm:$0xff]
        %v2514 = vld [vmem:[%s450 + $0x1d8] sm:$0xff]
        %v2515 = vld [vmem:[%s450 + $0x1e0] sm:$0xff]
        %v2516 = vld [vmem:[%s450 + $0x1e8] sm:$0xff]
        %v2517 = vld [vmem:[%s450 + $0x1f0] sm:$0xff]
        %v2518 = vld [vmem:[%s450 + $0x1f8] sm:$0xff]
        %v2519 = vld [vmem:[%s450 + $0x200] sm:$0xff]
        %v2520 = vld [vmem:[%s450 + $0x208] sm:$0xff]
        %v2521 = vld [vmem:[%s450 + $0x210] sm:$0xff]
        %v2522 = vld [vmem:[%s450 + $0x218] sm:$0xff]
        %v2523 = vld [vmem:[%s450 + $0x220] sm:$0xff]
        %v2524 = vld [vmem:[%s450 + $0x228] sm:$0xff]
        %v2525 = vld [vmem:[%s450 + $0x230] sm:$0xff]
        %v2526 = vld [vmem:[%s450 + $0x238] sm:$0xff]
        %v2527 = vld [vmem:[%s450 + $0x240] sm:$0xff]
        %v2528 = vld [vmem:[%s450 + $0x248] sm:$0xff]
        %v2529 = vld [vmem:[%s450 + $0x250] sm:$0xff]
        %v2530 = vld [vmem:[%s450 + $0x258] sm:$0xff]
        %v2531 = vld [vmem:[%s450 + $0x260] sm:$0xff]
        %v2532 = vld [vmem:[%s450 + $0x268] sm:$0xff]
        %v2533 = vld [vmem:[%s450 + $0x270] sm:$0xff]
        %v2534 = vld [vmem:[%s450 + $0x278] sm:$0xff]
        %v2535 = vld [vmem:[%s450 + $0x280] sm:$0xff]
        %v2536 = vld [vmem:[%s450 + $0x288] sm:$0xff]
        %v2537 = vld [vmem:[%s450 + $0x290] sm:$0xff]
        %v2538 = vld [vmem:[%s450 + $0x298] sm:$0xff]
        %v2539 = vld [vmem:[%s450 + $0x2a0] sm:$0xff]
        %v2540 = vld [vmem:[%s450 + $0x2a8] sm:$0xff]
        %v2541 = vld [vmem:[%s450 + $0x2b0] sm:$0xff]
        %v2542 = vld [vmem:[%s450 + $0x2b8] sm:$0xff]
        %v2543 = vld [vmem:[%s450 + $0x2c0] sm:$0xff]
        %v2544 = vld [vmem:[%s450 + $0x2c8] sm:$0xff]
        %v2545 = vld [vmem:[%s450 + $0x2d0] sm:$0xff]
        %v2546 = vld [vmem:[%s450 + $0x2d8] sm:$0xff]
        %v2547 = vld [vmem:[%s450 + $0x2e0] sm:$0xff]
        %v2548 = vld [vmem:[%s450 + $0x2e8] sm:$0xff]
        %v2549 = vld [vmem:[%s450 + $0x2f0] sm:$0xff]
        %v2550 = vld [vmem:[%s450 + $0x2f8] sm:$0xff]
        %v2551 = vld [vmem:[%s450 + $0x300] sm:$0xff]
        %v2552 = vld [vmem:[%s450 + $0x308] sm:$0xff]
        %v2553 = vld [vmem:[%s450 + $0x310] sm:$0xff]
        %v2554 = vld [vmem:[%s450 + $0x318] sm:$0xff]
        %v2555 = vld [vmem:[%s450 + $0x320] sm:$0xff]
        %v2556 = vld [vmem:[%s450 + $0x328] sm:$0xff]
        %v2557 = vld [vmem:[%s450 + $0x330] sm:$0xff]
        %v2558 = vld [vmem:[%s450 + $0x338] sm:$0xff]
        %v2559 = vld [vmem:[%s450 + $0x340] sm:$0xff]
        %v2560 = vld [vmem:[%s450 + $0x348] sm:$0xff]
        %v2561 = vld [vmem:[%s450 + $0x350] sm:$0xff]
        %v2562 = vld [vmem:[%s450 + $0x358] sm:$0xff]
        %v2563 = vld [vmem:[%s450 + $0x360] sm:$0xff]
        %v2564 = vld [vmem:[%s450 + $0x368] sm:$0xff]
        %v2565 = vld [vmem:[%s450 + $0x370] sm:$0xff]
        %v2566 = vld [vmem:[%s450 + $0x378] sm:$0xff]
        %v2567 = vld [vmem:[%s450 + $0x380] sm:$0xff]
        %v2568 = vld [vmem:[%s450 + $0x388] sm:$0xff]
        %v2569 = vld [vmem:[%s450 + $0x390] sm:$0xff]
        %v2570 = vld [vmem:[%s450 + $0x398] sm:$0xff]
        %v2571 = vld [vmem:[%s450 + $0x3a0] sm:$0xff]
        %v2572 = vld [vmem:[%s450 + $0x3a8] sm:$0xff]
        %v2573 = vld [vmem:[%s450 + $0x3b0] sm:$0xff]
        %v2574 = vld [vmem:[%s450 + $0x3b8] sm:$0xff]
        %v2575 = vld [vmem:[%s450 + $0x3c0] sm:$0xff]
        %v2576 = vld [vmem:[%s450 + $0x3c8] sm:$0xff]
        %v2577 = vld [vmem:[%s450 + $0x3d0] sm:$0xff]
        %v2578 = vld [vmem:[%s450 + $0x3d8] sm:$0xff]
        %v2579 = vld [vmem:[%s450 + $0x3e0] sm:$0xff]
        %v2580 = vld [vmem:[%s450 + $0x3e8] sm:$0xff]
        %v2581 = vld [vmem:[%s450 + $0x3f0] sm:$0xff]
        %v2582 = vld [vmem:[%s450 + $0x3f8] sm:$0xff]
        %v2583 = vld [vmem:[%s450 + $0x400] sm:$0xff]
        %v2584 = vld [vmem:[%s450 + $0x408] sm:$0xff]
        %v2585 = vld [vmem:[%s450 + $0x410] sm:$0xff]
        %v2586 = vld [vmem:[%s450 + $0x418] sm:$0xff]
        %v2587 = vld [vmem:[%s450 + $0x420] sm:$0xff]
        %v2588 = vld [vmem:[%s450 + $0x428] sm:$0xff]
        %v2589 = vld [vmem:[%s450 + $0x430] sm:$0xff]
        %v2590 = vld [vmem:[%s450 + $0x438] sm:$0xff]
        %v2591 = vld [vmem:[%s450 + $0x440] sm:$0xff]
        %v2592 = vld [vmem:[%s450 + $0x448] sm:$0xff]
        %v2593 = vld [vmem:[%s450 + $0x450] sm:$0xff]
        %v2594 = vld [vmem:[%s450 + $0x458] sm:$0xff]
        %v2595 = vld [vmem:[%s450 + $0x460] sm:$0xff]
        %v2596 = vld [vmem:[%s450 + $0x468] sm:$0xff]
        %v2597 = vld [vmem:[%s450 + $0x470] sm:$0xff]
        %v2598 = vld [vmem:[%s450 + $0x478] sm:$0xff]
        %v2599 = vld [vmem:[%s450 + $0x480] sm:$0xff]
        %v2600 = vld [vmem:[%s450 + $0x488] sm:$0xff]
        %v2601 = vld [vmem:[%s450 + $0x490] sm:$0xff]
        %v2602 = vld [vmem:[%s450 + $0x498] sm:$0xff]
        %v2603 = vld [vmem:[%s450 + $0x4a0] sm:$0xff]
        %v2604 = vld [vmem:[%s450 + $0x4a8] sm:$0xff]
        %v2605 = vld [vmem:[%s450 + $0x4b0] sm:$0xff]
        %v2606 = vld [vmem:[%s450 + $0x4b8] sm:$0xff]
        %v2607 = vld [vmem:[%s450 + $0x4c0] sm:$0xff]
        %v2608 = vld [vmem:[%s450 + $0x4c8] sm:$0xff]
        %v2609 = vld [vmem:[%s450 + $0x4d0] sm:$0xff]
        %v2610 = vld [vmem:[%s450 + $0x4d8] sm:$0xff]
        %v2611 = vld [vmem:[%s450 + $0x4e0] sm:$0xff]
        %v2612 = vld [vmem:[%s450 + $0x4e8] sm:$0xff]
        %v2613 = vld [vmem:[%s450 + $0x4f0] sm:$0xff]
        %v2614 = vld [vmem:[%s450 + $0x4f8] sm:$0xff]
        %v2615 = vld [vmem:[%s450 + $0x500] sm:$0xff]
        %v2616 = vld [vmem:[%s450 + $0x508] sm:$0xff]
        %v2617 = vld [vmem:[%s450 + $0x510] sm:$0xff]
        %v2618 = vld [vmem:[%s450 + $0x518] sm:$0xff]
        %v2619 = vld [vmem:[%s450 + $0x520] sm:$0xff]
        %v2620 = vld [vmem:[%s450 + $0x528] sm:$0xff]
        %v2621 = vld [vmem:[%s450 + $0x530] sm:$0xff]
        %v2622 = vld [vmem:[%s450 + $0x538] sm:$0xff]
        %v2623 = vld [vmem:[%s450 + $0x540] sm:$0xff]
        %v2624 = vld [vmem:[%s450 + $0x548] sm:$0xff]
        %v2625 = vld [vmem:[%s450 + $0x550] sm:$0xff]
        %v2626 = vld [vmem:[%s450 + $0x558] sm:$0xff]
        %v2627 = vld [vmem:[%s450 + $0x560] sm:$0xff]
        %v2628 = vld [vmem:[%s450 + $0x568] sm:$0xff]
        %v2629 = vld [vmem:[%s450 + $0x570] sm:$0xff]
        %v2630 = vld [vmem:[%s450 + $0x578] sm:$0xff]
        %v2631 = vld [vmem:[%s450 + $0x580] sm:$0xff]
        %v2632 = vld [vmem:[%s450 + $0x588] sm:$0xff]
        %v2633 = vld [vmem:[%s450 + $0x590] sm:$0xff]
        %v2634 = vld [vmem:[%s450 + $0x598] sm:$0xff]
        %v2635 = vld [vmem:[%s450 + $0x5a0] sm:$0xff]
        %v2636 = vld [vmem:[%s450 + $0x5a8] sm:$0xff]
        %v2637 = vld [vmem:[%s450 + $0x5b0] sm:$0xff]
        %v2638 = vld [vmem:[%s450 + $0x5b8] sm:$0xff]
        %v2639 = vld [vmem:[%s450 + $0x5c0] sm:$0xff]
        %v2640 = vld [vmem:[%s450 + $0x5c8] sm:$0xff]
        %v2641 = vld [vmem:[%s450 + $0x5d0] sm:$0xff]
        %v2642 = vld [vmem:[%s450 + $0x5d8] sm:$0xff]
        %v2643 = vld [vmem:[%s450 + $0x5e0] sm:$0xff]
        %v2644 = vld [vmem:[%s450 + $0x5e8] sm:$0xff]
        %v2645 = vld [vmem:[%s450 + $0x5f0] sm:$0xff]
        %v2646 = vld [vmem:[%s450 + $0x5f8] sm:$0xff]
        %v2647 = vld [vmem:[%s450 + $0x600] sm:$0xff]
        %v2648 = vld [vmem:[%s450 + $0x608] sm:$0xff]
        %v2649 = vld [vmem:[%s450 + $0x610] sm:$0xff]
        %v2650 = vld [vmem:[%s450 + $0x618] sm:$0xff]
        %v2651 = vld [vmem:[%s450 + $0x620] sm:$0xff]
        %v2652 = vld [vmem:[%s450 + $0x628] sm:$0xff]
        %v2653 = vld [vmem:[%s450 + $0x630] sm:$0xff]
        %v2654 = vld [vmem:[%s450 + $0x638] sm:$0xff]
        %v2655 = vld [vmem:[%s450 + $0x640] sm:$0xff]
        %v2656 = vld [vmem:[%s450 + $0x648] sm:$0xff]
        %v2657 = vld [vmem:[%s450 + $0x650] sm:$0xff]
        %v2658 = vld [vmem:[%s450 + $0x658] sm:$0xff]
        %v2659 = vld [vmem:[%s450 + $0x660] sm:$0xff]
        %v2660 = vld [vmem:[%s450 + $0x668] sm:$0xff]
        %v2661 = vld [vmem:[%s450 + $0x670] sm:$0xff]
        %v2662 = vld [vmem:[%s450 + $0x678] sm:$0xff]
        %v2663 = vld [vmem:[%s450 + $0x680] sm:$0xff]
        %v2664 = vld [vmem:[%s450 + $0x688] sm:$0xff]
        %v2665 = vld [vmem:[%s450 + $0x690] sm:$0xff]
        %v2666 = vld [vmem:[%s450 + $0x698] sm:$0xff]
        %v2667 = vld [vmem:[%s450 + $0x6a0] sm:$0xff]
        %v2668 = vld [vmem:[%s450 + $0x6a8] sm:$0xff]
        %v2669 = vld [vmem:[%s450 + $0x6b0] sm:$0xff]
        %v2670 = vld [vmem:[%s450 + $0x6b8] sm:$0xff]
        %v2671 = vld [vmem:[%s450 + $0x6c0] sm:$0xff]
        %v2672 = vld [vmem:[%s450 + $0x6c8] sm:$0xff]
        %v2673 = vld [vmem:[%s450 + $0x6d0] sm:$0xff]
        %v2674 = vld [vmem:[%s450 + $0x6d8] sm:$0xff]
        %v2675 = vld [vmem:[%s450 + $0x6e0] sm:$0xff]
        %v2676 = vld [vmem:[%s450 + $0x6e8] sm:$0xff]
        %v2677 = vld [vmem:[%s450 + $0x6f0] sm:$0xff]
        %v2678 = vld [vmem:[%s450 + $0x6f8] sm:$0xff]
        %2680 = vset.pattern.permute.xlu0 0
        %2681 = vperm.xlu0 %2680, %v2423
        %v2682 = vpop.permute.xlu0 %2681
        %2685 = vset.pattern.permute.xlu0 0
        %2686 = vperm.xlu0 %2685, %v2424
        %v2687 = vpop.permute.xlu0 %2686
        %2690 = vset.pattern.permute.xlu0 0
        %2691 = vperm.xlu0 %2690, %v2425
        %v2692 = vpop.permute.xlu0 %2691
        %2695 = vset.pattern.permute.xlu0 0
        %2696 = vperm.xlu0 %2695, %v2426
        %v2697 = vpop.permute.xlu0 %2696
        %2700 = vset.pattern.permute.xlu0 0
        %2701 = vperm.xlu0 %2700, %v2427
        %v2702 = vpop.permute.xlu0 %2701
        %2705 = vset.pattern.permute.xlu0 0
        %2706 = vperm.xlu0 %2705, %v2428
        %v2707 = vpop.permute.xlu0 %2706
        %2710 = vset.pattern.permute.xlu0 0
        %2711 = vperm.xlu0 %2710, %v2429
        %v2712 = vpop.permute.xlu0 %2711
        %2715 = vset.pattern.permute.xlu0 0
        %2716 = vperm.xlu0 %2715, %v2430
        %v2717 = vpop.permute.xlu0 %2716
        %2720 = vset.pattern.permute.xlu0 0
        %2721 = vperm.xlu0 %2720, %v2431
        %v2722 = vpop.permute.xlu0 %2721
        %2725 = vset.pattern.permute.xlu0 0
        %2726 = vperm.xlu0 %2725, %v2432
        %v2727 = vpop.permute.xlu0 %2726
        %2730 = vset.pattern.permute.xlu0 0
        %2731 = vperm.xlu0 %2730, %v2433
        %v2732 = vpop.permute.xlu0 %2731
        %2735 = vset.pattern.permute.xlu0 0
        %2736 = vperm.xlu0 %2735, %v2434
        %v2737 = vpop.permute.xlu0 %2736
        %2740 = vset.pattern.permute.xlu0 0
        %2741 = vperm.xlu0 %2740, %v2435
        %v2742 = vpop.permute.xlu0 %2741
        %2745 = vset.pattern.permute.xlu0 0
        %2746 = vperm.xlu0 %2745, %v2436
        %v2747 = vpop.permute.xlu0 %2746
        %2750 = vset.pattern.permute.xlu0 0
        %2751 = vperm.xlu0 %2750, %v2437
        %v2752 = vpop.permute.xlu0 %2751
        %2755 = vset.pattern.permute.xlu0 0
        %2756 = vperm.xlu0 %2755, %v2438
        %v2757 = vpop.permute.xlu0 %2756
        %2760 = vset.pattern.permute.xlu0 0
        %2761 = vperm.xlu0 %2760, %v2439
        %v2762 = vpop.permute.xlu0 %2761
        %2765 = vset.pattern.permute.xlu0 0
        %2766 = vperm.xlu0 %2765, %v2440
        %v2767 = vpop.permute.xlu0 %2766
        %2770 = vset.pattern.permute.xlu0 0
        %2771 = vperm.xlu0 %2770, %v2441
        %v2772 = vpop.permute.xlu0 %2771
        %2775 = vset.pattern.permute.xlu0 0
        %2776 = vperm.xlu0 %2775, %v2442
        %v2777 = vpop.permute.xlu0 %2776
        %2780 = vset.pattern.permute.xlu0 0
        %2781 = vperm.xlu0 %2780, %v2443
        %v2782 = vpop.permute.xlu0 %2781
        %2785 = vset.pattern.permute.xlu0 0
        %2786 = vperm.xlu0 %2785, %v2444
        %v2787 = vpop.permute.xlu0 %2786
        %2790 = vset.pattern.permute.xlu0 0
        %2791 = vperm.xlu0 %2790, %v2445
        %v2792 = vpop.permute.xlu0 %2791
        %2795 = vset.pattern.permute.xlu0 0
        %2796 = vperm.xlu0 %2795, %v2446
        %v2797 = vpop.permute.xlu0 %2796
        %2800 = vset.pattern.permute.xlu0 0
        %2801 = vperm.xlu0 %2800, %v2447
        %v2802 = vpop.permute.xlu0 %2801
        %2805 = vset.pattern.permute.xlu0 0
        %2806 = vperm.xlu0 %2805, %v2448
        %v2807 = vpop.permute.xlu0 %2806
        %2810 = vset.pattern.permute.xlu0 0
        %2811 = vperm.xlu0 %2810, %v2449
        %v2812 = vpop.permute.xlu0 %2811
        %2815 = vset.pattern.permute.xlu0 0
        %2816 = vperm.xlu0 %2815, %v2450
        %v2817 = vpop.permute.xlu0 %2816
        %2820 = vset.pattern.permute.xlu0 0
        %2821 = vperm.xlu0 %2820, %v2451
        %v2822 = vpop.permute.xlu0 %2821
        %2825 = vset.pattern.permute.xlu0 0
        %2826 = vperm.xlu0 %2825, %v2452
        %v2827 = vpop.permute.xlu0 %2826
        %2830 = vset.pattern.permute.xlu0 0
        %2831 = vperm.xlu0 %2830, %v2453
        %v2832 = vpop.permute.xlu0 %2831
        %2835 = vset.pattern.permute.xlu0 0
        %2836 = vperm.xlu0 %2835, %v2454
        %v2837 = vpop.permute.xlu0 %2836
        %v2839 = vmul.f32 %v1239, %v2682
        %v2840 = vmul.f32 %v1240, %v2682
        %v2841 = vmul.f32 %v1241, %v2682
        %v2842 = vmul.f32 %v1242, %v2682
        %v2843 = vmul.f32 %v1243, %v2682
        %v2844 = vmul.f32 %v1244, %v2682
        %v2845 = vmul.f32 %v1245, %v2682
        %v2846 = vmul.f32 %v1246, %v2687
        %v2847 = vmul.f32 %v1247, %v2687
        %v2848 = vmul.f32 %v1248, %v2687
        %v2849 = vmul.f32 %v1249, %v2687
        %v2850 = vmul.f32 %v1250, %v2687
        %v2851 = vmul.f32 %v1251, %v2687
        %v2852 = vmul.f32 %v1252, %v2687
        %v2853 = vmul.f32 %v1253, %v2692
        %v2854 = vmul.f32 %v1254, %v2692
        %v2855 = vmul.f32 %v1255, %v2692
        %v2856 = vmul.f32 %v1256, %v2692
        %v2857 = vmul.f32 %v1257, %v2692
        %v2858 = vmul.f32 %v1258, %v2692
        %v2859 = vmul.f32 %v1259, %v2692
        %v2860 = vmul.f32 %v1260, %v2697
        %v2861 = vmul.f32 %v1261, %v2697
        %v2862 = vmul.f32 %v1262, %v2697
        %v2863 = vmul.f32 %v1263, %v2697
        %v2864 = vmul.f32 %v1264, %v2697
        %v2865 = vmul.f32 %v1265, %v2697
        %v2866 = vmul.f32 %v1266, %v2697
        %v2867 = vmul.f32 %v1267, %v2702
        %v2868 = vmul.f32 %v1268, %v2702
        %v2869 = vmul.f32 %v1269, %v2702
        %v2870 = vmul.f32 %v1270, %v2702
        %v2871 = vmul.f32 %v1271, %v2702
        %v2872 = vmul.f32 %v1272, %v2702
        %v2873 = vmul.f32 %v1273, %v2702
        %v2874 = vmul.f32 %v1274, %v2707
        %v2875 = vmul.f32 %v1275, %v2707
        %v2876 = vmul.f32 %v1276, %v2707
        %v2877 = vmul.f32 %v1277, %v2707
        %v2878 = vmul.f32 %v1278, %v2707
        %v2879 = vmul.f32 %v1279, %v2707
        %v2880 = vmul.f32 %v1280, %v2707
        %v2881 = vmul.f32 %v1281, %v2712
        %v2882 = vmul.f32 %v1282, %v2712
        %v2883 = vmul.f32 %v1283, %v2712
        %v2884 = vmul.f32 %v1284, %v2712
        %v2885 = vmul.f32 %v1285, %v2712
        %v2886 = vmul.f32 %v1286, %v2712
        %v2887 = vmul.f32 %v1287, %v2712
        %v2888 = vmul.f32 %v1288, %v2717
        %v2889 = vmul.f32 %v1289, %v2717
        %v2890 = vmul.f32 %v1290, %v2717
        %v2891 = vmul.f32 %v1291, %v2717
        %v2892 = vmul.f32 %v1292, %v2717
        %v2893 = vmul.f32 %v1293, %v2717
        %v2894 = vmul.f32 %v1294, %v2717
        %v2895 = vmul.f32 %v1295, %v2722
        %v2896 = vmul.f32 %v1296, %v2722
        %v2897 = vmul.f32 %v1297, %v2722
        %v2898 = vmul.f32 %v1298, %v2722
        %v2899 = vmul.f32 %v1299, %v2722
        %v2900 = vmul.f32 %v1300, %v2722
        %v2901 = vmul.f32 %v1301, %v2722
        %v2902 = vmul.f32 %v1302, %v2727
        %v2903 = vmul.f32 %v1303, %v2727
        %v2904 = vmul.f32 %v1304, %v2727
        %v2905 = vmul.f32 %v1305, %v2727
        %v2906 = vmul.f32 %v1306, %v2727
        %v2907 = vmul.f32 %v1307, %v2727
        %v2908 = vmul.f32 %v1308, %v2727
        %v2909 = vmul.f32 %v1309, %v2732
        %v2910 = vmul.f32 %v1310, %v2732
        %v2911 = vmul.f32 %v1311, %v2732
        %v2912 = vmul.f32 %v1312, %v2732
        %v2913 = vmul.f32 %v1313, %v2732
        %v2914 = vmul.f32 %v1314, %v2732
        %v2915 = vmul.f32 %v1315, %v2732
        %v2916 = vmul.f32 %v1316, %v2737
        %v2917 = vmul.f32 %v1317, %v2737
        %v2918 = vmul.f32 %v1318, %v2737
        %v2919 = vmul.f32 %v1319, %v2737
        %v2920 = vmul.f32 %v1320, %v2737
        %v2921 = vmul.f32 %v1321, %v2737
        %v2922 = vmul.f32 %v1322, %v2737
        %v2923 = vmul.f32 %v1323, %v2742
        %v2924 = vmul.f32 %v1324, %v2742
        %v2925 = vmul.f32 %v1325, %v2742
        %v2926 = vmul.f32 %v1326, %v2742
        %v2927 = vmul.f32 %v1327, %v2742
        %v2928 = vmul.f32 %v1328, %v2742
        %v2929 = vmul.f32 %v1329, %v2742
        %v2930 = vmul.f32 %v1330, %v2747
        %v2931 = vmul.f32 %v1331, %v2747
        %v2932 = vmul.f32 %v1332, %v2747
        %v2933 = vmul.f32 %v1333, %v2747
        %v2934 = vmul.f32 %v1334, %v2747
        %v2935 = vmul.f32 %v1335, %v2747
        %v2936 = vmul.f32 %v1336, %v2747
        %v2937 = vmul.f32 %v1337, %v2752
        %v2938 = vmul.f32 %v1338, %v2752
        %v2939 = vmul.f32 %v1339, %v2752
        %v2940 = vmul.f32 %v1340, %v2752
        %v2941 = vmul.f32 %v1341, %v2752
        %v2942 = vmul.f32 %v1342, %v2752
        %v2943 = vmul.f32 %v1343, %v2752
        %v2944 = vmul.f32 %v1344, %v2757
        %v2945 = vmul.f32 %v1345, %v2757
        %v2946 = vmul.f32 %v1346, %v2757
        %v2947 = vmul.f32 %v1347, %v2757
        %v2948 = vmul.f32 %v1348, %v2757
        %v2949 = vmul.f32 %v1349, %v2757
        %v2950 = vmul.f32 %v1350, %v2757
        %v2951 = vmul.f32 %v1351, %v2762
        %v2952 = vmul.f32 %v1352, %v2762
        %v2953 = vmul.f32 %v1353, %v2762
        %v2954 = vmul.f32 %v1354, %v2762
        %v2955 = vmul.f32 %v1355, %v2762
        %v2956 = vmul.f32 %v1356, %v2762
        %v2957 = vmul.f32 %v1357, %v2762
        %v2958 = vmul.f32 %v1358, %v2767
        %v2959 = vmul.f32 %v1359, %v2767
        %v2960 = vmul.f32 %v1360, %v2767
        %v2961 = vmul.f32 %v1361, %v2767
        %v2962 = vmul.f32 %v1362, %v2767
        %v2963 = vmul.f32 %v1363, %v2767
        %v2964 = vmul.f32 %v1364, %v2767
        %v2965 = vmul.f32 %v1365, %v2772
        %v2966 = vmul.f32 %v1366, %v2772
        %v2967 = vmul.f32 %v1367, %v2772
        %v2968 = vmul.f32 %v1368, %v2772
        %v2969 = vmul.f32 %v1369, %v2772
        %v2970 = vmul.f32 %v1370, %v2772
        %v2971 = vmul.f32 %v1371, %v2772
        %v2972 = vmul.f32 %v1372, %v2777
        %v2973 = vmul.f32 %v1373, %v2777
        %v2974 = vmul.f32 %v1374, %v2777
        %v2975 = vmul.f32 %v1375, %v2777
        %v2976 = vmul.f32 %v1376, %v2777
        %v2977 = vmul.f32 %v1377, %v2777
        %v2978 = vmul.f32 %v1378, %v2777
        %v2979 = vmul.f32 %v1379, %v2782
        %v2980 = vmul.f32 %v1380, %v2782
        %v2981 = vmul.f32 %v1381, %v2782
        %v2982 = vmul.f32 %v1382, %v2782
        %v2983 = vmul.f32 %v1383, %v2782
        %v2984 = vmul.f32 %v1384, %v2782
        %v2985 = vmul.f32 %v1385, %v2782
        %v2986 = vmul.f32 %v1386, %v2787
        %v2987 = vmul.f32 %v1387, %v2787
        %v2988 = vmul.f32 %v1388, %v2787
        %v2989 = vmul.f32 %v1389, %v2787
        %v2990 = vmul.f32 %v1390, %v2787
        %v2991 = vmul.f32 %v1391, %v2787
        %v2992 = vmul.f32 %v1392, %v2787
        %v2993 = vmul.f32 %v1393, %v2792
        %v2994 = vmul.f32 %v1394, %v2792
        %v2995 = vmul.f32 %v1395, %v2792
        %v2996 = vmul.f32 %v1396, %v2792
        %v2997 = vmul.f32 %v1397, %v2792
        %v2998 = vmul.f32 %v1398, %v2792
        %v2999 = vmul.f32 %v1399, %v2792
        %v3000 = vmul.f32 %v1400, %v2797
        %v3001 = vmul.f32 %v1401, %v2797
        %v3002 = vmul.f32 %v1402, %v2797
        %v3003 = vmul.f32 %v1403, %v2797
        %v3004 = vmul.f32 %v1404, %v2797
        %v3005 = vmul.f32 %v1405, %v2797
        %v3006 = vmul.f32 %v1406, %v2797
        %v3007 = vmul.f32 %v1407, %v2802
        %v3008 = vmul.f32 %v1408, %v2802
        %v3009 = vmul.f32 %v1409, %v2802
        %v3010 = vmul.f32 %v1410, %v2802
        %v3011 = vmul.f32 %v1411, %v2802
        %v3012 = vmul.f32 %v1412, %v2802
        %v3013 = vmul.f32 %v1413, %v2802
        %v3014 = vmul.f32 %v1414, %v2807
        %v3015 = vmul.f32 %v1415, %v2807
        %v3016 = vmul.f32 %v1416, %v2807
        %v3017 = vmul.f32 %v1417, %v2807
        %v3018 = vmul.f32 %v1418, %v2807
        %v3019 = vmul.f32 %v1419, %v2807
        %v3020 = vmul.f32 %v1420, %v2807
        %v3021 = vmul.f32 %v1421, %v2812
        %v3022 = vmul.f32 %v1422, %v2812
        %v3023 = vmul.f32 %v1423, %v2812
        %v3024 = vmul.f32 %v1424, %v2812
        %v3025 = vmul.f32 %v1425, %v2812
        %v3026 = vmul.f32 %v1426, %v2812
        %v3027 = vmul.f32 %v1427, %v2812
        %v3028 = vmul.f32 %v1428, %v2817
        %v3029 = vmul.f32 %v1429, %v2817
        %v3030 = vmul.f32 %v1430, %v2817
        %v3031 = vmul.f32 %v1431, %v2817
        %v3032 = vmul.f32 %v1432, %v2817
        %v3033 = vmul.f32 %v1433, %v2817
        %v3034 = vmul.f32 %v1434, %v2817
        %v3035 = vmul.f32 %v1435, %v2822
        %v3036 = vmul.f32 %v1436, %v2822
        %v3037 = vmul.f32 %v1437, %v2822
        %v3038 = vmul.f32 %v1438, %v2822
        %v3039 = vmul.f32 %v1439, %v2822
        %v3040 = vmul.f32 %v1440, %v2822
        %v3041 = vmul.f32 %v1441, %v2822
        %v3042 = vmul.f32 %v1442, %v2827
        %v3043 = vmul.f32 %v1443, %v2827
        %v3044 = vmul.f32 %v1444, %v2827
        %v3045 = vmul.f32 %v1445, %v2827
        %v3046 = vmul.f32 %v1446, %v2827
        %v3047 = vmul.f32 %v1447, %v2827
        %v3048 = vmul.f32 %v1448, %v2827
        %v3049 = vmul.f32 %v1449, %v2832
        %v3050 = vmul.f32 %v1450, %v2832
        %v3051 = vmul.f32 %v1451, %v2832
        %v3052 = vmul.f32 %v1452, %v2832
        %v3053 = vmul.f32 %v1453, %v2832
        %v3054 = vmul.f32 %v1454, %v2832
        %v3055 = vmul.f32 %v1455, %v2832
        %v3056 = vmul.f32 %v1456, %v2837
        %v3057 = vmul.f32 %v1457, %v2837
        %v3058 = vmul.f32 %v1458, %v2837
        %v3059 = vmul.f32 %v1459, %v2837
        %v3060 = vmul.f32 %v1460, %v2837
        %v3061 = vmul.f32 %v1461, %v2837
        %v3062 = vmul.f32 %v1462, %v2837
        %v3063 = vadd.f32 %v2455, %v2839
        %v3064 = vadd.f32 %v2456, %v2840
        %v3065 = vadd.f32 %v2457, %v2841
        %v3066 = vadd.f32 %v2458, %v2842
        %v3067 = vadd.f32 %v2459, %v2843
        %v3068 = vadd.f32 %v2460, %v2844
        %v3069 = vadd.f32 %v2461, %v2845
        %v3070 = vadd.f32 %v2462, %v2846
        %v3071 = vadd.f32 %v2463, %v2847
        %v3072 = vadd.f32 %v2464, %v2848
        %v3073 = vadd.f32 %v2465, %v2849
        %v3074 = vadd.f32 %v2466, %v2850
        %v3075 = vadd.f32 %v2467, %v2851
        %v3076 = vadd.f32 %v2468, %v2852
        %v3077 = vadd.f32 %v2469, %v2853
        %v3078 = vadd.f32 %v2470, %v2854
        %v3079 = vadd.f32 %v2471, %v2855
        %v3080 = vadd.f32 %v2472, %v2856
        %v3081 = vadd.f32 %v2473, %v2857
        %v3082 = vadd.f32 %v2474, %v2858
        %v3083 = vadd.f32 %v2475, %v2859
        %v3084 = vadd.f32 %v2476, %v2860
        %v3085 = vadd.f32 %v2477, %v2861
        %v3086 = vadd.f32 %v2478, %v2862
        %v3087 = vadd.f32 %v2479, %v2863
        %v3088 = vadd.f32 %v2480, %v2864
        %v3089 = vadd.f32 %v2481, %v2865
        %v3090 = vadd.f32 %v2482, %v2866
        %v3091 = vadd.f32 %v2483, %v2867
        %v3092 = vadd.f32 %v2484, %v2868
        %v3093 = vadd.f32 %v2485, %v2869
        %v3094 = vadd.f32 %v2486, %v2870
        %v3095 = vadd.f32 %v2487, %v2871
        %v3096 = vadd.f32 %v2488, %v2872
        %v3097 = vadd.f32 %v2489, %v2873
        %v3098 = vadd.f32 %v2490, %v2874
        %v3099 = vadd.f32 %v2491, %v2875
        %v3100 = vadd.f32 %v2492, %v2876
        %v3101 = vadd.f32 %v2493, %v2877
        %v3102 = vadd.f32 %v2494, %v2878
        %v3103 = vadd.f32 %v2495, %v2879
        %v3104 = vadd.f32 %v2496, %v2880
        %v3105 = vadd.f32 %v2497, %v2881
        %v3106 = vadd.f32 %v2498, %v2882
        %v3107 = vadd.f32 %v2499, %v2883
        %v3108 = vadd.f32 %v2500, %v2884
        %v3109 = vadd.f32 %v2501, %v2885
        %v3110 = vadd.f32 %v2502, %v2886
        %v3111 = vadd.f32 %v2503, %v2887
        %v3112 = vadd.f32 %v2504, %v2888
        %v3113 = vadd.f32 %v2505, %v2889
        %v3114 = vadd.f32 %v2506, %v2890
        %v3115 = vadd.f32 %v2507, %v2891
        %v3116 = vadd.f32 %v2508, %v2892
        %v3117 = vadd.f32 %v2509, %v2893
        %v3118 = vadd.f32 %v2510, %v2894
        %v3119 = vadd.f32 %v2511, %v2895
        %v3120 = vadd.f32 %v2512, %v2896
        %v3121 = vadd.f32 %v2513, %v2897
        %v3122 = vadd.f32 %v2514, %v2898
        %v3123 = vadd.f32 %v2515, %v2899
        %v3124 = vadd.f32 %v2516, %v2900
        %v3125 = vadd.f32 %v2517, %v2901
        %v3126 = vadd.f32 %v2518, %v2902
        %v3127 = vadd.f32 %v2519, %v2903
        %v3128 = vadd.f32 %v2520, %v2904
        %v3129 = vadd.f32 %v2521, %v2905
        %v3130 = vadd.f32 %v2522, %v2906
        %v3131 = vadd.f32 %v2523, %v2907
        %v3132 = vadd.f32 %v2524, %v2908
        %v3133 = vadd.f32 %v2525, %v2909
        %v3134 = vadd.f32 %v2526, %v2910
        %v3135 = vadd.f32 %v2527, %v2911
        %v3136 = vadd.f32 %v2528, %v2912
        %v3137 = vadd.f32 %v2529, %v2913
        %v3138 = vadd.f32 %v2530, %v2914
        %v3139 = vadd.f32 %v2531, %v2915
        %v3140 = vadd.f32 %v2532, %v2916
        %v3141 = vadd.f32 %v2533, %v2917
        %v3142 = vadd.f32 %v2534, %v2918
        %v3143 = vadd.f32 %v2535, %v2919
        %v3144 = vadd.f32 %v2536, %v2920
        %v3145 = vadd.f32 %v2537, %v2921
        %v3146 = vadd.f32 %v2538, %v2922
        %v3147 = vadd.f32 %v2539, %v2923
        %v3148 = vadd.f32 %v2540, %v2924
        %v3149 = vadd.f32 %v2541, %v2925
        %v3150 = vadd.f32 %v2542, %v2926
        %v3151 = vadd.f32 %v2543, %v2927
        %v3152 = vadd.f32 %v2544, %v2928
        %v3153 = vadd.f32 %v2545, %v2929
        %v3154 = vadd.f32 %v2546, %v2930
        %v3155 = vadd.f32 %v2547, %v2931
        %v3156 = vadd.f32 %v2548, %v2932
        %v3157 = vadd.f32 %v2549, %v2933
        %v3158 = vadd.f32 %v2550, %v2934
        %v3159 = vadd.f32 %v2551, %v2935
        %v3160 = vadd.f32 %v2552, %v2936
        %v3161 = vadd.f32 %v2553, %v2937
        %v3162 = vadd.f32 %v2554, %v2938
        %v3163 = vadd.f32 %v2555, %v2939
        %v3164 = vadd.f32 %v2556, %v2940
        %v3165 = vadd.f32 %v2557, %v2941
        %v3166 = vadd.f32 %v2558, %v2942
        %v3167 = vadd.f32 %v2559, %v2943
        %v3168 = vadd.f32 %v2560, %v2944
        %v3169 = vadd.f32 %v2561, %v2945
        %v3170 = vadd.f32 %v2562, %v2946
        %v3171 = vadd.f32 %v2563, %v2947
        %v3172 = vadd.f32 %v2564, %v2948
        %v3173 = vadd.f32 %v2565, %v2949
        %v3174 = vadd.f32 %v2566, %v2950
        %v3175 = vadd.f32 %v2567, %v2951
        %v3176 = vadd.f32 %v2568, %v2952
        %v3177 = vadd.f32 %v2569, %v2953
        %v3178 = vadd.f32 %v2570, %v2954
        %v3179 = vadd.f32 %v2571, %v2955
        %v3180 = vadd.f32 %v2572, %v2956
        %v3181 = vadd.f32 %v2573, %v2957
        %v3182 = vadd.f32 %v2574, %v2958
        %v3183 = vadd.f32 %v2575, %v2959
        %v3184 = vadd.f32 %v2576, %v2960
        %v3185 = vadd.f32 %v2577, %v2961
        %v3186 = vadd.f32 %v2578, %v2962
        %v3187 = vadd.f32 %v2579, %v2963
        %v3188 = vadd.f32 %v2580, %v2964
        %v3189 = vadd.f32 %v2581, %v2965
        %v3190 = vadd.f32 %v2582, %v2966
        %v3191 = vadd.f32 %v2583, %v2967
        %v3192 = vadd.f32 %v2584, %v2968
        %v3193 = vadd.f32 %v2585, %v2969
        %v3194 = vadd.f32 %v2586, %v2970
        %v3195 = vadd.f32 %v2587, %v2971
        %v3196 = vadd.f32 %v2588, %v2972
        %v3197 = vadd.f32 %v2589, %v2973
        %v3198 = vadd.f32 %v2590, %v2974
        %v3199 = vadd.f32 %v2591, %v2975
        %v3200 = vadd.f32 %v2592, %v2976
        %v3201 = vadd.f32 %v2593, %v2977
        %v3202 = vadd.f32 %v2594, %v2978
        %v3203 = vadd.f32 %v2595, %v2979
        %v3204 = vadd.f32 %v2596, %v2980
        %v3205 = vadd.f32 %v2597, %v2981
        %v3206 = vadd.f32 %v2598, %v2982
        %v3207 = vadd.f32 %v2599, %v2983
        %v3208 = vadd.f32 %v2600, %v2984
        %v3209 = vadd.f32 %v2601, %v2985
        %v3210 = vadd.f32 %v2602, %v2986
        %v3211 = vadd.f32 %v2603, %v2987
        %v3212 = vadd.f32 %v2604, %v2988
        %v3213 = vadd.f32 %v2605, %v2989
        %v3214 = vadd.f32 %v2606, %v2990
        %v3215 = vadd.f32 %v2607, %v2991
        %v3216 = vadd.f32 %v2608, %v2992
        %v3217 = vadd.f32 %v2609, %v2993
        %v3218 = vadd.f32 %v2610, %v2994
        %v3219 = vadd.f32 %v2611, %v2995
        %v3220 = vadd.f32 %v2612, %v2996
        %v3221 = vadd.f32 %v2613, %v2997
        %v3222 = vadd.f32 %v2614, %v2998
        %v3223 = vadd.f32 %v2615, %v2999
        %v3224 = vadd.f32 %v2616, %v3000
        %v3225 = vadd.f32 %v2617, %v3001
        %v3226 = vadd.f32 %v2618, %v3002
        %v3227 = vadd.f32 %v2619, %v3003
        %v3228 = vadd.f32 %v2620, %v3004
        %v3229 = vadd.f32 %v2621, %v3005
        %v3230 = vadd.f32 %v2622, %v3006
        %v3231 = vadd.f32 %v2623, %v3007
        %v3232 = vadd.f32 %v2624, %v3008
        %v3233 = vadd.f32 %v2625, %v3009
        %v3234 = vadd.f32 %v2626, %v3010
        %v3235 = vadd.f32 %v2627, %v3011
        %v3236 = vadd.f32 %v2628, %v3012
        %v3237 = vadd.f32 %v2629, %v3013
        %v3238 = vadd.f32 %v2630, %v3014
        %v3239 = vadd.f32 %v2631, %v3015
        %v3240 = vadd.f32 %v2632, %v3016
        %v3241 = vadd.f32 %v2633, %v3017
        %v3242 = vadd.f32 %v2634, %v3018
        %v3243 = vadd.f32 %v2635, %v3019
        %v3244 = vadd.f32 %v2636, %v3020
        %v3245 = vadd.f32 %v2637, %v3021
        %v3246 = vadd.f32 %v2638, %v3022
        %v3247 = vadd.f32 %v2639, %v3023
        %v3248 = vadd.f32 %v2640, %v3024
        %v3249 = vadd.f32 %v2641, %v3025
        %v3250 = vadd.f32 %v2642, %v3026
        %v3251 = vadd.f32 %v2643, %v3027
        %v3252 = vadd.f32 %v2644, %v3028
        %v3253 = vadd.f32 %v2645, %v3029
        %v3254 = vadd.f32 %v2646, %v3030
        %v3255 = vadd.f32 %v2647, %v3031
        %v3256 = vadd.f32 %v2648, %v3032
        %v3257 = vadd.f32 %v2649, %v3033
        %v3258 = vadd.f32 %v2650, %v3034
        %v3259 = vadd.f32 %v2651, %v3035
        %v3260 = vadd.f32 %v2652, %v3036
        %v3261 = vadd.f32 %v2653, %v3037
        %v3262 = vadd.f32 %v2654, %v3038
        %v3263 = vadd.f32 %v2655, %v3039
        %v3264 = vadd.f32 %v2656, %v3040
        %v3265 = vadd.f32 %v2657, %v3041
        %v3266 = vadd.f32 %v2658, %v3042
        %v3267 = vadd.f32 %v2659, %v3043
        %v3268 = vadd.f32 %v2660, %v3044
        %v3269 = vadd.f32 %v2661, %v3045
        %v3270 = vadd.f32 %v2662, %v3046
        %v3271 = vadd.f32 %v2663, %v3047
        %v3272 = vadd.f32 %v2664, %v3048
        %v3273 = vadd.f32 %v2665, %v3049
        %v3274 = vadd.f32 %v2666, %v3050
        %v3275 = vadd.f32 %v2667, %v3051
        %v3276 = vadd.f32 %v2668, %v3052
        %v3277 = vadd.f32 %v2669, %v3053
        %v3278 = vadd.f32 %v2670, %v3054
        %v3279 = vadd.f32 %v2671, %v3055
        %v3280 = vadd.f32 %v2672, %v3056
        %v3281 = vadd.f32 %v2673, %v3057
        %v3282 = vadd.f32 %v2674, %v3058
        %v3283 = vadd.f32 %v2675, %v3059
        %v3284 = vadd.f32 %v2676, %v3060
        %v3285 = vadd.f32 %v2677, %v3061
        %v3286 = vadd.f32 %v2678, %v3062
        %v3287 = vld [vmem:[%s462] sm:$0xff]
        %v3288 = vld [vmem:[%s462 + $0x8] sm:$0xff]
        %v3289 = vld [vmem:[%s462 + $0x10] sm:$0xff]
        %v3290 = vld [vmem:[%s462 + $0x18] sm:$0xff]
        %v3291 = vld [vmem:[%s462 + $0x20] sm:$0xff]
        %v3292 = vld [vmem:[%s462 + $0x28] sm:$0xff]
        %v3293 = vld [vmem:[%s462 + $0x30] sm:$0xff]
        %v3294 = vld [vmem:[%s462 + $0x38] sm:$0xff]
        %v3295 = vld [vmem:[%s462 + $0x40] sm:$0xff]
        %v3296 = vld [vmem:[%s462 + $0x48] sm:$0xff]
        %v3297 = vld [vmem:[%s462 + $0x50] sm:$0xff]
        %v3298 = vld [vmem:[%s462 + $0x58] sm:$0xff]
        %v3299 = vld [vmem:[%s462 + $0x60] sm:$0xff]
        %v3300 = vld [vmem:[%s462 + $0x68] sm:$0xff]
        %v3301 = vld [vmem:[%s462 + $0x70] sm:$0xff]
        %v3302 = vld [vmem:[%s462 + $0x78] sm:$0xff]
        %v3303 = vld [vmem:[%s462 + $0x80] sm:$0xff]
        %v3304 = vld [vmem:[%s462 + $0x88] sm:$0xff]
        %v3305 = vld [vmem:[%s462 + $0x90] sm:$0xff]
        %v3306 = vld [vmem:[%s462 + $0x98] sm:$0xff]
        %v3307 = vld [vmem:[%s462 + $0xa0] sm:$0xff]
        %v3308 = vld [vmem:[%s462 + $0xa8] sm:$0xff]
        %v3309 = vld [vmem:[%s462 + $0xb0] sm:$0xff]
        %v3310 = vld [vmem:[%s462 + $0xb8] sm:$0xff]
        %v3311 = vld [vmem:[%s462 + $0xc0] sm:$0xff]
        %v3312 = vld [vmem:[%s462 + $0xc8] sm:$0xff]
        %v3313 = vld [vmem:[%s462 + $0xd0] sm:$0xff]
        %v3314 = vld [vmem:[%s462 + $0xd8] sm:$0xff]
        %v3315 = vld [vmem:[%s462 + $0xe0] sm:$0xff]
        %v3316 = vld [vmem:[%s462 + $0xe8] sm:$0xff]
        %v3317 = vld [vmem:[%s462 + $0xf0] sm:$0xff]
        %v3318 = vld [vmem:[%s462 + $0xf8] sm:$0xff]
        %3320 = vset.pattern.permute.xlu0 0
        %3321 = vperm.xlu0 %3320, %v3287
        %v3322 = vpop.permute.xlu0 %3321
        %3325 = vset.pattern.permute.xlu0 0
        %3326 = vperm.xlu0 %3325, %v3288
        %v3327 = vpop.permute.xlu0 %3326
        %3330 = vset.pattern.permute.xlu0 0
        %3331 = vperm.xlu0 %3330, %v3289
        %v3332 = vpop.permute.xlu0 %3331
        %3335 = vset.pattern.permute.xlu0 0
        %3336 = vperm.xlu0 %3335, %v3290
        %v3337 = vpop.permute.xlu0 %3336
        %3340 = vset.pattern.permute.xlu0 0
        %3341 = vperm.xlu0 %3340, %v3291
        %v3342 = vpop.permute.xlu0 %3341
        %3345 = vset.pattern.permute.xlu0 0
        %3346 = vperm.xlu0 %3345, %v3292
        %v3347 = vpop.permute.xlu0 %3346
        %3350 = vset.pattern.permute.xlu0 0
        %3351 = vperm.xlu0 %3350, %v3293
        %v3352 = vpop.permute.xlu0 %3351
        %3355 = vset.pattern.permute.xlu0 0
        %3356 = vperm.xlu0 %3355, %v3294
        %v3357 = vpop.permute.xlu0 %3356
        %3360 = vset.pattern.permute.xlu0 0
        %3361 = vperm.xlu0 %3360, %v3295
        %v3362 = vpop.permute.xlu0 %3361
        %3365 = vset.pattern.permute.xlu0 0
        %3366 = vperm.xlu0 %3365, %v3296
        %v3367 = vpop.permute.xlu0 %3366
        %3370 = vset.pattern.permute.xlu0 0
        %3371 = vperm.xlu0 %3370, %v3297
        %v3372 = vpop.permute.xlu0 %3371
        %3375 = vset.pattern.permute.xlu0 0
        %3376 = vperm.xlu0 %3375, %v3298
        %v3377 = vpop.permute.xlu0 %3376
        %3380 = vset.pattern.permute.xlu0 0
        %3381 = vperm.xlu0 %3380, %v3299
        %v3382 = vpop.permute.xlu0 %3381
        %3385 = vset.pattern.permute.xlu0 0
        %3386 = vperm.xlu0 %3385, %v3300
        %v3387 = vpop.permute.xlu0 %3386
        %3390 = vset.pattern.permute.xlu0 0
        %3391 = vperm.xlu0 %3390, %v3301
        %v3392 = vpop.permute.xlu0 %3391
        %3395 = vset.pattern.permute.xlu0 0
        %3396 = vperm.xlu0 %3395, %v3302
        %v3397 = vpop.permute.xlu0 %3396
        %3400 = vset.pattern.permute.xlu0 0
        %3401 = vperm.xlu0 %3400, %v3303
        %v3402 = vpop.permute.xlu0 %3401
        %3405 = vset.pattern.permute.xlu0 0
        %3406 = vperm.xlu0 %3405, %v3304
        %v3407 = vpop.permute.xlu0 %3406
        %3410 = vset.pattern.permute.xlu0 0
        %3411 = vperm.xlu0 %3410, %v3305
        %v3412 = vpop.permute.xlu0 %3411
        %3415 = vset.pattern.permute.xlu0 0
        %3416 = vperm.xlu0 %3415, %v3306
        %v3417 = vpop.permute.xlu0 %3416
        %3420 = vset.pattern.permute.xlu0 0
        %3421 = vperm.xlu0 %3420, %v3307
        %v3422 = vpop.permute.xlu0 %3421
        %3425 = vset.pattern.permute.xlu0 0
        %3426 = vperm.xlu0 %3425, %v3308
        %v3427 = vpop.permute.xlu0 %3426
        %3430 = vset.pattern.permute.xlu0 0
        %3431 = vperm.xlu0 %3430, %v3309
        %v3432 = vpop.permute.xlu0 %3431
        %3435 = vset.pattern.permute.xlu0 0
        %3436 = vperm.xlu0 %3435, %v3310
        %v3437 = vpop.permute.xlu0 %3436
        %3440 = vset.pattern.permute.xlu0 0
        %3441 = vperm.xlu0 %3440, %v3311
        %v3442 = vpop.permute.xlu0 %3441
        %3445 = vset.pattern.permute.xlu0 0
        %3446 = vperm.xlu0 %3445, %v3312
        %v3447 = vpop.permute.xlu0 %3446
        %3450 = vset.pattern.permute.xlu0 0
        %3451 = vperm.xlu0 %3450, %v3313
        %v3452 = vpop.permute.xlu0 %3451
        %3455 = vset.pattern.permute.xlu0 0
        %3456 = vperm.xlu0 %3455, %v3314
        %v3457 = vpop.permute.xlu0 %3456
        %3460 = vset.pattern.permute.xlu0 0
        %3461 = vperm.xlu0 %3460, %v3315
        %v3462 = vpop.permute.xlu0 %3461
        %3465 = vset.pattern.permute.xlu0 0
        %3466 = vperm.xlu0 %3465, %v3316
        %v3467 = vpop.permute.xlu0 %3466
        %3470 = vset.pattern.permute.xlu0 0
        %3471 = vperm.xlu0 %3470, %v3317
        %v3472 = vpop.permute.xlu0 %3471
        %3475 = vset.pattern.permute.xlu0 0
        %3476 = vperm.xlu0 %3475, %v3318
        %v3477 = vpop.permute.xlu0 %3476
        %v3479 = vadd.f32 %v3063, %v3322
        %v3480 = vadd.f32 %v3064, %v3322
        %v3481 = vadd.f32 %v3065, %v3322
        %v3482 = vadd.f32 %v3066, %v3322
        %v3483 = vadd.f32 %v3067, %v3322
        %v3484 = vadd.f32 %v3068, %v3322
        %v3485 = vadd.f32 %v3069, %v3322
        %v3486 = vadd.f32 %v3070, %v3327
        %v3487 = vadd.f32 %v3071, %v3327
        %v3488 = vadd.f32 %v3072, %v3327
        %v3489 = vadd.f32 %v3073, %v3327
        %v3490 = vadd.f32 %v3074, %v3327
        %v3491 = vadd.f32 %v3075, %v3327
        %v3492 = vadd.f32 %v3076, %v3327
        %v3493 = vadd.f32 %v3077, %v3332
        %v3494 = vadd.f32 %v3078, %v3332
        %v3495 = vadd.f32 %v3079, %v3332
        %v3496 = vadd.f32 %v3080, %v3332
        %v3497 = vadd.f32 %v3081, %v3332
        %v3498 = vadd.f32 %v3082, %v3332
        %v3499 = vadd.f32 %v3083, %v3332
        %v3500 = vadd.f32 %v3084, %v3337
        %v3501 = vadd.f32 %v3085, %v3337
        %v3502 = vadd.f32 %v3086, %v3337
        %v3503 = vadd.f32 %v3087, %v3337
        %v3504 = vadd.f32 %v3088, %v3337
        %v3505 = vadd.f32 %v3089, %v3337
        %v3506 = vadd.f32 %v3090, %v3337
        %v3507 = vadd.f32 %v3091, %v3342
        %v3508 = vadd.f32 %v3092, %v3342
        %v3509 = vadd.f32 %v3093, %v3342
        %v3510 = vadd.f32 %v3094, %v3342
        %v3511 = vadd.f32 %v3095, %v3342
        %v3512 = vadd.f32 %v3096, %v3342
        %v3513 = vadd.f32 %v3097, %v3342
        %v3514 = vadd.f32 %v3098, %v3347
        %v3515 = vadd.f32 %v3099, %v3347
        %v3516 = vadd.f32 %v3100, %v3347
        %v3517 = vadd.f32 %v3101, %v3347
        %v3518 = vadd.f32 %v3102, %v3347
        %v3519 = vadd.f32 %v3103, %v3347
        %v3520 = vadd.f32 %v3104, %v3347
        %v3521 = vadd.f32 %v3105, %v3352
        %v3522 = vadd.f32 %v3106, %v3352
        %v3523 = vadd.f32 %v3107, %v3352
        %v3524 = vadd.f32 %v3108, %v3352
        %v3525 = vadd.f32 %v3109, %v3352
        %v3526 = vadd.f32 %v3110, %v3352
        %v3527 = vadd.f32 %v3111, %v3352
        %v3528 = vadd.f32 %v3112, %v3357
        %v3529 = vadd.f32 %v3113, %v3357
        %v3530 = vadd.f32 %v3114, %v3357
        %v3531 = vadd.f32 %v3115, %v3357
        %v3532 = vadd.f32 %v3116, %v3357
        %v3533 = vadd.f32 %v3117, %v3357
        %v3534 = vadd.f32 %v3118, %v3357
        %v3535 = vadd.f32 %v3119, %v3362
        %v3536 = vadd.f32 %v3120, %v3362
        %v3537 = vadd.f32 %v3121, %v3362
        %v3538 = vadd.f32 %v3122, %v3362
        %v3539 = vadd.f32 %v3123, %v3362
        %v3540 = vadd.f32 %v3124, %v3362
        %v3541 = vadd.f32 %v3125, %v3362
        %v3542 = vadd.f32 %v3126, %v3367
        %v3543 = vadd.f32 %v3127, %v3367
        %v3544 = vadd.f32 %v3128, %v3367
        %v3545 = vadd.f32 %v3129, %v3367
        %v3546 = vadd.f32 %v3130, %v3367
        %v3547 = vadd.f32 %v3131, %v3367
        %v3548 = vadd.f32 %v3132, %v3367
        %v3549 = vadd.f32 %v3133, %v3372
        %v3550 = vadd.f32 %v3134, %v3372
        %v3551 = vadd.f32 %v3135, %v3372
        %v3552 = vadd.f32 %v3136, %v3372
        %v3553 = vadd.f32 %v3137, %v3372
        %v3554 = vadd.f32 %v3138, %v3372
        %v3555 = vadd.f32 %v3139, %v3372
        %v3556 = vadd.f32 %v3140, %v3377
        %v3557 = vadd.f32 %v3141, %v3377
        %v3558 = vadd.f32 %v3142, %v3377
        %v3559 = vadd.f32 %v3143, %v3377
        %v3560 = vadd.f32 %v3144, %v3377
        %v3561 = vadd.f32 %v3145, %v3377
        %v3562 = vadd.f32 %v3146, %v3377
        %v3563 = vadd.f32 %v3147, %v3382
        %v3564 = vadd.f32 %v3148, %v3382
        %v3565 = vadd.f32 %v3149, %v3382
        %v3566 = vadd.f32 %v3150, %v3382
        %v3567 = vadd.f32 %v3151, %v3382
        %v3568 = vadd.f32 %v3152, %v3382
        %v3569 = vadd.f32 %v3153, %v3382
        %v3570 = vadd.f32 %v3154, %v3387
        %v3571 = vadd.f32 %v3155, %v3387
        %v3572 = vadd.f32 %v3156, %v3387
        %v3573 = vadd.f32 %v3157, %v3387
        %v3574 = vadd.f32 %v3158, %v3387
        %v3575 = vadd.f32 %v3159, %v3387
        %v3576 = vadd.f32 %v3160, %v3387
        %v3577 = vadd.f32 %v3161, %v3392
        %v3578 = vadd.f32 %v3162, %v3392
        %v3579 = vadd.f32 %v3163, %v3392
        %v3580 = vadd.f32 %v3164, %v3392
        %v3581 = vadd.f32 %v3165, %v3392
        %v3582 = vadd.f32 %v3166, %v3392
        %v3583 = vadd.f32 %v3167, %v3392
        %v3584 = vadd.f32 %v3168, %v3397
        %v3585 = vadd.f32 %v3169, %v3397
        %v3586 = vadd.f32 %v3170, %v3397
        %v3587 = vadd.f32 %v3171, %v3397
        %v3588 = vadd.f32 %v3172, %v3397
        %v3589 = vadd.f32 %v3173, %v3397
        %v3590 = vadd.f32 %v3174, %v3397
        %v3591 = vadd.f32 %v3175, %v3402
        %v3592 = vadd.f32 %v3176, %v3402
        %v3593 = vadd.f32 %v3177, %v3402
        %v3594 = vadd.f32 %v3178, %v3402
        %v3595 = vadd.f32 %v3179, %v3402
        %v3596 = vadd.f32 %v3180, %v3402
        %v3597 = vadd.f32 %v3181, %v3402
        %v3598 = vadd.f32 %v3182, %v3407
        %v3599 = vadd.f32 %v3183, %v3407
        %v3600 = vadd.f32 %v3184, %v3407
        %v3601 = vadd.f32 %v3185, %v3407
        %v3602 = vadd.f32 %v3186, %v3407
        %v3603 = vadd.f32 %v3187, %v3407
        %v3604 = vadd.f32 %v3188, %v3407
        %v3605 = vadd.f32 %v3189, %v3412
        %v3606 = vadd.f32 %v3190, %v3412
        %v3607 = vadd.f32 %v3191, %v3412
        %v3608 = vadd.f32 %v3192, %v3412
        %v3609 = vadd.f32 %v3193, %v3412
        %v3610 = vadd.f32 %v3194, %v3412
        %v3611 = vadd.f32 %v3195, %v3412
        %v3612 = vadd.f32 %v3196, %v3417
        %v3613 = vadd.f32 %v3197, %v3417
        %v3614 = vadd.f32 %v3198, %v3417
        %v3615 = vadd.f32 %v3199, %v3417
        %v3616 = vadd.f32 %v3200, %v3417
        %v3617 = vadd.f32 %v3201, %v3417
        %v3618 = vadd.f32 %v3202, %v3417
        %v3619 = vadd.f32 %v3203, %v3422
        %v3620 = vadd.f32 %v3204, %v3422
        %v3621 = vadd.f32 %v3205, %v3422
        %v3622 = vadd.f32 %v3206, %v3422
        %v3623 = vadd.f32 %v3207, %v3422
        %v3624 = vadd.f32 %v3208, %v3422
        %v3625 = vadd.f32 %v3209, %v3422
        %v3626 = vadd.f32 %v3210, %v3427
        %v3627 = vadd.f32 %v3211, %v3427
        %v3628 = vadd.f32 %v3212, %v3427
        %v3629 = vadd.f32 %v3213, %v3427
        %v3630 = vadd.f32 %v3214, %v3427
        %v3631 = vadd.f32 %v3215, %v3427
        %v3632 = vadd.f32 %v3216, %v3427
        %v3633 = vadd.f32 %v3217, %v3432
        %v3634 = vadd.f32 %v3218, %v3432
        %v3635 = vadd.f32 %v3219, %v3432
        %v3636 = vadd.f32 %v3220, %v3432
        %v3637 = vadd.f32 %v3221, %v3432
        %v3638 = vadd.f32 %v3222, %v3432
        %v3639 = vadd.f32 %v3223, %v3432
        %v3640 = vadd.f32 %v3224, %v3437
        %v3641 = vadd.f32 %v3225, %v3437
        %v3642 = vadd.f32 %v3226, %v3437
        %v3643 = vadd.f32 %v3227, %v3437
        %v3644 = vadd.f32 %v3228, %v3437
        %v3645 = vadd.f32 %v3229, %v3437
        %v3646 = vadd.f32 %v3230, %v3437
        %v3647 = vadd.f32 %v3231, %v3442
        %v3648 = vadd.f32 %v3232, %v3442
        %v3649 = vadd.f32 %v3233, %v3442
        %v3650 = vadd.f32 %v3234, %v3442
        %v3651 = vadd.f32 %v3235, %v3442
        %v3652 = vadd.f32 %v3236, %v3442
        %v3653 = vadd.f32 %v3237, %v3442
        %v3654 = vadd.f32 %v3238, %v3447
        %v3655 = vadd.f32 %v3239, %v3447
        %v3656 = vadd.f32 %v3240, %v3447
        %v3657 = vadd.f32 %v3241, %v3447
        %v3658 = vadd.f32 %v3242, %v3447
        %v3659 = vadd.f32 %v3243, %v3447
        %v3660 = vadd.f32 %v3244, %v3447
        %v3661 = vadd.f32 %v3245, %v3452
        %v3662 = vadd.f32 %v3246, %v3452
        %v3663 = vadd.f32 %v3247, %v3452
        %v3664 = vadd.f32 %v3248, %v3452
        %v3665 = vadd.f32 %v3249, %v3452
        %v3666 = vadd.f32 %v3250, %v3452
        %v3667 = vadd.f32 %v3251, %v3452
        %v3668 = vadd.f32 %v3252, %v3457
        %v3669 = vadd.f32 %v3253, %v3457
        %v3670 = vadd.f32 %v3254, %v3457
        %v3671 = vadd.f32 %v3255, %v3457
        %v3672 = vadd.f32 %v3256, %v3457
        %v3673 = vadd.f32 %v3257, %v3457
        %v3674 = vadd.f32 %v3258, %v3457
        %v3675 = vadd.f32 %v3259, %v3462
        %v3676 = vadd.f32 %v3260, %v3462
        %v3677 = vadd.f32 %v3261, %v3462
        %v3678 = vadd.f32 %v3262, %v3462
        %v3679 = vadd.f32 %v3263, %v3462
        %v3680 = vadd.f32 %v3264, %v3462
        %v3681 = vadd.f32 %v3265, %v3462
        %v3682 = vadd.f32 %v3266, %v3467
        %v3683 = vadd.f32 %v3267, %v3467
        %v3684 = vadd.f32 %v3268, %v3467
        %v3685 = vadd.f32 %v3269, %v3467
        %v3686 = vadd.f32 %v3270, %v3467
        %v3687 = vadd.f32 %v3271, %v3467
        %v3688 = vadd.f32 %v3272, %v3467
        %v3689 = vadd.f32 %v3273, %v3472
        %v3690 = vadd.f32 %v3274, %v3472
        %v3691 = vadd.f32 %v3275, %v3472
        %v3692 = vadd.f32 %v3276, %v3472
        %v3693 = vadd.f32 %v3277, %v3472
        %v3694 = vadd.f32 %v3278, %v3472
        %v3695 = vadd.f32 %v3279, %v3472
        %v3696 = vadd.f32 %v3280, %v3477
        %v3697 = vadd.f32 %v3281, %v3477
        %v3698 = vadd.f32 %v3282, %v3477
        %v3699 = vadd.f32 %v3283, %v3477
        %v3700 = vadd.f32 %v3284, %v3477
        %v3701 = vadd.f32 %v3285, %v3477
        %v3702 = vadd.f32 %v3286, %v3477
        %v3703 = vmax.f32 %v3479, 0.0
        %v3704 = vmax.f32 %v3480, 0.0
        %v3705 = vmax.f32 %v3481, 0.0
        %v3706 = vmax.f32 %v3482, 0.0
        %v3707 = vmax.f32 %v3483, 0.0
        %v3708 = vmax.f32 %v3484, 0.0
        %v3709 = vmax.f32 %v3485, 0.0
        %v3710 = vmax.f32 %v3486, 0.0
        %v3711 = vmax.f32 %v3487, 0.0
        %v3712 = vmax.f32 %v3488, 0.0
        %v3713 = vmax.f32 %v3489, 0.0
        %v3714 = vmax.f32 %v3490, 0.0
        %v3715 = vmax.f32 %v3491, 0.0
        %v3716 = vmax.f32 %v3492, 0.0
        %v3717 = vmax.f32 %v3493, 0.0
        %v3718 = vmax.f32 %v3494, 0.0
        %v3719 = vmax.f32 %v3495, 0.0
        %v3720 = vmax.f32 %v3496, 0.0
        %v3721 = vmax.f32 %v3497, 0.0
        %v3722 = vmax.f32 %v3498, 0.0
        %v3723 = vmax.f32 %v3499, 0.0
        %v3724 = vmax.f32 %v3500, 0.0
        %v3725 = vmax.f32 %v3501, 0.0
        %v3726 = vmax.f32 %v3502, 0.0
        %v3727 = vmax.f32 %v3503, 0.0
        %v3728 = vmax.f32 %v3504, 0.0
        %v3729 = vmax.f32 %v3505, 0.0
        %v3730 = vmax.f32 %v3506, 0.0
        %v3731 = vmax.f32 %v3507, 0.0
        %v3732 = vmax.f32 %v3508, 0.0
        %v3733 = vmax.f32 %v3509, 0.0
        %v3734 = vmax.f32 %v3510, 0.0
        %v3735 = vmax.f32 %v3511, 0.0
        %v3736 = vmax.f32 %v3512, 0.0
        %v3737 = vmax.f32 %v3513, 0.0
        %v3738 = vmax.f32 %v3514, 0.0
        %v3739 = vmax.f32 %v3515, 0.0
        %v3740 = vmax.f32 %v3516, 0.0
        %v3741 = vmax.f32 %v3517, 0.0
        %v3742 = vmax.f32 %v3518, 0.0
        %v3743 = vmax.f32 %v3519, 0.0
        %v3744 = vmax.f32 %v3520, 0.0
        %v3745 = vmax.f32 %v3521, 0.0
        %v3746 = vmax.f32 %v3522, 0.0
        %v3747 = vmax.f32 %v3523, 0.0
        %v3748 = vmax.f32 %v3524, 0.0
        %v3749 = vmax.f32 %v3525, 0.0
        %v3750 = vmax.f32 %v3526, 0.0
        %v3751 = vmax.f32 %v3527, 0.0
        %v3752 = vmax.f32 %v3528, 0.0
        %v3753 = vmax.f32 %v3529, 0.0
        %v3754 = vmax.f32 %v3530, 0.0
        %v3755 = vmax.f32 %v3531, 0.0
        %v3756 = vmax.f32 %v3532, 0.0
        %v3757 = vmax.f32 %v3533, 0.0
        %v3758 = vmax.f32 %v3534, 0.0
        %v3759 = vmax.f32 %v3535, 0.0
        %v3760 = vmax.f32 %v3536, 0.0
        %v3761 = vmax.f32 %v3537, 0.0
        %v3762 = vmax.f32 %v3538, 0.0
        %v3763 = vmax.f32 %v3539, 0.0
        %v3764 = vmax.f32 %v3540, 0.0
        %v3765 = vmax.f32 %v3541, 0.0
        %v3766 = vmax.f32 %v3542, 0.0
        %v3767 = vmax.f32 %v3543, 0.0
        %v3768 = vmax.f32 %v3544, 0.0
        %v3769 = vmax.f32 %v3545, 0.0
        %v3770 = vmax.f32 %v3546, 0.0
        %v3771 = vmax.f32 %v3547, 0.0
        %v3772 = vmax.f32 %v3548, 0.0
        %v3773 = vmax.f32 %v3549, 0.0
        %v3774 = vmax.f32 %v3550, 0.0
        %v3775 = vmax.f32 %v3551, 0.0
        %v3776 = vmax.f32 %v3552, 0.0
        %v3777 = vmax.f32 %v3553, 0.0
        %v3778 = vmax.f32 %v3554, 0.0
        %v3779 = vmax.f32 %v3555, 0.0
        %v3780 = vmax.f32 %v3556, 0.0
        %v3781 = vmax.f32 %v3557, 0.0
        %v3782 = vmax.f32 %v3558, 0.0
        %v3783 = vmax.f32 %v3559, 0.0
        %v3784 = vmax.f32 %v3560, 0.0
        %v3785 = vmax.f32 %v3561, 0.0
        %v3786 = vmax.f32 %v3562, 0.0
        %v3787 = vmax.f32 %v3563, 0.0
        %v3788 = vmax.f32 %v3564, 0.0
        %v3789 = vmax.f32 %v3565, 0.0
        %v3790 = vmax.f32 %v3566, 0.0
        %v3791 = vmax.f32 %v3567, 0.0
        %v3792 = vmax.f32 %v3568, 0.0
        %v3793 = vmax.f32 %v3569, 0.0
        %v3794 = vmax.f32 %v3570, 0.0
        %v3795 = vmax.f32 %v3571, 0.0
        %v3796 = vmax.f32 %v3572, 0.0
        %v3797 = vmax.f32 %v3573, 0.0
        %v3798 = vmax.f32 %v3574, 0.0
        %v3799 = vmax.f32 %v3575, 0.0
        %v3800 = vmax.f32 %v3576, 0.0
        %v3801 = vmax.f32 %v3577, 0.0
        %v3802 = vmax.f32 %v3578, 0.0
        %v3803 = vmax.f32 %v3579, 0.0
        %v3804 = vmax.f32 %v3580, 0.0
        %v3805 = vmax.f32 %v3581, 0.0
        %v3806 = vmax.f32 %v3582, 0.0
        %v3807 = vmax.f32 %v3583, 0.0
        %v3808 = vmax.f32 %v3584, 0.0
        %v3809 = vmax.f32 %v3585, 0.0
        %v3810 = vmax.f32 %v3586, 0.0
        %v3811 = vmax.f32 %v3587, 0.0
        %v3812 = vmax.f32 %v3588, 0.0
        %v3813 = vmax.f32 %v3589, 0.0
        %v3814 = vmax.f32 %v3590, 0.0
        %v3815 = vmax.f32 %v3591, 0.0
        %v3816 = vmax.f32 %v3592, 0.0
        %v3817 = vmax.f32 %v3593, 0.0
        %v3818 = vmax.f32 %v3594, 0.0
        %v3819 = vmax.f32 %v3595, 0.0
        %v3820 = vmax.f32 %v3596, 0.0
        %v3821 = vmax.f32 %v3597, 0.0
        %v3822 = vmax.f32 %v3598, 0.0
        %v3823 = vmax.f32 %v3599, 0.0
        %v3824 = vmax.f32 %v3600, 0.0
        %v3825 = vmax.f32 %v3601, 0.0
        %v3826 = vmax.f32 %v3602, 0.0
        %v3827 = vmax.f32 %v3603, 0.0
        %v3828 = vmax.f32 %v3604, 0.0
        %v3829 = vmax.f32 %v3605, 0.0
        %v3830 = vmax.f32 %v3606, 0.0
        %v3831 = vmax.f32 %v3607, 0.0
        %v3832 = vmax.f32 %v3608, 0.0
        %v3833 = vmax.f32 %v3609, 0.0
        %v3834 = vmax.f32 %v3610, 0.0
        %v3835 = vmax.f32 %v3611, 0.0
        %v3836 = vmax.f32 %v3612, 0.0
        %v3837 = vmax.f32 %v3613, 0.0
        %v3838 = vmax.f32 %v3614, 0.0
        %v3839 = vmax.f32 %v3615, 0.0
        %v3840 = vmax.f32 %v3616, 0.0
        %v3841 = vmax.f32 %v3617, 0.0
        %v3842 = vmax.f32 %v3618, 0.0
        %v3843 = vmax.f32 %v3619, 0.0
        %v3844 = vmax.f32 %v3620, 0.0
        %v3845 = vmax.f32 %v3621, 0.0
        %v3846 = vmax.f32 %v3622, 0.0
        %v3847 = vmax.f32 %v3623, 0.0
        %v3848 = vmax.f32 %v3624, 0.0
        %v3849 = vmax.f32 %v3625, 0.0
        %v3850 = vmax.f32 %v3626, 0.0
        %v3851 = vmax.f32 %v3627, 0.0
        %v3852 = vmax.f32 %v3628, 0.0
        %v3853 = vmax.f32 %v3629, 0.0
        %v3854 = vmax.f32 %v3630, 0.0
        %v3855 = vmax.f32 %v3631, 0.0
        %v3856 = vmax.f32 %v3632, 0.0
        %v3857 = vmax.f32 %v3633, 0.0
        %v3858 = vmax.f32 %v3634, 0.0
        %v3859 = vmax.f32 %v3635, 0.0
        %v3860 = vmax.f32 %v3636, 0.0
        %v3861 = vmax.f32 %v3637, 0.0
        %v3862 = vmax.f32 %v3638, 0.0
        %v3863 = vmax.f32 %v3639, 0.0
        %v3864 = vmax.f32 %v3640, 0.0
        %v3865 = vmax.f32 %v3641, 0.0
        %v3866 = vmax.f32 %v3642, 0.0
        %v3867 = vmax.f32 %v3643, 0.0
        %v3868 = vmax.f32 %v3644, 0.0
        %v3869 = vmax.f32 %v3645, 0.0
        %v3870 = vmax.f32 %v3646, 0.0
        %v3871 = vmax.f32 %v3647, 0.0
        %v3872 = vmax.f32 %v3648, 0.0
        %v3873 = vmax.f32 %v3649, 0.0
        %v3874 = vmax.f32 %v3650, 0.0
        %v3875 = vmax.f32 %v3651, 0.0
        %v3876 = vmax.f32 %v3652, 0.0
        %v3877 = vmax.f32 %v3653, 0.0
        %v3878 = vmax.f32 %v3654, 0.0
        %v3879 = vmax.f32 %v3655, 0.0
        %v3880 = vmax.f32 %v3656, 0.0
        %v3881 = vmax.f32 %v3657, 0.0
        %v3882 = vmax.f32 %v3658, 0.0
        %v3883 = vmax.f32 %v3659, 0.0
        %v3884 = vmax.f32 %v3660, 0.0
        %v3885 = vmax.f32 %v3661, 0.0
        %v3886 = vmax.f32 %v3662, 0.0
        %v3887 = vmax.f32 %v3663, 0.0
        %v3888 = vmax.f32 %v3664, 0.0
        %v3889 = vmax.f32 %v3665, 0.0
        %v3890 = vmax.f32 %v3666, 0.0
        %v3891 = vmax.f32 %v3667, 0.0
        %v3892 = vmax.f32 %v3668, 0.0
        %v3893 = vmax.f32 %v3669, 0.0
        %v3894 = vmax.f32 %v3670, 0.0
        %v3895 = vmax.f32 %v3671, 0.0
        %v3896 = vmax.f32 %v3672, 0.0
        %v3897 = vmax.f32 %v3673, 0.0
        %v3898 = vmax.f32 %v3674, 0.0
        %v3899 = vmax.f32 %v3675, 0.0
        %v3900 = vmax.f32 %v3676, 0.0
        %v3901 = vmax.f32 %v3677, 0.0
        %v3902 = vmax.f32 %v3678, 0.0
        %v3903 = vmax.f32 %v3679, 0.0
        %v3904 = vmax.f32 %v3680, 0.0
        %v3905 = vmax.f32 %v3681, 0.0
        %v3906 = vmax.f32 %v3682, 0.0
        %v3907 = vmax.f32 %v3683, 0.0
        %v3908 = vmax.f32 %v3684, 0.0
        %v3909 = vmax.f32 %v3685, 0.0
        %v3910 = vmax.f32 %v3686, 0.0
        %v3911 = vmax.f32 %v3687, 0.0
        %v3912 = vmax.f32 %v3688, 0.0
        %v3913 = vmax.f32 %v3689, 0.0
        %v3914 = vmax.f32 %v3690, 0.0
        %v3915 = vmax.f32 %v3691, 0.0
        %v3916 = vmax.f32 %v3692, 0.0
        %v3917 = vmax.f32 %v3693, 0.0
        %v3918 = vmax.f32 %v3694, 0.0
        %v3919 = vmax.f32 %v3695, 0.0
        %v3920 = vmax.f32 %v3696, 0.0
        %v3921 = vmax.f32 %v3697, 0.0
        %v3922 = vmax.f32 %v3698, 0.0
        %v3923 = vmax.f32 %v3699, 0.0
        %v3924 = vmax.f32 %v3700, 0.0
        %v3925 = vmax.f32 %v3701, 0.0
        %v3926 = vmax.f32 %v3702, 0.0
        %v3927 = vld [vmem:[%s5] sm:$0xff]
        %v3928 = vld [vmem:[%s5 + $0x8] sm:$0xff]
        %v3929 = vld [vmem:[%s5 + $0x10] sm:$0xff]
        %v3930 = vld [vmem:[%s5 + $0x18] sm:$0xff]
        %v3931 = vld [vmem:[%s5 + $0x20] sm:$0xff]
        %v3932 = vld [vmem:[%s5 + $0x28] sm:$0xff]
        %v3933 = vld [vmem:[%s5 + $0x30] sm:$0xff]
        %v3934 = vld [vmem:[%s5 + $0x38] sm:$0xff]
        %v3935 = vld [vmem:[%s5 + $0x40] sm:$0xff]
        %v3936 = vld [vmem:[%s5 + $0x48] sm:$0xff]
        %v3937 = vld [vmem:[%s5 + $0x50] sm:$0xff]
        %v3938 = vld [vmem:[%s5 + $0x58] sm:$0xff]
        %v3939 = vld [vmem:[%s5 + $0x60] sm:$0xff]
        %v3940 = vld [vmem:[%s5 + $0x68] sm:$0xff]
        %v3941 = vld [vmem:[%s5 + $0x70] sm:$0xff]
        %v3942 = vld [vmem:[%s5 + $0x78] sm:$0xff]
        %v3943 = vld [vmem:[%s5 + $0x80] sm:$0xff]
        %v3944 = vld [vmem:[%s5 + $0x88] sm:$0xff]
        %v3945 = vld [vmem:[%s5 + $0x90] sm:$0xff]
        %v3946 = vld [vmem:[%s5 + $0x98] sm:$0xff]
        %v3947 = vld [vmem:[%s5 + $0xa0] sm:$0xff]
        %v3948 = vld [vmem:[%s5 + $0xa8] sm:$0xff]
        %v3949 = vld [vmem:[%s5 + $0xb0] sm:$0xff]
        %v3950 = vld [vmem:[%s5 + $0xb8] sm:$0xff]
        %v3951 = vld [vmem:[%s5 + $0xc0] sm:$0xff]
        %v3952 = vld [vmem:[%s5 + $0xc8] sm:$0xff]
        %v3953 = vld [vmem:[%s5 + $0xd0] sm:$0xff]
        %v3954 = vld [vmem:[%s5 + $0xd8] sm:$0xff]
        %v3955 = vld [vmem:[%s5 + $0xe0] sm:$0xff]
        %v3956 = vld [vmem:[%s5 + $0xe8] sm:$0xff]
        %v3957 = vld [vmem:[%s5 + $0xf0] sm:$0xff]
        %v3958 = vld [vmem:[%s5 + $0xf8] sm:$0xff]
        %v3959 = vld [vmem:[%s5 + $0x100] sm:$0xff]
        %v3960 = vld [vmem:[%s5 + $0x108] sm:$0xff]
        %v3961 = vld [vmem:[%s5 + $0x110] sm:$0xff]
        %v3962 = vld [vmem:[%s5 + $0x118] sm:$0xff]
        %v3963 = vld [vmem:[%s5 + $0x120] sm:$0xff]
        %v3964 = vld [vmem:[%s5 + $0x128] sm:$0xff]
        %v3965 = vld [vmem:[%s5 + $0x130] sm:$0xff]
        %v3966 = vld [vmem:[%s5 + $0x138] sm:$0xff]
        %v3967 = vld [vmem:[%s5 + $0x140] sm:$0xff]
        %v3968 = vld [vmem:[%s5 + $0x148] sm:$0xff]
        %v3969 = vld [vmem:[%s5 + $0x150] sm:$0xff]
        %v3970 = vld [vmem:[%s5 + $0x158] sm:$0xff]
        %v3971 = vld [vmem:[%s5 + $0x160] sm:$0xff]
        %v3972 = vld [vmem:[%s5 + $0x168] sm:$0xff]
        %v3973 = vld [vmem:[%s5 + $0x170] sm:$0xff]
        %v3974 = vld [vmem:[%s5 + $0x178] sm:$0xff]
        %v3975 = vld [vmem:[%s5 + $0x180] sm:$0xff]
        %v3976 = vld [vmem:[%s5 + $0x188] sm:$0xff]
        %v3977 = vld [vmem:[%s5 + $0x190] sm:$0xff]
        %v3978 = vld [vmem:[%s5 + $0x198] sm:$0xff]
        %v3979 = vld [vmem:[%s5 + $0x1a0] sm:$0xff]
        %v3980 = vld [vmem:[%s5 + $0x1a8] sm:$0xff]
        %v3981 = vld [vmem:[%s5 + $0x1b0] sm:$0xff]
        %v3982 = vld [vmem:[%s5 + $0x1b8] sm:$0xff]
        %v3983 = vld [vmem:[%s5 + $0x1c0] sm:$0xff]
        %v3984 = vld [vmem:[%s5 + $0x1c8] sm:$0xff]
        %v3985 = vld [vmem:[%s5 + $0x1d0] sm:$0xff]
        %v3986 = vld [vmem:[%s5 + $0x1d8] sm:$0xff]
        %v3987 = vld [vmem:[%s5 + $0x1e0] sm:$0xff]
        %v3988 = vld [vmem:[%s5 + $0x1e8] sm:$0xff]
        %v3989 = vld [vmem:[%s5 + $0x1f0] sm:$0xff]
        %v3990 = vld [vmem:[%s5 + $0x1f8] sm:$0xff]
        %v3991 = vld [vmem:[%s5 + $0x200] sm:$0xff]
        %v3992 = vld [vmem:[%s5 + $0x208] sm:$0xff]
        %v3993 = vld [vmem:[%s5 + $0x210] sm:$0xff]
        %v3994 = vld [vmem:[%s5 + $0x218] sm:$0xff]
        %v3995 = vld [vmem:[%s5 + $0x220] sm:$0xff]
        %v3996 = vld [vmem:[%s5 + $0x228] sm:$0xff]
        %v3997 = vld [vmem:[%s5 + $0x230] sm:$0xff]
        %v3998 = vld [vmem:[%s5 + $0x238] sm:$0xff]
        %v3999 = vld [vmem:[%s5 + $0x240] sm:$0xff]
        %v4000 = vld [vmem:[%s5 + $0x248] sm:$0xff]
        %v4001 = vld [vmem:[%s5 + $0x250] sm:$0xff]
        %v4002 = vld [vmem:[%s5 + $0x258] sm:$0xff]
        %v4003 = vld [vmem:[%s5 + $0x260] sm:$0xff]
        %v4004 = vld [vmem:[%s5 + $0x268] sm:$0xff]
        %v4005 = vld [vmem:[%s5 + $0x270] sm:$0xff]
        %v4006 = vld [vmem:[%s5 + $0x278] sm:$0xff]
        %v4007 = vld [vmem:[%s5 + $0x280] sm:$0xff]
        %v4008 = vld [vmem:[%s5 + $0x288] sm:$0xff]
        %v4009 = vld [vmem:[%s5 + $0x290] sm:$0xff]
        %v4010 = vld [vmem:[%s5 + $0x298] sm:$0xff]
        %v4011 = vld [vmem:[%s5 + $0x2a0] sm:$0xff]
        %v4012 = vld [vmem:[%s5 + $0x2a8] sm:$0xff]
        %v4013 = vld [vmem:[%s5 + $0x2b0] sm:$0xff]
        %v4014 = vld [vmem:[%s5 + $0x2b8] sm:$0xff]
        %v4015 = vld [vmem:[%s5 + $0x2c0] sm:$0xff]
        %v4016 = vld [vmem:[%s5 + $0x2c8] sm:$0xff]
        %v4017 = vld [vmem:[%s5 + $0x2d0] sm:$0xff]
        %v4018 = vld [vmem:[%s5 + $0x2d8] sm:$0xff]
        %v4019 = vld [vmem:[%s5 + $0x2e0] sm:$0xff]
        %v4020 = vld [vmem:[%s5 + $0x2e8] sm:$0xff]
        %v4021 = vld [vmem:[%s5 + $0x2f0] sm:$0xff]
        %v4022 = vld [vmem:[%s5 + $0x2f8] sm:$0xff]
        %v4023 = vld [vmem:[%s5 + $0x300] sm:$0xff]
        %v4024 = vld [vmem:[%s5 + $0x308] sm:$0xff]
        %v4025 = vld [vmem:[%s5 + $0x310] sm:$0xff]
        %v4026 = vld [vmem:[%s5 + $0x318] sm:$0xff]
        %v4027 = vld [vmem:[%s5 + $0x320] sm:$0xff]
        %v4028 = vld [vmem:[%s5 + $0x328] sm:$0xff]
        %v4029 = vld [vmem:[%s5 + $0x330] sm:$0xff]
        %v4030 = vld [vmem:[%s5 + $0x338] sm:$0xff]
        %v4031 = vld [vmem:[%s5 + $0x340] sm:$0xff]
        %v4032 = vld [vmem:[%s5 + $0x348] sm:$0xff]
        %v4033 = vld [vmem:[%s5 + $0x350] sm:$0xff]
        %v4034 = vld [vmem:[%s5 + $0x358] sm:$0xff]
        %v4035 = vld [vmem:[%s5 + $0x360] sm:$0xff]
        %v4036 = vld [vmem:[%s5 + $0x368] sm:$0xff]
        %v4037 = vld [vmem:[%s5 + $0x370] sm:$0xff]
        %v4038 = vld [vmem:[%s5 + $0x378] sm:$0xff]
        %v4039 = vld [vmem:[%s5 + $0x380] sm:$0xff]
        %v4040 = vld [vmem:[%s5 + $0x388] sm:$0xff]
        %v4041 = vld [vmem:[%s5 + $0x390] sm:$0xff]
        %v4042 = vld [vmem:[%s5 + $0x398] sm:$0xff]
        %v4043 = vld [vmem:[%s5 + $0x3a0] sm:$0xff]
        %v4044 = vld [vmem:[%s5 + $0x3a8] sm:$0xff]
        %v4045 = vld [vmem:[%s5 + $0x3b0] sm:$0xff]
        %v4046 = vld [vmem:[%s5 + $0x3b8] sm:$0xff]
        %v4047 = vld [vmem:[%s5 + $0x3c0] sm:$0xff]
        %v4048 = vld [vmem:[%s5 + $0x3c8] sm:$0xff]
        %v4049 = vld [vmem:[%s5 + $0x3d0] sm:$0xff]
        %v4050 = vld [vmem:[%s5 + $0x3d8] sm:$0xff]
        %v4051 = vld [vmem:[%s5 + $0x3e0] sm:$0xff]
        %v4052 = vld [vmem:[%s5 + $0x3e8] sm:$0xff]
        %v4053 = vld [vmem:[%s5 + $0x3f0] sm:$0xff]
        %v4054 = vld [vmem:[%s5 + $0x3f8] sm:$0xff]
        %v4055 = vld [vmem:[%s5 + $0x400] sm:$0xff]
        %v4056 = vld [vmem:[%s5 + $0x408] sm:$0xff]
        %v4057 = vld [vmem:[%s5 + $0x410] sm:$0xff]
        %v4058 = vld [vmem:[%s5 + $0x418] sm:$0xff]
        %v4059 = vld [vmem:[%s5 + $0x420] sm:$0xff]
        %v4060 = vld [vmem:[%s5 + $0x428] sm:$0xff]
        %v4061 = vld [vmem:[%s5 + $0x430] sm:$0xff]
        %v4062 = vld [vmem:[%s5 + $0x438] sm:$0xff]
        %v4063 = vld [vmem:[%s5 + $0x440] sm:$0xff]
        %v4064 = vld [vmem:[%s5 + $0x448] sm:$0xff]
        %v4065 = vld [vmem:[%s5 + $0x450] sm:$0xff]
        %v4066 = vld [vmem:[%s5 + $0x458] sm:$0xff]
        %v4067 = vld [vmem:[%s5 + $0x460] sm:$0xff]
        %v4068 = vld [vmem:[%s5 + $0x468] sm:$0xff]
        %v4069 = vld [vmem:[%s5 + $0x470] sm:$0xff]
        %v4070 = vld [vmem:[%s5 + $0x478] sm:$0xff]
        %v4071 = vld [vmem:[%s5 + $0x480] sm:$0xff]
        %v4072 = vld [vmem:[%s5 + $0x488] sm:$0xff]
        %v4073 = vld [vmem:[%s5 + $0x490] sm:$0xff]
        %v4074 = vld [vmem:[%s5 + $0x498] sm:$0xff]
        %v4075 = vld [vmem:[%s5 + $0x4a0] sm:$0xff]
        %v4076 = vld [vmem:[%s5 + $0x4a8] sm:$0xff]
        %v4077 = vld [vmem:[%s5 + $0x4b0] sm:$0xff]
        %v4078 = vld [vmem:[%s5 + $0x4b8] sm:$0xff]
        %v4079 = vld [vmem:[%s5 + $0x4c0] sm:$0xff]
        %v4080 = vld [vmem:[%s5 + $0x4c8] sm:$0xff]
        %v4081 = vld [vmem:[%s5 + $0x4d0] sm:$0xff]
        %v4082 = vld [vmem:[%s5 + $0x4d8] sm:$0xff]
        %v4083 = vld [vmem:[%s5 + $0x4e0] sm:$0xff]
        %v4084 = vld [vmem:[%s5 + $0x4e8] sm:$0xff]
        %v4085 = vld [vmem:[%s5 + $0x4f0] sm:$0xff]
        %v4086 = vld [vmem:[%s5 + $0x4f8] sm:$0xff]
        %v4087 = vld [vmem:[%s5 + $0x500] sm:$0xff]
        %v4088 = vld [vmem:[%s5 + $0x508] sm:$0xff]
        %v4089 = vld [vmem:[%s5 + $0x510] sm:$0xff]
        %v4090 = vld [vmem:[%s5 + $0x518] sm:$0xff]
        %v4091 = vld [vmem:[%s5 + $0x520] sm:$0xff]
        %v4092 = vld [vmem:[%s5 + $0x528] sm:$0xff]
        %v4093 = vld [vmem:[%s5 + $0x530] sm:$0xff]
        %v4094 = vld [vmem:[%s5 + $0x538] sm:$0xff]
        %v4095 = vld [vmem:[%s5 + $0x540] sm:$0xff]
        %v4096 = vld [vmem:[%s5 + $0x548] sm:$0xff]
        %v4097 = vld [vmem:[%s5 + $0x550] sm:$0xff]
        %v4098 = vld [vmem:[%s5 + $0x558] sm:$0xff]
        %v4099 = vld [vmem:[%s5 + $0x560] sm:$0xff]
        %v4100 = vld [vmem:[%s5 + $0x568] sm:$0xff]
        %v4101 = vld [vmem:[%s5 + $0x570] sm:$0xff]
        %v4102 = vld [vmem:[%s5 + $0x578] sm:$0xff]
        %v4103 = vld [vmem:[%s5 + $0x580] sm:$0xff]
        %v4104 = vld [vmem:[%s5 + $0x588] sm:$0xff]
        %v4105 = vld [vmem:[%s5 + $0x590] sm:$0xff]
        %v4106 = vld [vmem:[%s5 + $0x598] sm:$0xff]
        %v4107 = vld [vmem:[%s5 + $0x5a0] sm:$0xff]
        %v4108 = vld [vmem:[%s5 + $0x5a8] sm:$0xff]
        %v4109 = vld [vmem:[%s5 + $0x5b0] sm:$0xff]
        %v4110 = vld [vmem:[%s5 + $0x5b8] sm:$0xff]
        %v4111 = vld [vmem:[%s5 + $0x5c0] sm:$0xff]
        %v4112 = vld [vmem:[%s5 + $0x5c8] sm:$0xff]
        %v4113 = vld [vmem:[%s5 + $0x5d0] sm:$0xff]
        %v4114 = vld [vmem:[%s5 + $0x5d8] sm:$0xff]
        %v4115 = vld [vmem:[%s5 + $0x5e0] sm:$0xff]
        %v4116 = vld [vmem:[%s5 + $0x5e8] sm:$0xff]
        %v4117 = vld [vmem:[%s5 + $0x5f0] sm:$0xff]
        %v4118 = vld [vmem:[%s5 + $0x5f8] sm:$0xff]
        %v4119 = vld [vmem:[%s5 + $0x600] sm:$0xff]
        %v4120 = vld [vmem:[%s5 + $0x608] sm:$0xff]
        %v4121 = vld [vmem:[%s5 + $0x610] sm:$0xff]
        %v4122 = vld [vmem:[%s5 + $0x618] sm:$0xff]
        %v4123 = vld [vmem:[%s5 + $0x620] sm:$0xff]
        %v4124 = vld [vmem:[%s5 + $0x628] sm:$0xff]
        %v4125 = vld [vmem:[%s5 + $0x630] sm:$0xff]
        %v4126 = vld [vmem:[%s5 + $0x638] sm:$0xff]
        %v4127 = vld [vmem:[%s5 + $0x640] sm:$0xff]
        %v4128 = vld [vmem:[%s5 + $0x648] sm:$0xff]
        %v4129 = vld [vmem:[%s5 + $0x650] sm:$0xff]
        %v4130 = vld [vmem:[%s5 + $0x658] sm:$0xff]
        %v4131 = vld [vmem:[%s5 + $0x660] sm:$0xff]
        %v4132 = vld [vmem:[%s5 + $0x668] sm:$0xff]
        %v4133 = vld [vmem:[%s5 + $0x670] sm:$0xff]
        %v4134 = vld [vmem:[%s5 + $0x678] sm:$0xff]
        %v4135 = vld [vmem:[%s5 + $0x680] sm:$0xff]
        %v4136 = vld [vmem:[%s5 + $0x688] sm:$0xff]
        %v4137 = vld [vmem:[%s5 + $0x690] sm:$0xff]
        %v4138 = vld [vmem:[%s5 + $0x698] sm:$0xff]
        %v4139 = vld [vmem:[%s5 + $0x6a0] sm:$0xff]
        %v4140 = vld [vmem:[%s5 + $0x6a8] sm:$0xff]
        %v4141 = vld [vmem:[%s5 + $0x6b0] sm:$0xff]
        %v4142 = vld [vmem:[%s5 + $0x6b8] sm:$0xff]
        %v4143 = vld [vmem:[%s5 + $0x6c0] sm:$0xff]
        %v4144 = vld [vmem:[%s5 + $0x6c8] sm:$0xff]
        %v4145 = vld [vmem:[%s5 + $0x6d0] sm:$0xff]
        %v4146 = vld [vmem:[%s5 + $0x6d8] sm:$0xff]
        %v4147 = vld [vmem:[%s5 + $0x6e0] sm:$0xff]
        %v4148 = vld [vmem:[%s5 + $0x6e8] sm:$0xff]
        %v4149 = vld [vmem:[%s5 + $0x6f0] sm:$0xff]
        %v4150 = vld [vmem:[%s5 + $0x6f8] sm:$0xff]
        %v4151 = vld [vmem:[%s396] sm:$0xff]
        %v4152 = vld [vmem:[%s396 + $0x8] sm:$0xff]
        %v4153 = vld [vmem:[%s396 + $0x10] sm:$0xff]
        %v4154 = vld [vmem:[%s396 + $0x18] sm:$0xff]
        %v4155 = vld [vmem:[%s396 + $0x20] sm:$0xff]
        %v4156 = vld [vmem:[%s396 + $0x28] sm:$0xff]
        %v4157 = vld [vmem:[%s396 + $0x30] sm:$0xff]
        %v4158 = vld [vmem:[%s396 + $0x38] sm:$0xff]
        %v4159 = vld [vmem:[%s396 + $0x40] sm:$0xff]
        %v4160 = vld [vmem:[%s396 + $0x48] sm:$0xff]
        %v4161 = vld [vmem:[%s396 + $0x50] sm:$0xff]
        %v4162 = vld [vmem:[%s396 + $0x58] sm:$0xff]
        %v4163 = vld [vmem:[%s396 + $0x60] sm:$0xff]
        %v4164 = vld [vmem:[%s396 + $0x68] sm:$0xff]
        %v4165 = vld [vmem:[%s396 + $0x70] sm:$0xff]
        %v4166 = vld [vmem:[%s396 + $0x78] sm:$0xff]
        %v4167 = vld [vmem:[%s396 + $0x80] sm:$0xff]
        %v4168 = vld [vmem:[%s396 + $0x88] sm:$0xff]
        %v4169 = vld [vmem:[%s396 + $0x90] sm:$0xff]
        %v4170 = vld [vmem:[%s396 + $0x98] sm:$0xff]
        %v4171 = vld [vmem:[%s396 + $0xa0] sm:$0xff]
        %v4172 = vld [vmem:[%s396 + $0xa8] sm:$0xff]
        %v4173 = vld [vmem:[%s396 + $0xb0] sm:$0xff]
        %v4174 = vld [vmem:[%s396 + $0xb8] sm:$0xff]
        %v4175 = vld [vmem:[%s396 + $0xc0] sm:$0xff]
        %v4176 = vld [vmem:[%s396 + $0xc8] sm:$0xff]
        %v4177 = vld [vmem:[%s396 + $0xd0] sm:$0xff]
        %v4178 = vld [vmem:[%s396 + $0xd8] sm:$0xff]
        %v4179 = vld [vmem:[%s396 + $0xe0] sm:$0xff]
        %v4180 = vld [vmem:[%s396 + $0xe8] sm:$0xff]
        %v4181 = vld [vmem:[%s396 + $0xf0] sm:$0xff]
        %v4182 = vld [vmem:[%s396 + $0xf8] sm:$0xff]
        %v4183 = vpack.c.bf16 %v3710, %v3703
        %v4184 = vpack.c.bf16 %v3711, %v3704
        %v4185 = vpack.c.bf16 %v3712, %v3705
        %v4186 = vpack.c.bf16 %v3713, %v3706
        %v4187 = vpack.c.bf16 %v3714, %v3707
        %v4188 = vpack.c.bf16 %v3715, %v3708
        %v4189 = vpack.c.bf16 %v3716, %v3709
        %v4190 = vpack.c.bf16 %v3724, %v3717
        %v4191 = vpack.c.bf16 %v3725, %v3718
        %v4192 = vpack.c.bf16 %v3726, %v3719
        %v4193 = vpack.c.bf16 %v3727, %v3720
        %v4194 = vpack.c.bf16 %v3728, %v3721
        %v4195 = vpack.c.bf16 %v3729, %v3722
        %v4196 = vpack.c.bf16 %v3730, %v3723
        %v4197 = vpack.c.bf16 %v3738, %v3731
        %v4198 = vpack.c.bf16 %v3739, %v3732
        %v4199 = vpack.c.bf16 %v3740, %v3733
        %v4200 = vpack.c.bf16 %v3741, %v3734
        %v4201 = vpack.c.bf16 %v3742, %v3735
        %v4202 = vpack.c.bf16 %v3743, %v3736
        %v4203 = vpack.c.bf16 %v3744, %v3737
        %v4204 = vpack.c.bf16 %v3752, %v3745
        %v4205 = vpack.c.bf16 %v3753, %v3746
        %v4206 = vpack.c.bf16 %v3754, %v3747
        %v4207 = vpack.c.bf16 %v3755, %v3748
        %v4208 = vpack.c.bf16 %v3756, %v3749
        %v4209 = vpack.c.bf16 %v3757, %v3750
        %v4210 = vpack.c.bf16 %v3758, %v3751
        %v4211 = vpack.c.bf16 %v3766, %v3759
        %v4212 = vpack.c.bf16 %v3767, %v3760
        %v4213 = vpack.c.bf16 %v3768, %v3761
        %v4214 = vpack.c.bf16 %v3769, %v3762
        %v4215 = vpack.c.bf16 %v3770, %v3763
        %v4216 = vpack.c.bf16 %v3771, %v3764
        %v4217 = vpack.c.bf16 %v3772, %v3765
        %v4218 = vpack.c.bf16 %v3780, %v3773
        %v4219 = vpack.c.bf16 %v3781, %v3774
        %v4220 = vpack.c.bf16 %v3782, %v3775
        %v4221 = vpack.c.bf16 %v3783, %v3776
        %v4222 = vpack.c.bf16 %v3784, %v3777
        %v4223 = vpack.c.bf16 %v3785, %v3778
        %v4224 = vpack.c.bf16 %v3786, %v3779
        %v4225 = vpack.c.bf16 %v3794, %v3787
        %v4226 = vpack.c.bf16 %v3795, %v3788
        %v4227 = vpack.c.bf16 %v3796, %v3789
        %v4228 = vpack.c.bf16 %v3797, %v3790
        %v4229 = vpack.c.bf16 %v3798, %v3791
        %v4230 = vpack.c.bf16 %v3799, %v3792
        %v4231 = vpack.c.bf16 %v3800, %v3793
        %v4232 = vpack.c.bf16 %v3808, %v3801
        %v4233 = vpack.c.bf16 %v3809, %v3802
        %v4234 = vpack.c.bf16 %v3810, %v3803
        %v4235 = vpack.c.bf16 %v3811, %v3804
        %v4236 = vpack.c.bf16 %v3812, %v3805
        %v4237 = vpack.c.bf16 %v3813, %v3806
        %v4238 = vpack.c.bf16 %v3814, %v3807
        %v4239 = vpack.c.bf16 %v3822, %v3815
        %v4240 = vpack.c.bf16 %v3823, %v3816
        %v4241 = vpack.c.bf16 %v3824, %v3817
        %v4242 = vpack.c.bf16 %v3825, %v3818
        %v4243 = vpack.c.bf16 %v3826, %v3819
        %v4244 = vpack.c.bf16 %v3827, %v3820
        %v4245 = vpack.c.bf16 %v3828, %v3821
        %v4246 = vpack.c.bf16 %v3836, %v3829
        %v4247 = vpack.c.bf16 %v3837, %v3830
        %v4248 = vpack.c.bf16 %v3838, %v3831
        %v4249 = vpack.c.bf16 %v3839, %v3832
        %v4250 = vpack.c.bf16 %v3840, %v3833
        %v4251 = vpack.c.bf16 %v3841, %v3834
        %v4252 = vpack.c.bf16 %v3842, %v3835
        %v4253 = vpack.c.bf16 %v3850, %v3843
        %v4254 = vpack.c.bf16 %v3851, %v3844
        %v4255 = vpack.c.bf16 %v3852, %v3845
        %v4256 = vpack.c.bf16 %v3853, %v3846
        %v4257 = vpack.c.bf16 %v3854, %v3847
        %v4258 = vpack.c.bf16 %v3855, %v3848
        %v4259 = vpack.c.bf16 %v3856, %v3849
        %v4260 = vpack.c.bf16 %v3864, %v3857
        %v4261 = vpack.c.bf16 %v3865, %v3858
        %v4262 = vpack.c.bf16 %v3866, %v3859
        %v4263 = vpack.c.bf16 %v3867, %v3860
        %v4264 = vpack.c.bf16 %v3868, %v3861
        %v4265 = vpack.c.bf16 %v3869, %v3862
        %v4266 = vpack.c.bf16 %v3870, %v3863
        %v4267 = vpack.c.bf16 %v3878, %v3871
        %v4268 = vpack.c.bf16 %v3879, %v3872
        %v4269 = vpack.c.bf16 %v3880, %v3873
        %v4270 = vpack.c.bf16 %v3881, %v3874
        %v4271 = vpack.c.bf16 %v3882, %v3875
        %v4272 = vpack.c.bf16 %v3883, %v3876
        %v4273 = vpack.c.bf16 %v3884, %v3877
        %v4274 = vpack.c.bf16 %v3892, %v3885
        %v4275 = vpack.c.bf16 %v3893, %v3886
        %v4276 = vpack.c.bf16 %v3894, %v3887
        %v4277 = vpack.c.bf16 %v3895, %v3888
        %v4278 = vpack.c.bf16 %v3896, %v3889
        %v4279 = vpack.c.bf16 %v3897, %v3890
        %v4280 = vpack.c.bf16 %v3898, %v3891
        %v4281 = vpack.c.bf16 %v3906, %v3899
        %v4282 = vpack.c.bf16 %v3907, %v3900
        %v4283 = vpack.c.bf16 %v3908, %v3901
        %v4284 = vpack.c.bf16 %v3909, %v3902
        %v4285 = vpack.c.bf16 %v3910, %v3903
        %v4286 = vpack.c.bf16 %v3911, %v3904
        %v4287 = vpack.c.bf16 %v3912, %v3905
        %v4288 = vpack.c.bf16 %v3920, %v3913
        %v4289 = vpack.c.bf16 %v3921, %v3914
        %v4290 = vpack.c.bf16 %v3922, %v3915
        %v4291 = vpack.c.bf16 %v3923, %v3916
        %v4292 = vpack.c.bf16 %v3924, %v3917
        %v4293 = vpack.c.bf16 %v3925, %v3918
        %v4294 = vpack.c.bf16 %v3926, %v3919
        %v4327 = vunpack.c.l.b16 %v4151
        %v4328 = vunpack.c.h.b16 %v4151
        %v4329 = vunpack.c.l.b16 %v4152
        %v4330 = vunpack.c.h.b16 %v4152
        %v4331 = vunpack.c.l.b16 %v4153
        %v4332 = vunpack.c.h.b16 %v4153
        %v4333 = vunpack.c.l.b16 %v4154
        %v4334 = vunpack.c.h.b16 %v4154
        %v4335 = vunpack.c.l.b16 %v4155
        %v4336 = vunpack.c.h.b16 %v4155
        %v4337 = vunpack.c.l.b16 %v4156
        %v4338 = vunpack.c.h.b16 %v4156
        %v4339 = vunpack.c.l.b16 %v4157
        %v4340 = vunpack.c.h.b16 %v4157
        %v4341 = vunpack.c.l.b16 %v4158
        %v4342 = vunpack.c.h.b16 %v4158
        %v4343 = vunpack.c.l.b16 %v4159
        %v4344 = vunpack.c.h.b16 %v4159
        %v4345 = vunpack.c.l.b16 %v4160
        %v4346 = vunpack.c.h.b16 %v4160
        %v4347 = vunpack.c.l.b16 %v4161
        %v4348 = vunpack.c.h.b16 %v4161
        %v4349 = vunpack.c.l.b16 %v4162
        %v4350 = vunpack.c.h.b16 %v4162
        %v4351 = vunpack.c.l.b16 %v4163
        %v4352 = vunpack.c.h.b16 %v4163
        %v4353 = vunpack.c.l.b16 %v4164
        %v4354 = vunpack.c.h.b16 %v4164
        %v4355 = vunpack.c.l.b16 %v4165
        %v4356 = vunpack.c.h.b16 %v4165
        %v4357 = vunpack.c.l.b16 %v4166
        %v4358 = vunpack.c.h.b16 %v4166
        %v4359 = vunpack.c.l.b16 %v4167
        %v4360 = vunpack.c.h.b16 %v4167
        %v4361 = vunpack.c.l.b16 %v4168
        %v4362 = vunpack.c.h.b16 %v4168
        %v4363 = vunpack.c.l.b16 %v4169
        %v4364 = vunpack.c.h.b16 %v4169
        %v4365 = vunpack.c.l.b16 %v4170
        %v4366 = vunpack.c.h.b16 %v4170
        %v4367 = vunpack.c.l.b16 %v4171
        %v4368 = vunpack.c.h.b16 %v4171
        %v4369 = vunpack.c.l.b16 %v4172
        %v4370 = vunpack.c.h.b16 %v4172
        %v4371 = vunpack.c.l.b16 %v4173
        %v4372 = vunpack.c.h.b16 %v4173
        %v4373 = vunpack.c.l.b16 %v4174
        %v4374 = vunpack.c.h.b16 %v4174
        %v4375 = vunpack.c.l.b16 %v4175
        %v4376 = vunpack.c.h.b16 %v4175
        %v4377 = vunpack.c.l.b16 %v4176
        %v4378 = vunpack.c.h.b16 %v4176
        %v4379 = vunpack.c.l.b16 %v4177
        %v4380 = vunpack.c.h.b16 %v4177
        %v4381 = vunpack.c.l.b16 %v4178
        %v4382 = vunpack.c.h.b16 %v4178
        %v4383 = vunpack.c.l.b16 %v4179
        %v4384 = vunpack.c.h.b16 %v4179
        %v4385 = vunpack.c.l.b16 %v4180
        %v4386 = vunpack.c.h.b16 %v4180
        %v4387 = vunpack.c.l.b16 %v4181
        %v4388 = vunpack.c.h.b16 %v4181
        %v4389 = vunpack.c.l.b16 %v4182
        %v4390 = vunpack.c.h.b16 %v4182
        %v4391 = vpack.c.b16 %v4329, %v4327
        %v4392 = vpack.c.b16 %v4330, %v4328
        %v4393 = vpack.c.b16 %v4333, %v4331
        %v4394 = vpack.c.b16 %v4334, %v4332
        %v4395 = vpack.c.b16 %v4337, %v4335
        %v4396 = vpack.c.b16 %v4338, %v4336
        %v4397 = vpack.c.b16 %v4341, %v4339
        %v4398 = vpack.c.b16 %v4342, %v4340
        %v4399 = vpack.c.b16 %v4345, %v4343
        %v4400 = vpack.c.b16 %v4346, %v4344
        %v4401 = vpack.c.b16 %v4349, %v4347
        %v4402 = vpack.c.b16 %v4350, %v4348
        %v4403 = vpack.c.b16 %v4353, %v4351
        %v4404 = vpack.c.b16 %v4354, %v4352
        %v4405 = vpack.c.b16 %v4357, %v4355
        %v4406 = vpack.c.b16 %v4358, %v4356
        %v4407 = vpack.c.b16 %v4361, %v4359
        %v4408 = vpack.c.b16 %v4362, %v4360
        %v4409 = vpack.c.b16 %v4365, %v4363
        %v4410 = vpack.c.b16 %v4366, %v4364
        %v4411 = vpack.c.b16 %v4369, %v4367
        %v4412 = vpack.c.b16 %v4370, %v4368
        %v4413 = vpack.c.b16 %v4373, %v4371
        %v4414 = vpack.c.b16 %v4374, %v4372
        %v4415 = vpack.c.b16 %v4377, %v4375
        %v4416 = vpack.c.b16 %v4378, %v4376
        %v4417 = vpack.c.b16 %v4381, %v4379
        %v4418 = vpack.c.b16 %v4382, %v4380
        %v4419 = vpack.c.b16 %v4385, %v4383
        %v4420 = vpack.c.b16 %v4386, %v4384
        %v4421 = vpack.c.b16 %v4389, %v4387
        %v4422 = vpack.c.b16 %v4390, %v4388
        %4455 = vmatpush.bf16.msra.mxu0 %v4232
        %4456 = vmatpush.bf16.msra.mxu0 %v4225
        %4457 = vmatpush.bf16.msra.mxu0 %v4218
        %4458 = vmatpush.bf16.msra.mxu0 %v4211
        %4459 = vmatpush.bf16.msra.mxu0 %v4204
        %4460 = vmatpush.bf16.msra.mxu0 %v4197
        %4461 = vmatpush.bf16.msra.mxu0 %v4190
        %4462 = vmatpush.bf16.msra.mxu0 %v4183
        %4463 = vmatmul.bf16.gmra.mxu0 %v4391
        %v4464 = vpop.f32.mrf.mxu0
        %v4465 = vadd.f32 0.0, %v4464
        %v4466 = vpop.f32.mrf.mxu0
        %v4467 = vadd.f32 0.0, %v4466
        %4468 = vmatmul.bf16.gmra.mxu0 %v4393
        %v4469 = vpop.f32.mrf.mxu0
        %v4470 = vadd.f32 0.0, %v4469
        %v4471 = vpop.f32.mrf.mxu0
        %v4472 = vadd.f32 0.0, %v4471
        %4473 = vmatmul.bf16.gmra.mxu0 %v4395
        %v4474 = vpop.f32.mrf.mxu0
        %v4475 = vadd.f32 0.0, %v4474
        %v4476 = vpop.f32.mrf.mxu0
        %v4477 = vadd.f32 0.0, %v4476
        %4478 = vmatmul.bf16.gmra.mxu0 %v4397
        %v4479 = vpop.f32.mrf.mxu0
        %v4480 = vadd.f32 0.0, %v4479
        %v4481 = vpop.f32.mrf.mxu0
        %v4482 = vadd.f32 0.0, %v4481
        %4483 = vmatmul.bf16.gmra.mxu0 %v4399
        %v4484 = vpop.f32.mrf.mxu0
        %v4485 = vadd.f32 0.0, %v4484
        %v4486 = vpop.f32.mrf.mxu0
        %v4487 = vadd.f32 0.0, %v4486
        %4488 = vmatmul.bf16.gmra.mxu0 %v4401
        %v4489 = vpop.f32.mrf.mxu0
        %v4490 = vadd.f32 0.0, %v4489
        %v4491 = vpop.f32.mrf.mxu0
        %v4492 = vadd.f32 0.0, %v4491
        %4493 = vmatmul.bf16.gmra.mxu0 %v4403
        %v4494 = vpop.f32.mrf.mxu0
        %v4495 = vadd.f32 0.0, %v4494
        %v4496 = vpop.f32.mrf.mxu0
        %v4497 = vadd.f32 0.0, %v4496
        %4498 = vmatmul.bf16.gmra.mxu0 %v4405
        %v4499 = vpop.f32.mrf.mxu0
        %v4500 = vadd.f32 0.0, %v4499
        %v4501 = vpop.f32.mrf.mxu0
        %v4502 = vadd.f32 0.0, %v4501
        %4503 = vmatmul.bf16.gmra.mxu0 %v4407
        %v4504 = vpop.f32.mrf.mxu0
        %v4505 = vadd.f32 0.0, %v4504
        %v4506 = vpop.f32.mrf.mxu0
        %v4507 = vadd.f32 0.0, %v4506
        %4508 = vmatmul.bf16.gmra.mxu0 %v4409
        %v4509 = vpop.f32.mrf.mxu0
        %v4510 = vadd.f32 0.0, %v4509
        %v4511 = vpop.f32.mrf.mxu0
        %v4512 = vadd.f32 0.0, %v4511
        %4513 = vmatmul.bf16.gmra.mxu0 %v4411
        %v4514 = vpop.f32.mrf.mxu0
        %v4515 = vadd.f32 0.0, %v4514
        %v4516 = vpop.f32.mrf.mxu0
        %v4517 = vadd.f32 0.0, %v4516
        %4518 = vmatmul.bf16.gmra.mxu0 %v4413
        %v4519 = vpop.f32.mrf.mxu0
        %v4520 = vadd.f32 0.0, %v4519
        %v4521 = vpop.f32.mrf.mxu0
        %v4522 = vadd.f32 0.0, %v4521
        %4523 = vmatmul.bf16.gmra.mxu0 %v4415
        %v4524 = vpop.f32.mrf.mxu0
        %v4525 = vadd.f32 0.0, %v4524
        %v4526 = vpop.f32.mrf.mxu0
        %v4527 = vadd.f32 0.0, %v4526
        %4528 = vmatmul.bf16.gmra.mxu0 %v4417
        %v4529 = vpop.f32.mrf.mxu0
        %v4530 = vadd.f32 0.0, %v4529
        %v4531 = vpop.f32.mrf.mxu0
        %v4532 = vadd.f32 0.0, %v4531
        %4533 = vmatmul.bf16.gmra.mxu0 %v4419
        %v4534 = vpop.f32.mrf.mxu0
        %v4535 = vadd.f32 0.0, %v4534
        %v4536 = vpop.f32.mrf.mxu0
        %v4537 = vadd.f32 0.0, %v4536
        %4538 = vmatmul.bf16.gmra.mxu0 %v4421
        %v4539 = vpop.f32.mrf.mxu0
        %v4540 = vadd.f32 0.0, %v4539
        %v4541 = vpop.f32.mrf.mxu0
        %v4542 = vadd.f32 0.0, %v4541
        %4543 = vdwg.mxu0
        %4544 = vmatpush.bf16.msra.mxu0 %v4288
        %4545 = vmatpush.bf16.msra.mxu0 %v4281
        %4546 = vmatpush.bf16.msra.mxu0 %v4274
        %4547 = vmatpush.bf16.msra.mxu0 %v4267
        %4548 = vmatpush.bf16.msra.mxu0 %v4260
        %4549 = vmatpush.bf16.msra.mxu0 %v4253
        %4550 = vmatpush.bf16.msra.mxu0 %v4246
        %4551 = vmatpush.bf16.msra.mxu0 %v4239
        %4552 = vmatmul.bf16.gmra.mxu0 %v4392
        %v4553 = vpop.f32.mrf.mxu0
        %v4554 = vadd.f32 %v4465, %v4553
        %v4555 = vpop.f32.mrf.mxu0
        %v4556 = vadd.f32 %v4467, %v4555
        %4557 = vmatmul.bf16.gmra.mxu0 %v4394
        %v4558 = vpop.f32.mrf.mxu0
        %v4559 = vadd.f32 %v4470, %v4558
        %v4560 = vpop.f32.mrf.mxu0
        %v4561 = vadd.f32 %v4472, %v4560
        %4562 = vmatmul.bf16.gmra.mxu0 %v4396
        %v4563 = vpop.f32.mrf.mxu0
        %v4564 = vadd.f32 %v4475, %v4563
        %v4565 = vpop.f32.mrf.mxu0
        %v4566 = vadd.f32 %v4477, %v4565
        %4567 = vmatmul.bf16.gmra.mxu0 %v4398
        %v4568 = vpop.f32.mrf.mxu0
        %v4569 = vadd.f32 %v4480, %v4568
        %v4570 = vpop.f32.mrf.mxu0
        %v4571 = vadd.f32 %v4482, %v4570
        %4572 = vmatmul.bf16.gmra.mxu0 %v4400
        %v4573 = vpop.f32.mrf.mxu0
        %v4574 = vadd.f32 %v4485, %v4573
        %v4575 = vpop.f32.mrf.mxu0
        %v4576 = vadd.f32 %v4487, %v4575
        %4577 = vmatmul.bf16.gmra.mxu0 %v4402
        %v4578 = vpop.f32.mrf.mxu0
        %v4579 = vadd.f32 %v4490, %v4578
        %v4580 = vpop.f32.mrf.mxu0
        %v4581 = vadd.f32 %v4492, %v4580
        %4582 = vmatmul.bf16.gmra.mxu0 %v4404
        %v4583 = vpop.f32.mrf.mxu0
        %v4584 = vadd.f32 %v4495, %v4583
        %v4585 = vpop.f32.mrf.mxu0
        %v4586 = vadd.f32 %v4497, %v4585
        %4587 = vmatmul.bf16.gmra.mxu0 %v4406
        %v4588 = vpop.f32.mrf.mxu0
        %v4589 = vadd.f32 %v4500, %v4588
        %v4590 = vpop.f32.mrf.mxu0
        %v4591 = vadd.f32 %v4502, %v4590
        %4592 = vmatmul.bf16.gmra.mxu0 %v4408
        %v4593 = vpop.f32.mrf.mxu0
        %v4594 = vadd.f32 %v4505, %v4593
        %v4595 = vpop.f32.mrf.mxu0
        %v4596 = vadd.f32 %v4507, %v4595
        %4597 = vmatmul.bf16.gmra.mxu0 %v4410
        %v4598 = vpop.f32.mrf.mxu0
        %v4599 = vadd.f32 %v4510, %v4598
        %v4600 = vpop.f32.mrf.mxu0
        %v4601 = vadd.f32 %v4512, %v4600
        %4602 = vmatmul.bf16.gmra.mxu0 %v4412
        %v4603 = vpop.f32.mrf.mxu0
        %v4604 = vadd.f32 %v4515, %v4603
        %v4605 = vpop.f32.mrf.mxu0
        %v4606 = vadd.f32 %v4517, %v4605
        %4607 = vmatmul.bf16.gmra.mxu0 %v4414
        %v4608 = vpop.f32.mrf.mxu0
        %v4609 = vadd.f32 %v4520, %v4608
        %v4610 = vpop.f32.mrf.mxu0
        %v4611 = vadd.f32 %v4522, %v4610
        %4612 = vmatmul.bf16.gmra.mxu0 %v4416
        %v4613 = vpop.f32.mrf.mxu0
        %v4614 = vadd.f32 %v4525, %v4613
        %v4615 = vpop.f32.mrf.mxu0
        %v4616 = vadd.f32 %v4527, %v4615
        %4617 = vmatmul.bf16.gmra.mxu0 %v4418
        %v4618 = vpop.f32.mrf.mxu0
        %v4619 = vadd.f32 %v4530, %v4618
        %v4620 = vpop.f32.mrf.mxu0
        %v4621 = vadd.f32 %v4532, %v4620
        %4622 = vmatmul.bf16.gmra.mxu0 %v4420
        %v4623 = vpop.f32.mrf.mxu0
        %v4624 = vadd.f32 %v4535, %v4623
        %v4625 = vpop.f32.mrf.mxu0
        %v4626 = vadd.f32 %v4537, %v4625
        %4627 = vmatmul.bf16.gmra.mxu0 %v4422
        %v4628 = vpop.f32.mrf.mxu0
        %v4629 = vadd.f32 %v4540, %v4628
        %v4630 = vpop.f32.mrf.mxu0
        %v4631 = vadd.f32 %v4542, %v4630
        %4632 = vdwg.mxu0
        %4633 = vmatpush.bf16.msra.mxu0 %v4233
        %4634 = vmatpush.bf16.msra.mxu0 %v4226
        %4635 = vmatpush.bf16.msra.mxu0 %v4219
        %4636 = vmatpush.bf16.msra.mxu0 %v4212
        %4637 = vmatpush.bf16.msra.mxu0 %v4205
        %4638 = vmatpush.bf16.msra.mxu0 %v4198
        %4639 = vmatpush.bf16.msra.mxu0 %v4191
        %4640 = vmatpush.bf16.msra.mxu0 %v4184
        %4641 = vmatmul.bf16.gmra.mxu0 %v4391
        %v4642 = vpop.f32.mrf.mxu0
        %v4643 = vadd.f32 0.0, %v4642
        %v4644 = vpop.f32.mrf.mxu0
        %v4645 = vadd.f32 0.0, %v4644
        %4646 = vmatmul.bf16.gmra.mxu0 %v4393
        %v4647 = vpop.f32.mrf.mxu0
        %v4648 = vadd.f32 0.0, %v4647
        %v4649 = vpop.f32.mrf.mxu0
        %v4650 = vadd.f32 0.0, %v4649
        %4651 = vmatmul.bf16.gmra.mxu0 %v4395
        %v4652 = vpop.f32.mrf.mxu0
        %v4653 = vadd.f32 0.0, %v4652
        %v4654 = vpop.f32.mrf.mxu0
        %v4655 = vadd.f32 0.0, %v4654
        %4656 = vmatmul.bf16.gmra.mxu0 %v4397
        %v4657 = vpop.f32.mrf.mxu0
        %v4658 = vadd.f32 0.0, %v4657
        %v4659 = vpop.f32.mrf.mxu0
        %v4660 = vadd.f32 0.0, %v4659
        %4661 = vmatmul.bf16.gmra.mxu0 %v4399
        %v4662 = vpop.f32.mrf.mxu0
        %v4663 = vadd.f32 0.0, %v4662
        %v4664 = vpop.f32.mrf.mxu0
        %v4665 = vadd.f32 0.0, %v4664
        %4666 = vmatmul.bf16.gmra.mxu0 %v4401
        %v4667 = vpop.f32.mrf.mxu0
        %v4668 = vadd.f32 0.0, %v4667
        %v4669 = vpop.f32.mrf.mxu0
        %v4670 = vadd.f32 0.0, %v4669
        %4671 = vmatmul.bf16.gmra.mxu0 %v4403
        %v4672 = vpop.f32.mrf.mxu0
        %v4673 = vadd.f32 0.0, %v4672
        %v4674 = vpop.f32.mrf.mxu0
        %v4675 = vadd.f32 0.0, %v4674
        %4676 = vmatmul.bf16.gmra.mxu0 %v4405
        %v4677 = vpop.f32.mrf.mxu0
        %v4678 = vadd.f32 0.0, %v4677
        %v4679 = vpop.f32.mrf.mxu0
        %v4680 = vadd.f32 0.0, %v4679
        %4681 = vmatmul.bf16.gmra.mxu0 %v4407
        %v4682 = vpop.f32.mrf.mxu0
        %v4683 = vadd.f32 0.0, %v4682
        %v4684 = vpop.f32.mrf.mxu0
        %v4685 = vadd.f32 0.0, %v4684
        %4686 = vmatmul.bf16.gmra.mxu0 %v4409
        %v4687 = vpop.f32.mrf.mxu0
        %v4688 = vadd.f32 0.0, %v4687
        %v4689 = vpop.f32.mrf.mxu0
        %v4690 = vadd.f32 0.0, %v4689
        %4691 = vmatmul.bf16.gmra.mxu0 %v4411
        %v4692 = vpop.f32.mrf.mxu0
        %v4693 = vadd.f32 0.0, %v4692
        %v4694 = vpop.f32.mrf.mxu0
        %v4695 = vadd.f32 0.0, %v4694
        %4696 = vmatmul.bf16.gmra.mxu0 %v4413
        %v4697 = vpop.f32.mrf.mxu0
        %v4698 = vadd.f32 0.0, %v4697
        %v4699 = vpop.f32.mrf.mxu0
        %v4700 = vadd.f32 0.0, %v4699
        %4701 = vmatmul.bf16.gmra.mxu0 %v4415
        %v4702 = vpop.f32.mrf.mxu0
        %v4703 = vadd.f32 0.0, %v4702
        %v4704 = vpop.f32.mrf.mxu0
        %v4705 = vadd.f32 0.0, %v4704
        %4706 = vmatmul.bf16.gmra.mxu0 %v4417
        %v4707 = vpop.f32.mrf.mxu0
        %v4708 = vadd.f32 0.0, %v4707
        %v4709 = vpop.f32.mrf.mxu0
        %v4710 = vadd.f32 0.0, %v4709
        %4711 = vmatmul.bf16.gmra.mxu0 %v4419
        %v4712 = vpop.f32.mrf.mxu0
        %v4713 = vadd.f32 0.0, %v4712
        %v4714 = vpop.f32.mrf.mxu0
        %v4715 = vadd.f32 0.0, %v4714
        %4716 = vmatmul.bf16.gmra.mxu0 %v4421
        %v4717 = vpop.f32.mrf.mxu0
        %v4718 = vadd.f32 0.0, %v4717
        %v4719 = vpop.f32.mrf.mxu0
        %v4720 = vadd.f32 0.0, %v4719
        %4721 = vdwg.mxu0
        %4722 = vmatpush.bf16.msra.mxu0 %v4289
        %4723 = vmatpush.bf16.msra.mxu0 %v4282
        %4724 = vmatpush.bf16.msra.mxu0 %v4275
        %4725 = vmatpush.bf16.msra.mxu0 %v4268
        %4726 = vmatpush.bf16.msra.mxu0 %v4261
        %4727 = vmatpush.bf16.msra.mxu0 %v4254
        %4728 = vmatpush.bf16.msra.mxu0 %v4247
        %4729 = vmatpush.bf16.msra.mxu0 %v4240
        %4730 = vmatmul.bf16.gmra.mxu0 %v4392
        %v4731 = vpop.f32.mrf.mxu0
        %v4732 = vadd.f32 %v4643, %v4731
        %v4733 = vpop.f32.mrf.mxu0
        %v4734 = vadd.f32 %v4645, %v4733
        %4735 = vmatmul.bf16.gmra.mxu0 %v4394
        %v4736 = vpop.f32.mrf.mxu0
        %v4737 = vadd.f32 %v4648, %v4736
        %v4738 = vpop.f32.mrf.mxu0
        %v4739 = vadd.f32 %v4650, %v4738
        %4740 = vmatmul.bf16.gmra.mxu0 %v4396
        %v4741 = vpop.f32.mrf.mxu0
        %v4742 = vadd.f32 %v4653, %v4741
        %v4743 = vpop.f32.mrf.mxu0
        %v4744 = vadd.f32 %v4655, %v4743
        %4745 = vmatmul.bf16.gmra.mxu0 %v4398
        %v4746 = vpop.f32.mrf.mxu0
        %v4747 = vadd.f32 %v4658, %v4746
        %v4748 = vpop.f32.mrf.mxu0
        %v4749 = vadd.f32 %v4660, %v4748
        %4750 = vmatmul.bf16.gmra.mxu0 %v4400
        %v4751 = vpop.f32.mrf.mxu0
        %v4752 = vadd.f32 %v4663, %v4751
        %v4753 = vpop.f32.mrf.mxu0
        %v4754 = vadd.f32 %v4665, %v4753
        %4755 = vmatmul.bf16.gmra.mxu0 %v4402
        %v4756 = vpop.f32.mrf.mxu0
        %v4757 = vadd.f32 %v4668, %v4756
        %v4758 = vpop.f32.mrf.mxu0
        %v4759 = vadd.f32 %v4670, %v4758
        %4760 = vmatmul.bf16.gmra.mxu0 %v4404
        %v4761 = vpop.f32.mrf.mxu0
        %v4762 = vadd.f32 %v4673, %v4761
        %v4763 = vpop.f32.mrf.mxu0
        %v4764 = vadd.f32 %v4675, %v4763
        %4765 = vmatmul.bf16.gmra.mxu0 %v4406
        %v4766 = vpop.f32.mrf.mxu0
        %v4767 = vadd.f32 %v4678, %v4766
        %v4768 = vpop.f32.mrf.mxu0
        %v4769 = vadd.f32 %v4680, %v4768
        %4770 = vmatmul.bf16.gmra.mxu0 %v4408
        %v4771 = vpop.f32.mrf.mxu0
        %v4772 = vadd.f32 %v4683, %v4771
        %v4773 = vpop.f32.mrf.mxu0
        %v4774 = vadd.f32 %v4685, %v4773
        %4775 = vmatmul.bf16.gmra.mxu0 %v4410
        %v4776 = vpop.f32.mrf.mxu0
        %v4777 = vadd.f32 %v4688, %v4776
        %v4778 = vpop.f32.mrf.mxu0
        %v4779 = vadd.f32 %v4690, %v4778
        %4780 = vmatmul.bf16.gmra.mxu0 %v4412
        %v4781 = vpop.f32.mrf.mxu0
        %v4782 = vadd.f32 %v4693, %v4781
        %v4783 = vpop.f32.mrf.mxu0
        %v4784 = vadd.f32 %v4695, %v4783
        %4785 = vmatmul.bf16.gmra.mxu0 %v4414
        %v4786 = vpop.f32.mrf.mxu0
        %v4787 = vadd.f32 %v4698, %v4786
        %v4788 = vpop.f32.mrf.mxu0
        %v4789 = vadd.f32 %v4700, %v4788
        %4790 = vmatmul.bf16.gmra.mxu0 %v4416
        %v4791 = vpop.f32.mrf.mxu0
        %v4792 = vadd.f32 %v4703, %v4791
        %v4793 = vpop.f32.mrf.mxu0
        %v4794 = vadd.f32 %v4705, %v4793
        %4795 = vmatmul.bf16.gmra.mxu0 %v4418
        %v4796 = vpop.f32.mrf.mxu0
        %v4797 = vadd.f32 %v4708, %v4796
        %v4798 = vpop.f32.mrf.mxu0
        %v4799 = vadd.f32 %v4710, %v4798
        %4800 = vmatmul.bf16.gmra.mxu0 %v4420
        %v4801 = vpop.f32.mrf.mxu0
        %v4802 = vadd.f32 %v4713, %v4801
        %v4803 = vpop.f32.mrf.mxu0
        %v4804 = vadd.f32 %v4715, %v4803
        %4805 = vmatmul.bf16.gmra.mxu0 %v4422
        %v4806 = vpop.f32.mrf.mxu0
        %v4807 = vadd.f32 %v4718, %v4806
        %v4808 = vpop.f32.mrf.mxu0
        %v4809 = vadd.f32 %v4720, %v4808
        %4810 = vdwg.mxu0
        %4811 = vmatpush.bf16.msra.mxu0 %v4234
        %4812 = vmatpush.bf16.msra.mxu0 %v4227
        %4813 = vmatpush.bf16.msra.mxu0 %v4220
        %4814 = vmatpush.bf16.msra.mxu0 %v4213
        %4815 = vmatpush.bf16.msra.mxu0 %v4206
        %4816 = vmatpush.bf16.msra.mxu0 %v4199
        %4817 = vmatpush.bf16.msra.mxu0 %v4192
        %4818 = vmatpush.bf16.msra.mxu0 %v4185
        %4819 = vmatmul.bf16.gmra.mxu0 %v4391
        %v4820 = vpop.f32.mrf.mxu0
        %v4821 = vadd.f32 0.0, %v4820
        %v4822 = vpop.f32.mrf.mxu0
        %v4823 = vadd.f32 0.0, %v4822
        %4824 = vmatmul.bf16.gmra.mxu0 %v4393
        %v4825 = vpop.f32.mrf.mxu0
        %v4826 = vadd.f32 0.0, %v4825
        %v4827 = vpop.f32.mrf.mxu0
        %v4828 = vadd.f32 0.0, %v4827
        %4829 = vmatmul.bf16.gmra.mxu0 %v4395
        %v4830 = vpop.f32.mrf.mxu0
        %v4831 = vadd.f32 0.0, %v4830
        %v4832 = vpop.f32.mrf.mxu0
        %v4833 = vadd.f32 0.0, %v4832
        %4834 = vmatmul.bf16.gmra.mxu0 %v4397
        %v4835 = vpop.f32.mrf.mxu0
        %v4836 = vadd.f32 0.0, %v4835
        %v4837 = vpop.f32.mrf.mxu0
        %v4838 = vadd.f32 0.0, %v4837
        %4839 = vmatmul.bf16.gmra.mxu0 %v4399
        %v4840 = vpop.f32.mrf.mxu0
        %v4841 = vadd.f32 0.0, %v4840
        %v4842 = vpop.f32.mrf.mxu0
        %v4843 = vadd.f32 0.0, %v4842
        %4844 = vmatmul.bf16.gmra.mxu0 %v4401
        %v4845 = vpop.f32.mrf.mxu0
        %v4846 = vadd.f32 0.0, %v4845
        %v4847 = vpop.f32.mrf.mxu0
        %v4848 = vadd.f32 0.0, %v4847
        %4849 = vmatmul.bf16.gmra.mxu0 %v4403
        %v4850 = vpop.f32.mrf.mxu0
        %v4851 = vadd.f32 0.0, %v4850
        %v4852 = vpop.f32.mrf.mxu0
        %v4853 = vadd.f32 0.0, %v4852
        %4854 = vmatmul.bf16.gmra.mxu0 %v4405
        %v4855 = vpop.f32.mrf.mxu0
        %v4856 = vadd.f32 0.0, %v4855
        %v4857 = vpop.f32.mrf.mxu0
        %v4858 = vadd.f32 0.0, %v4857
        %4859 = vmatmul.bf16.gmra.mxu0 %v4407
        %v4860 = vpop.f32.mrf.mxu0
        %v4861 = vadd.f32 0.0, %v4860
        %v4862 = vpop.f32.mrf.mxu0
        %v4863 = vadd.f32 0.0, %v4862
        %4864 = vmatmul.bf16.gmra.mxu0 %v4409
        %v4865 = vpop.f32.mrf.mxu0
        %v4866 = vadd.f32 0.0, %v4865
        %v4867 = vpop.f32.mrf.mxu0
        %v4868 = vadd.f32 0.0, %v4867
        %4869 = vmatmul.bf16.gmra.mxu0 %v4411
        %v4870 = vpop.f32.mrf.mxu0
        %v4871 = vadd.f32 0.0, %v4870
        %v4872 = vpop.f32.mrf.mxu0
        %v4873 = vadd.f32 0.0, %v4872
        %4874 = vmatmul.bf16.gmra.mxu0 %v4413
        %v4875 = vpop.f32.mrf.mxu0
        %v4876 = vadd.f32 0.0, %v4875
        %v4877 = vpop.f32.mrf.mxu0
        %v4878 = vadd.f32 0.0, %v4877
        %4879 = vmatmul.bf16.gmra.mxu0 %v4415
        %v4880 = vpop.f32.mrf.mxu0
        %v4881 = vadd.f32 0.0, %v4880
        %v4882 = vpop.f32.mrf.mxu0
        %v4883 = vadd.f32 0.0, %v4882
        %4884 = vmatmul.bf16.gmra.mxu0 %v4417
        %v4885 = vpop.f32.mrf.mxu0
        %v4886 = vadd.f32 0.0, %v4885
        %v4887 = vpop.f32.mrf.mxu0
        %v4888 = vadd.f32 0.0, %v4887
        %4889 = vmatmul.bf16.gmra.mxu0 %v4419
        %v4890 = vpop.f32.mrf.mxu0
        %v4891 = vadd.f32 0.0, %v4890
        %v4892 = vpop.f32.mrf.mxu0
        %v4893 = vadd.f32 0.0, %v4892
        %4894 = vmatmul.bf16.gmra.mxu0 %v4421
        %v4895 = vpop.f32.mrf.mxu0
        %v4896 = vadd.f32 0.0, %v4895
        %v4897 = vpop.f32.mrf.mxu0
        %v4898 = vadd.f32 0.0, %v4897
        %4899 = vdwg.mxu0
        %4900 = vmatpush.bf16.msra.mxu0 %v4290
        %4901 = vmatpush.bf16.msra.mxu0 %v4283
        %4902 = vmatpush.bf16.msra.mxu0 %v4276
        %4903 = vmatpush.bf16.msra.mxu0 %v4269
        %4904 = vmatpush.bf16.msra.mxu0 %v4262
        %4905 = vmatpush.bf16.msra.mxu0 %v4255
        %4906 = vmatpush.bf16.msra.mxu0 %v4248
        %4907 = vmatpush.bf16.msra.mxu0 %v4241
        %4908 = vmatmul.bf16.gmra.mxu0 %v4392
        %v4909 = vpop.f32.mrf.mxu0
        %v4910 = vadd.f32 %v4821, %v4909
        %v4911 = vpop.f32.mrf.mxu0
        %v4912 = vadd.f32 %v4823, %v4911
        %4913 = vmatmul.bf16.gmra.mxu0 %v4394
        %v4914 = vpop.f32.mrf.mxu0
        %v4915 = vadd.f32 %v4826, %v4914
        %v4916 = vpop.f32.mrf.mxu0
        %v4917 = vadd.f32 %v4828, %v4916
        %4918 = vmatmul.bf16.gmra.mxu0 %v4396
        %v4919 = vpop.f32.mrf.mxu0
        %v4920 = vadd.f32 %v4831, %v4919
        %v4921 = vpop.f32.mrf.mxu0
        %v4922 = vadd.f32 %v4833, %v4921
        %4923 = vmatmul.bf16.gmra.mxu0 %v4398
        %v4924 = vpop.f32.mrf.mxu0
        %v4925 = vadd.f32 %v4836, %v4924
        %v4926 = vpop.f32.mrf.mxu0
        %v4927 = vadd.f32 %v4838, %v4926
        %4928 = vmatmul.bf16.gmra.mxu0 %v4400
        %v4929 = vpop.f32.mrf.mxu0
        %v4930 = vadd.f32 %v4841, %v4929
        %v4931 = vpop.f32.mrf.mxu0
        %v4932 = vadd.f32 %v4843, %v4931
        %4933 = vmatmul.bf16.gmra.mxu0 %v4402
        %v4934 = vpop.f32.mrf.mxu0
        %v4935 = vadd.f32 %v4846, %v4934
        %v4936 = vpop.f32.mrf.mxu0
        %v4937 = vadd.f32 %v4848, %v4936
        %4938 = vmatmul.bf16.gmra.mxu0 %v4404
        %v4939 = vpop.f32.mrf.mxu0
        %v4940 = vadd.f32 %v4851, %v4939
        %v4941 = vpop.f32.mrf.mxu0
        %v4942 = vadd.f32 %v4853, %v4941
        %4943 = vmatmul.bf16.gmra.mxu0 %v4406
        %v4944 = vpop.f32.mrf.mxu0
        %v4945 = vadd.f32 %v4856, %v4944
        %v4946 = vpop.f32.mrf.mxu0
        %v4947 = vadd.f32 %v4858, %v4946
        %4948 = vmatmul.bf16.gmra.mxu0 %v4408
        %v4949 = vpop.f32.mrf.mxu0
        %v4950 = vadd.f32 %v4861, %v4949
        %v4951 = vpop.f32.mrf.mxu0
        %v4952 = vadd.f32 %v4863, %v4951
        %4953 = vmatmul.bf16.gmra.mxu0 %v4410
        %v4954 = vpop.f32.mrf.mxu0
        %v4955 = vadd.f32 %v4866, %v4954
        %v4956 = vpop.f32.mrf.mxu0
        %v4957 = vadd.f32 %v4868, %v4956
        %4958 = vmatmul.bf16.gmra.mxu0 %v4412
        %v4959 = vpop.f32.mrf.mxu0
        %v4960 = vadd.f32 %v4871, %v4959
        %v4961 = vpop.f32.mrf.mxu0
        %v4962 = vadd.f32 %v4873, %v4961
        %4963 = vmatmul.bf16.gmra.mxu0 %v4414
        %v4964 = vpop.f32.mrf.mxu0
        %v4965 = vadd.f32 %v4876, %v4964
        %v4966 = vpop.f32.mrf.mxu0
        %v4967 = vadd.f32 %v4878, %v4966
        %4968 = vmatmul.bf16.gmra.mxu0 %v4416
        %v4969 = vpop.f32.mrf.mxu0
        %v4970 = vadd.f32 %v4881, %v4969
        %v4971 = vpop.f32.mrf.mxu0
        %v4972 = vadd.f32 %v4883, %v4971
        %4973 = vmatmul.bf16.gmra.mxu0 %v4418
        %v4974 = vpop.f32.mrf.mxu0
        %v4975 = vadd.f32 %v4886, %v4974
        %v4976 = vpop.f32.mrf.mxu0
        %v4977 = vadd.f32 %v4888, %v4976
        %4978 = vmatmul.bf16.gmra.mxu0 %v4420
        %v4979 = vpop.f32.mrf.mxu0
        %v4980 = vadd.f32 %v4891, %v4979
        %v4981 = vpop.f32.mrf.mxu0
        %v4982 = vadd.f32 %v4893, %v4981
        %4983 = vmatmul.bf16.gmra.mxu0 %v4422
        %v4984 = vpop.f32.mrf.mxu0
        %v4985 = vadd.f32 %v4896, %v4984
        %v4986 = vpop.f32.mrf.mxu0
        %v4987 = vadd.f32 %v4898, %v4986
        %4988 = vdwg.mxu0
        %4989 = vmatpush.bf16.msra.mxu0 %v4235
        %4990 = vmatpush.bf16.msra.mxu0 %v4228
        %4991 = vmatpush.bf16.msra.mxu0 %v4221
        %4992 = vmatpush.bf16.msra.mxu0 %v4214
        %4993 = vmatpush.bf16.msra.mxu0 %v4207
        %4994 = vmatpush.bf16.msra.mxu0 %v4200
        %4995 = vmatpush.bf16.msra.mxu0 %v4193
        %4996 = vmatpush.bf16.msra.mxu0 %v4186
        %4997 = vmatmul.bf16.gmra.mxu0 %v4391
        %v4998 = vpop.f32.mrf.mxu0
        %v4999 = vadd.f32 0.0, %v4998
        %v5000 = vpop.f32.mrf.mxu0
        %v5001 = vadd.f32 0.0, %v5000
        %5002 = vmatmul.bf16.gmra.mxu0 %v4393
        %v5003 = vpop.f32.mrf.mxu0
        %v5004 = vadd.f32 0.0, %v5003
        %v5005 = vpop.f32.mrf.mxu0
        %v5006 = vadd.f32 0.0, %v5005
        %5007 = vmatmul.bf16.gmra.mxu0 %v4395
        %v5008 = vpop.f32.mrf.mxu0
        %v5009 = vadd.f32 0.0, %v5008
        %v5010 = vpop.f32.mrf.mxu0
        %v5011 = vadd.f32 0.0, %v5010
        %5012 = vmatmul.bf16.gmra.mxu0 %v4397
        %v5013 = vpop.f32.mrf.mxu0
        %v5014 = vadd.f32 0.0, %v5013
        %v5015 = vpop.f32.mrf.mxu0
        %v5016 = vadd.f32 0.0, %v5015
        %5017 = vmatmul.bf16.gmra.mxu0 %v4399
        %v5018 = vpop.f32.mrf.mxu0
        %v5019 = vadd.f32 0.0, %v5018
        %v5020 = vpop.f32.mrf.mxu0
        %v5021 = vadd.f32 0.0, %v5020
        %5022 = vmatmul.bf16.gmra.mxu0 %v4401
        %v5023 = vpop.f32.mrf.mxu0
        %v5024 = vadd.f32 0.0, %v5023
        %v5025 = vpop.f32.mrf.mxu0
        %v5026 = vadd.f32 0.0, %v5025
        %5027 = vmatmul.bf16.gmra.mxu0 %v4403
        %v5028 = vpop.f32.mrf.mxu0
        %v5029 = vadd.f32 0.0, %v5028
        %v5030 = vpop.f32.mrf.mxu0
        %v5031 = vadd.f32 0.0, %v5030
        %5032 = vmatmul.bf16.gmra.mxu0 %v4405
        %v5033 = vpop.f32.mrf.mxu0
        %v5034 = vadd.f32 0.0, %v5033
        %v5035 = vpop.f32.mrf.mxu0
        %v5036 = vadd.f32 0.0, %v5035
        %5037 = vmatmul.bf16.gmra.mxu0 %v4407
        %v5038 = vpop.f32.mrf.mxu0
        %v5039 = vadd.f32 0.0, %v5038
        %v5040 = vpop.f32.mrf.mxu0
        %v5041 = vadd.f32 0.0, %v5040
        %5042 = vmatmul.bf16.gmra.mxu0 %v4409
        %v5043 = vpop.f32.mrf.mxu0
        %v5044 = vadd.f32 0.0, %v5043
        %v5045 = vpop.f32.mrf.mxu0
        %v5046 = vadd.f32 0.0, %v5045
        %5047 = vmatmul.bf16.gmra.mxu0 %v4411
        %v5048 = vpop.f32.mrf.mxu0
        %v5049 = vadd.f32 0.0, %v5048
        %v5050 = vpop.f32.mrf.mxu0
        %v5051 = vadd.f32 0.0, %v5050
        %5052 = vmatmul.bf16.gmra.mxu0 %v4413
        %v5053 = vpop.f32.mrf.mxu0
        %v5054 = vadd.f32 0.0, %v5053
        %v5055 = vpop.f32.mrf.mxu0
        %v5056 = vadd.f32 0.0, %v5055
        %5057 = vmatmul.bf16.gmra.mxu0 %v4415
        %v5058 = vpop.f32.mrf.mxu0
        %v5059 = vadd.f32 0.0, %v5058
        %v5060 = vpop.f32.mrf.mxu0
        %v5061 = vadd.f32 0.0, %v5060
        %5062 = vmatmul.bf16.gmra.mxu0 %v4417
        %v5063 = vpop.f32.mrf.mxu0
        %v5064 = vadd.f32 0.0, %v5063
        %v5065 = vpop.f32.mrf.mxu0
        %v5066 = vadd.f32 0.0, %v5065
        %5067 = vmatmul.bf16.gmra.mxu0 %v4419
        %v5068 = vpop.f32.mrf.mxu0
        %v5069 = vadd.f32 0.0, %v5068
        %v5070 = vpop.f32.mrf.mxu0
        %v5071 = vadd.f32 0.0, %v5070
        %5072 = vmatmul.bf16.gmra.mxu0 %v4421
        %v5073 = vpop.f32.mrf.mxu0
        %v5074 = vadd.f32 0.0, %v5073
        %v5075 = vpop.f32.mrf.mxu0
        %v5076 = vadd.f32 0.0, %v5075
        %5077 = vdwg.mxu0
        %5078 = vmatpush.bf16.msra.mxu0 %v4291
        %5079 = vmatpush.bf16.msra.mxu0 %v4284
        %5080 = vmatpush.bf16.msra.mxu0 %v4277
        %5081 = vmatpush.bf16.msra.mxu0 %v4270
        %5082 = vmatpush.bf16.msra.mxu0 %v4263
        %5083 = vmatpush.bf16.msra.mxu0 %v4256
        %5084 = vmatpush.bf16.msra.mxu0 %v4249
        %5085 = vmatpush.bf16.msra.mxu0 %v4242
        %5086 = vmatmul.bf16.gmra.mxu0 %v4392
        %v5087 = vpop.f32.mrf.mxu0
        %v5088 = vadd.f32 %v4999, %v5087
        %v5089 = vpop.f32.mrf.mxu0
        %v5090 = vadd.f32 %v5001, %v5089
        %5091 = vmatmul.bf16.gmra.mxu0 %v4394
        %v5092 = vpop.f32.mrf.mxu0
        %v5093 = vadd.f32 %v5004, %v5092
        %v5094 = vpop.f32.mrf.mxu0
        %v5095 = vadd.f32 %v5006, %v5094
        %5096 = vmatmul.bf16.gmra.mxu0 %v4396
        %v5097 = vpop.f32.mrf.mxu0
        %v5098 = vadd.f32 %v5009, %v5097
        %v5099 = vpop.f32.mrf.mxu0
        %v5100 = vadd.f32 %v5011, %v5099
        %5101 = vmatmul.bf16.gmra.mxu0 %v4398
        %v5102 = vpop.f32.mrf.mxu0
        %v5103 = vadd.f32 %v5014, %v5102
        %v5104 = vpop.f32.mrf.mxu0
        %v5105 = vadd.f32 %v5016, %v5104
        %5106 = vmatmul.bf16.gmra.mxu0 %v4400
        %v5107 = vpop.f32.mrf.mxu0
        %v5108 = vadd.f32 %v5019, %v5107
        %v5109 = vpop.f32.mrf.mxu0
        %v5110 = vadd.f32 %v5021, %v5109
        %5111 = vmatmul.bf16.gmra.mxu0 %v4402
        %v5112 = vpop.f32.mrf.mxu0
        %v5113 = vadd.f32 %v5024, %v5112
        %v5114 = vpop.f32.mrf.mxu0
        %v5115 = vadd.f32 %v5026, %v5114
        %5116 = vmatmul.bf16.gmra.mxu0 %v4404
        %v5117 = vpop.f32.mrf.mxu0
        %v5118 = vadd.f32 %v5029, %v5117
        %v5119 = vpop.f32.mrf.mxu0
        %v5120 = vadd.f32 %v5031, %v5119
        %5121 = vmatmul.bf16.gmra.mxu0 %v4406
        %v5122 = vpop.f32.mrf.mxu0
        %v5123 = vadd.f32 %v5034, %v5122
        %v5124 = vpop.f32.mrf.mxu0
        %v5125 = vadd.f32 %v5036, %v5124
        %5126 = vmatmul.bf16.gmra.mxu0 %v4408
        %v5127 = vpop.f32.mrf.mxu0
        %v5128 = vadd.f32 %v5039, %v5127
        %v5129 = vpop.f32.mrf.mxu0
        %v5130 = vadd.f32 %v5041, %v5129
        %5131 = vmatmul.bf16.gmra.mxu0 %v4410
        %v5132 = vpop.f32.mrf.mxu0
        %v5133 = vadd.f32 %v5044, %v5132
        %v5134 = vpop.f32.mrf.mxu0
        %v5135 = vadd.f32 %v5046, %v5134
        %5136 = vmatmul.bf16.gmra.mxu0 %v4412
        %v5137 = vpop.f32.mrf.mxu0
        %v5138 = vadd.f32 %v5049, %v5137
        %v5139 = vpop.f32.mrf.mxu0
        %v5140 = vadd.f32 %v5051, %v5139
        %5141 = vmatmul.bf16.gmra.mxu0 %v4414
        %v5142 = vpop.f32.mrf.mxu0
        %v5143 = vadd.f32 %v5054, %v5142
        %v5144 = vpop.f32.mrf.mxu0
        %v5145 = vadd.f32 %v5056, %v5144
        %5146 = vmatmul.bf16.gmra.mxu0 %v4416
        %v5147 = vpop.f32.mrf.mxu0
        %v5148 = vadd.f32 %v5059, %v5147
        %v5149 = vpop.f32.mrf.mxu0
        %v5150 = vadd.f32 %v5061, %v5149
        %5151 = vmatmul.bf16.gmra.mxu0 %v4418
        %v5152 = vpop.f32.mrf.mxu0
        %v5153 = vadd.f32 %v5064, %v5152
        %v5154 = vpop.f32.mrf.mxu0
        %v5155 = vadd.f32 %v5066, %v5154
        %5156 = vmatmul.bf16.gmra.mxu0 %v4420
        %v5157 = vpop.f32.mrf.mxu0
        %v5158 = vadd.f32 %v5069, %v5157
        %v5159 = vpop.f32.mrf.mxu0
        %v5160 = vadd.f32 %v5071, %v5159
        %5161 = vmatmul.bf16.gmra.mxu0 %v4422
        %v5162 = vpop.f32.mrf.mxu0
        %v5163 = vadd.f32 %v5074, %v5162
        %v5164 = vpop.f32.mrf.mxu0
        %v5165 = vadd.f32 %v5076, %v5164
        %5166 = vdwg.mxu0
        %5167 = vmatpush.bf16.msra.mxu0 %v4236
        %5168 = vmatpush.bf16.msra.mxu0 %v4229
        %5169 = vmatpush.bf16.msra.mxu0 %v4222
        %5170 = vmatpush.bf16.msra.mxu0 %v4215
        %5171 = vmatpush.bf16.msra.mxu0 %v4208
        %5172 = vmatpush.bf16.msra.mxu0 %v4201
        %5173 = vmatpush.bf16.msra.mxu0 %v4194
        %5174 = vmatpush.bf16.msra.mxu0 %v4187
        %5175 = vmatmul.bf16.gmra.mxu0 %v4391
        %v5176 = vpop.f32.mrf.mxu0
        %v5177 = vadd.f32 0.0, %v5176
        %v5178 = vpop.f32.mrf.mxu0
        %v5179 = vadd.f32 0.0, %v5178
        %5180 = vmatmul.bf16.gmra.mxu0 %v4393
        %v5181 = vpop.f32.mrf.mxu0
        %v5182 = vadd.f32 0.0, %v5181
        %v5183 = vpop.f32.mrf.mxu0
        %v5184 = vadd.f32 0.0, %v5183
        %5185 = vmatmul.bf16.gmra.mxu0 %v4395
        %v5186 = vpop.f32.mrf.mxu0
        %v5187 = vadd.f32 0.0, %v5186
        %v5188 = vpop.f32.mrf.mxu0
        %v5189 = vadd.f32 0.0, %v5188
        %5190 = vmatmul.bf16.gmra.mxu0 %v4397
        %v5191 = vpop.f32.mrf.mxu0
        %v5192 = vadd.f32 0.0, %v5191
        %v5193 = vpop.f32.mrf.mxu0
        %v5194 = vadd.f32 0.0, %v5193
        %5195 = vmatmul.bf16.gmra.mxu0 %v4399
        %v5196 = vpop.f32.mrf.mxu0
        %v5197 = vadd.f32 0.0, %v5196
        %v5198 = vpop.f32.mrf.mxu0
        %v5199 = vadd.f32 0.0, %v5198
        %5200 = vmatmul.bf16.gmra.mxu0 %v4401
        %v5201 = vpop.f32.mrf.mxu0
        %v5202 = vadd.f32 0.0, %v5201
        %v5203 = vpop.f32.mrf.mxu0
        %v5204 = vadd.f32 0.0, %v5203
        %5205 = vmatmul.bf16.gmra.mxu0 %v4403
        %v5206 = vpop.f32.mrf.mxu0
        %v5207 = vadd.f32 0.0, %v5206
        %v5208 = vpop.f32.mrf.mxu0
        %v5209 = vadd.f32 0.0, %v5208
        %5210 = vmatmul.bf16.gmra.mxu0 %v4405
        %v5211 = vpop.f32.mrf.mxu0
        %v5212 = vadd.f32 0.0, %v5211
        %v5213 = vpop.f32.mrf.mxu0
        %v5214 = vadd.f32 0.0, %v5213
        %5215 = vmatmul.bf16.gmra.mxu0 %v4407
        %v5216 = vpop.f32.mrf.mxu0
        %v5217 = vadd.f32 0.0, %v5216
        %v5218 = vpop.f32.mrf.mxu0
        %v5219 = vadd.f32 0.0, %v5218
        %5220 = vmatmul.bf16.gmra.mxu0 %v4409
        %v5221 = vpop.f32.mrf.mxu0
        %v5222 = vadd.f32 0.0, %v5221
        %v5223 = vpop.f32.mrf.mxu0
        %v5224 = vadd.f32 0.0, %v5223
        %5225 = vmatmul.bf16.gmra.mxu0 %v4411
        %v5226 = vpop.f32.mrf.mxu0
        %v5227 = vadd.f32 0.0, %v5226
        %v5228 = vpop.f32.mrf.mxu0
        %v5229 = vadd.f32 0.0, %v5228
        %5230 = vmatmul.bf16.gmra.mxu0 %v4413
        %v5231 = vpop.f32.mrf.mxu0
        %v5232 = vadd.f32 0.0, %v5231
        %v5233 = vpop.f32.mrf.mxu0
        %v5234 = vadd.f32 0.0, %v5233
        %5235 = vmatmul.bf16.gmra.mxu0 %v4415
        %v5236 = vpop.f32.mrf.mxu0
        %v5237 = vadd.f32 0.0, %v5236
        %v5238 = vpop.f32.mrf.mxu0
        %v5239 = vadd.f32 0.0, %v5238
        %5240 = vmatmul.bf16.gmra.mxu0 %v4417
        %v5241 = vpop.f32.mrf.mxu0
        %v5242 = vadd.f32 0.0, %v5241
        %v5243 = vpop.f32.mrf.mxu0
        %v5244 = vadd.f32 0.0, %v5243
        %5245 = vmatmul.bf16.gmra.mxu0 %v4419
        %v5246 = vpop.f32.mrf.mxu0
        %v5247 = vadd.f32 0.0, %v5246
        %v5248 = vpop.f32.mrf.mxu0
        %v5249 = vadd.f32 0.0, %v5248
        %5250 = vmatmul.bf16.gmra.mxu0 %v4421
        %v5251 = vpop.f32.mrf.mxu0
        %v5252 = vadd.f32 0.0, %v5251
        %v5253 = vpop.f32.mrf.mxu0
        %v5254 = vadd.f32 0.0, %v5253
        %5255 = vdwg.mxu0
        %5256 = vmatpush.bf16.msra.mxu0 %v4292
        %5257 = vmatpush.bf16.msra.mxu0 %v4285
        %5258 = vmatpush.bf16.msra.mxu0 %v4278
        %5259 = vmatpush.bf16.msra.mxu0 %v4271
        %5260 = vmatpush.bf16.msra.mxu0 %v4264
        %5261 = vmatpush.bf16.msra.mxu0 %v4257
        %5262 = vmatpush.bf16.msra.mxu0 %v4250
        %5263 = vmatpush.bf16.msra.mxu0 %v4243
        %5264 = vmatmul.bf16.gmra.mxu0 %v4392
        %v5265 = vpop.f32.mrf.mxu0
        %v5266 = vadd.f32 %v5177, %v5265
        %v5267 = vpop.f32.mrf.mxu0
        %v5268 = vadd.f32 %v5179, %v5267
        %5269 = vmatmul.bf16.gmra.mxu0 %v4394
        %v5270 = vpop.f32.mrf.mxu0
        %v5271 = vadd.f32 %v5182, %v5270
        %v5272 = vpop.f32.mrf.mxu0
        %v5273 = vadd.f32 %v5184, %v5272
        %5274 = vmatmul.bf16.gmra.mxu0 %v4396
        %v5275 = vpop.f32.mrf.mxu0
        %v5276 = vadd.f32 %v5187, %v5275
        %v5277 = vpop.f32.mrf.mxu0
        %v5278 = vadd.f32 %v5189, %v5277
        %5279 = vmatmul.bf16.gmra.mxu0 %v4398
        %v5280 = vpop.f32.mrf.mxu0
        %v5281 = vadd.f32 %v5192, %v5280
        %v5282 = vpop.f32.mrf.mxu0
        %v5283 = vadd.f32 %v5194, %v5282
        %5284 = vmatmul.bf16.gmra.mxu0 %v4400
        %v5285 = vpop.f32.mrf.mxu0
        %v5286 = vadd.f32 %v5197, %v5285
        %v5287 = vpop.f32.mrf.mxu0
        %v5288 = vadd.f32 %v5199, %v5287
        %5289 = vmatmul.bf16.gmra.mxu0 %v4402
        %v5290 = vpop.f32.mrf.mxu0
        %v5291 = vadd.f32 %v5202, %v5290
        %v5292 = vpop.f32.mrf.mxu0
        %v5293 = vadd.f32 %v5204, %v5292
        %5294 = vmatmul.bf16.gmra.mxu0 %v4404
        %v5295 = vpop.f32.mrf.mxu0
        %v5296 = vadd.f32 %v5207, %v5295
        %v5297 = vpop.f32.mrf.mxu0
        %v5298 = vadd.f32 %v5209, %v5297
        %5299 = vmatmul.bf16.gmra.mxu0 %v4406
        %v5300 = vpop.f32.mrf.mxu0
        %v5301 = vadd.f32 %v5212, %v5300
        %v5302 = vpop.f32.mrf.mxu0
        %v5303 = vadd.f32 %v5214, %v5302
        %5304 = vmatmul.bf16.gmra.mxu0 %v4408
        %v5305 = vpop.f32.mrf.mxu0
        %v5306 = vadd.f32 %v5217, %v5305
        %v5307 = vpop.f32.mrf.mxu0
        %v5308 = vadd.f32 %v5219, %v5307
        %5309 = vmatmul.bf16.gmra.mxu0 %v4410
        %v5310 = vpop.f32.mrf.mxu0
        %v5311 = vadd.f32 %v5222, %v5310
        %v5312 = vpop.f32.mrf.mxu0
        %v5313 = vadd.f32 %v5224, %v5312
        %5314 = vmatmul.bf16.gmra.mxu0 %v4412
        %v5315 = vpop.f32.mrf.mxu0
        %v5316 = vadd.f32 %v5227, %v5315
        %v5317 = vpop.f32.mrf.mxu0
        %v5318 = vadd.f32 %v5229, %v5317
        %5319 = vmatmul.bf16.gmra.mxu0 %v4414
        %v5320 = vpop.f32.mrf.mxu0
        %v5321 = vadd.f32 %v5232, %v5320
        %v5322 = vpop.f32.mrf.mxu0
        %v5323 = vadd.f32 %v5234, %v5322
        %5324 = vmatmul.bf16.gmra.mxu0 %v4416
        %v5325 = vpop.f32.mrf.mxu0
        %v5326 = vadd.f32 %v5237, %v5325
        %v5327 = vpop.f32.mrf.mxu0
        %v5328 = vadd.f32 %v5239, %v5327
        %5329 = vmatmul.bf16.gmra.mxu0 %v4418
        %v5330 = vpop.f32.mrf.mxu0
        %v5331 = vadd.f32 %v5242, %v5330
        %v5332 = vpop.f32.mrf.mxu0
        %v5333 = vadd.f32 %v5244, %v5332
        %5334 = vmatmul.bf16.gmra.mxu0 %v4420
        %v5335 = vpop.f32.mrf.mxu0
        %v5336 = vadd.f32 %v5247, %v5335
        %v5337 = vpop.f32.mrf.mxu0
        %v5338 = vadd.f32 %v5249, %v5337
        %5339 = vmatmul.bf16.gmra.mxu0 %v4422
        %v5340 = vpop.f32.mrf.mxu0
        %v5341 = vadd.f32 %v5252, %v5340
        %v5342 = vpop.f32.mrf.mxu0
        %v5343 = vadd.f32 %v5254, %v5342
        %5344 = vdwg.mxu0
        %5345 = vmatpush.bf16.msra.mxu0 %v4237
        %5346 = vmatpush.bf16.msra.mxu0 %v4230
        %5347 = vmatpush.bf16.msra.mxu0 %v4223
        %5348 = vmatpush.bf16.msra.mxu0 %v4216
        %5349 = vmatpush.bf16.msra.mxu0 %v4209
        %5350 = vmatpush.bf16.msra.mxu0 %v4202
        %5351 = vmatpush.bf16.msra.mxu0 %v4195
        %5352 = vmatpush.bf16.msra.mxu0 %v4188
        %5353 = vmatmul.bf16.gmra.mxu0 %v4391
        %v5354 = vpop.f32.mrf.mxu0
        %v5355 = vadd.f32 0.0, %v5354
        %v5356 = vpop.f32.mrf.mxu0
        %v5357 = vadd.f32 0.0, %v5356
        %5358 = vmatmul.bf16.gmra.mxu0 %v4393
        %v5359 = vpop.f32.mrf.mxu0
        %v5360 = vadd.f32 0.0, %v5359
        %v5361 = vpop.f32.mrf.mxu0
        %v5362 = vadd.f32 0.0, %v5361
        %5363 = vmatmul.bf16.gmra.mxu0 %v4395
        %v5364 = vpop.f32.mrf.mxu0
        %v5365 = vadd.f32 0.0, %v5364
        %v5366 = vpop.f32.mrf.mxu0
        %v5367 = vadd.f32 0.0, %v5366
        %5368 = vmatmul.bf16.gmra.mxu0 %v4397
        %v5369 = vpop.f32.mrf.mxu0
        %v5370 = vadd.f32 0.0, %v5369
        %v5371 = vpop.f32.mrf.mxu0
        %v5372 = vadd.f32 0.0, %v5371
        %5373 = vmatmul.bf16.gmra.mxu0 %v4399
        %v5374 = vpop.f32.mrf.mxu0
        %v5375 = vadd.f32 0.0, %v5374
        %v5376 = vpop.f32.mrf.mxu0
        %v5377 = vadd.f32 0.0, %v5376
        %5378 = vmatmul.bf16.gmra.mxu0 %v4401
        %v5379 = vpop.f32.mrf.mxu0
        %v5380 = vadd.f32 0.0, %v5379
        %v5381 = vpop.f32.mrf.mxu0
        %v5382 = vadd.f32 0.0, %v5381
        %5383 = vmatmul.bf16.gmra.mxu0 %v4403
        %v5384 = vpop.f32.mrf.mxu0
        %v5385 = vadd.f32 0.0, %v5384
        %v5386 = vpop.f32.mrf.mxu0
        %v5387 = vadd.f32 0.0, %v5386
        %5388 = vmatmul.bf16.gmra.mxu0 %v4405
        %v5389 = vpop.f32.mrf.mxu0
        %v5390 = vadd.f32 0.0, %v5389
        %v5391 = vpop.f32.mrf.mxu0
        %v5392 = vadd.f32 0.0, %v5391
        %5393 = vmatmul.bf16.gmra.mxu0 %v4407
        %v5394 = vpop.f32.mrf.mxu0
        %v5395 = vadd.f32 0.0, %v5394
        %v5396 = vpop.f32.mrf.mxu0
        %v5397 = vadd.f32 0.0, %v5396
        %5398 = vmatmul.bf16.gmra.mxu0 %v4409
        %v5399 = vpop.f32.mrf.mxu0
        %v5400 = vadd.f32 0.0, %v5399
        %v5401 = vpop.f32.mrf.mxu0
        %v5402 = vadd.f32 0.0, %v5401
        %5403 = vmatmul.bf16.gmra.mxu0 %v4411
        %v5404 = vpop.f32.mrf.mxu0
        %v5405 = vadd.f32 0.0, %v5404
        %v5406 = vpop.f32.mrf.mxu0
        %v5407 = vadd.f32 0.0, %v5406
        %5408 = vmatmul.bf16.gmra.mxu0 %v4413
        %v5409 = vpop.f32.mrf.mxu0
        %v5410 = vadd.f32 0.0, %v5409
        %v5411 = vpop.f32.mrf.mxu0
        %v5412 = vadd.f32 0.0, %v5411
        %5413 = vmatmul.bf16.gmra.mxu0 %v4415
        %v5414 = vpop.f32.mrf.mxu0
        %v5415 = vadd.f32 0.0, %v5414
        %v5416 = vpop.f32.mrf.mxu0
        %v5417 = vadd.f32 0.0, %v5416
        %5418 = vmatmul.bf16.gmra.mxu0 %v4417
        %v5419 = vpop.f32.mrf.mxu0
        %v5420 = vadd.f32 0.0, %v5419
        %v5421 = vpop.f32.mrf.mxu0
        %v5422 = vadd.f32 0.0, %v5421
        %5423 = vmatmul.bf16.gmra.mxu0 %v4419
        %v5424 = vpop.f32.mrf.mxu0
        %v5425 = vadd.f32 0.0, %v5424
        %v5426 = vpop.f32.mrf.mxu0
        %v5427 = vadd.f32 0.0, %v5426
        %5428 = vmatmul.bf16.gmra.mxu0 %v4421
        %v5429 = vpop.f32.mrf.mxu0
        %v5430 = vadd.f32 0.0, %v5429
        %v5431 = vpop.f32.mrf.mxu0
        %v5432 = vadd.f32 0.0, %v5431
        %5433 = vdwg.mxu0
        %5434 = vmatpush.bf16.msra.mxu0 %v4293
        %5435 = vmatpush.bf16.msra.mxu0 %v4286
        %5436 = vmatpush.bf16.msra.mxu0 %v4279
        %5437 = vmatpush.bf16.msra.mxu0 %v4272
        %5438 = vmatpush.bf16.msra.mxu0 %v4265
        %5439 = vmatpush.bf16.msra.mxu0 %v4258
        %5440 = vmatpush.bf16.msra.mxu0 %v4251
        %5441 = vmatpush.bf16.msra.mxu0 %v4244
        %5442 = vmatmul.bf16.gmra.mxu0 %v4392
        %v5443 = vpop.f32.mrf.mxu0
        %v5444 = vadd.f32 %v5355, %v5443
        %v5445 = vpop.f32.mrf.mxu0
        %v5446 = vadd.f32 %v5357, %v5445
        %5447 = vmatmul.bf16.gmra.mxu0 %v4394
        %v5448 = vpop.f32.mrf.mxu0
        %v5449 = vadd.f32 %v5360, %v5448
        %v5450 = vpop.f32.mrf.mxu0
        %v5451 = vadd.f32 %v5362, %v5450
        %5452 = vmatmul.bf16.gmra.mxu0 %v4396
        %v5453 = vpop.f32.mrf.mxu0
        %v5454 = vadd.f32 %v5365, %v5453
        %v5455 = vpop.f32.mrf.mxu0
        %v5456 = vadd.f32 %v5367, %v5455
        %5457 = vmatmul.bf16.gmra.mxu0 %v4398
        %v5458 = vpop.f32.mrf.mxu0
        %v5459 = vadd.f32 %v5370, %v5458
        %v5460 = vpop.f32.mrf.mxu0
        %v5461 = vadd.f32 %v5372, %v5460
        %5462 = vmatmul.bf16.gmra.mxu0 %v4400
        %v5463 = vpop.f32.mrf.mxu0
        %v5464 = vadd.f32 %v5375, %v5463
        %v5465 = vpop.f32.mrf.mxu0
        %v5466 = vadd.f32 %v5377, %v5465
        %5467 = vmatmul.bf16.gmra.mxu0 %v4402
        %v5468 = vpop.f32.mrf.mxu0
        %v5469 = vadd.f32 %v5380, %v5468
        %v5470 = vpop.f32.mrf.mxu0
        %v5471 = vadd.f32 %v5382, %v5470
        %5472 = vmatmul.bf16.gmra.mxu0 %v4404
        %v5473 = vpop.f32.mrf.mxu0
        %v5474 = vadd.f32 %v5385, %v5473
        %v5475 = vpop.f32.mrf.mxu0
        %v5476 = vadd.f32 %v5387, %v5475
        %5477 = vmatmul.bf16.gmra.mxu0 %v4406
        %v5478 = vpop.f32.mrf.mxu0
        %v5479 = vadd.f32 %v5390, %v5478
        %v5480 = vpop.f32.mrf.mxu0
        %v5481 = vadd.f32 %v5392, %v5480
        %5482 = vmatmul.bf16.gmra.mxu0 %v4408
        %v5483 = vpop.f32.mrf.mxu0
        %v5484 = vadd.f32 %v5395, %v5483
        %v5485 = vpop.f32.mrf.mxu0
        %v5486 = vadd.f32 %v5397, %v5485
        %5487 = vmatmul.bf16.gmra.mxu0 %v4410
        %v5488 = vpop.f32.mrf.mxu0
        %v5489 = vadd.f32 %v5400, %v5488
        %v5490 = vpop.f32.mrf.mxu0
        %v5491 = vadd.f32 %v5402, %v5490
        %5492 = vmatmul.bf16.gmra.mxu0 %v4412
        %v5493 = vpop.f32.mrf.mxu0
        %v5494 = vadd.f32 %v5405, %v5493
        %v5495 = vpop.f32.mrf.mxu0
        %v5496 = vadd.f32 %v5407, %v5495
        %5497 = vmatmul.bf16.gmra.mxu0 %v4414
        %v5498 = vpop.f32.mrf.mxu0
        %v5499 = vadd.f32 %v5410, %v5498
        %v5500 = vpop.f32.mrf.mxu0
        %v5501 = vadd.f32 %v5412, %v5500
        %5502 = vmatmul.bf16.gmra.mxu0 %v4416
        %v5503 = vpop.f32.mrf.mxu0
        %v5504 = vadd.f32 %v5415, %v5503
        %v5505 = vpop.f32.mrf.mxu0
        %v5506 = vadd.f32 %v5417, %v5505
        %5507 = vmatmul.bf16.gmra.mxu0 %v4418
        %v5508 = vpop.f32.mrf.mxu0
        %v5509 = vadd.f32 %v5420, %v5508
        %v5510 = vpop.f32.mrf.mxu0
        %v5511 = vadd.f32 %v5422, %v5510
        %5512 = vmatmul.bf16.gmra.mxu0 %v4420
        %v5513 = vpop.f32.mrf.mxu0
        %v5514 = vadd.f32 %v5425, %v5513
        %v5515 = vpop.f32.mrf.mxu0
        %v5516 = vadd.f32 %v5427, %v5515
        %5517 = vmatmul.bf16.gmra.mxu0 %v4422
        %v5518 = vpop.f32.mrf.mxu0
        %v5519 = vadd.f32 %v5430, %v5518
        %v5520 = vpop.f32.mrf.mxu0
        %v5521 = vadd.f32 %v5432, %v5520
        %5522 = vdwg.mxu0
        %5523 = vmatpush.bf16.msra.mxu0 %v4238
        %5524 = vmatpush.bf16.msra.mxu0 %v4231
        %5525 = vmatpush.bf16.msra.mxu0 %v4224
        %5526 = vmatpush.bf16.msra.mxu0 %v4217
        %5527 = vmatpush.bf16.msra.mxu0 %v4210
        %5528 = vmatpush.bf16.msra.mxu0 %v4203
        %5529 = vmatpush.bf16.msra.mxu0 %v4196
        %5530 = vmatpush.bf16.msra.mxu0 %v4189
        %5531 = vmatmul.bf16.gmra.mxu0 %v4391
        %v5532 = vpop.f32.mrf.mxu0
        %v5533 = vadd.f32 0.0, %v5532
        %v5534 = vpop.f32.mrf.mxu0
        %v5535 = vadd.f32 0.0, %v5534
        %5536 = vmatmul.bf16.gmra.mxu0 %v4393
        %v5537 = vpop.f32.mrf.mxu0
        %v5538 = vadd.f32 0.0, %v5537
        %v5539 = vpop.f32.mrf.mxu0
        %v5540 = vadd.f32 0.0, %v5539
        %5541 = vmatmul.bf16.gmra.mxu0 %v4395
        %v5542 = vpop.f32.mrf.mxu0
        %v5543 = vadd.f32 0.0, %v5542
        %v5544 = vpop.f32.mrf.mxu0
        %v5545 = vadd.f32 0.0, %v5544
        %5546 = vmatmul.bf16.gmra.mxu0 %v4397
        %v5547 = vpop.f32.mrf.mxu0
        %v5548 = vadd.f32 0.0, %v5547
        %v5549 = vpop.f32.mrf.mxu0
        %v5550 = vadd.f32 0.0, %v5549
        %5551 = vmatmul.bf16.gmra.mxu0 %v4399
        %v5552 = vpop.f32.mrf.mxu0
        %v5553 = vadd.f32 0.0, %v5552
        %v5554 = vpop.f32.mrf.mxu0
        %v5555 = vadd.f32 0.0, %v5554
        %5556 = vmatmul.bf16.gmra.mxu0 %v4401
        %v5557 = vpop.f32.mrf.mxu0
        %v5558 = vadd.f32 0.0, %v5557
        %v5559 = vpop.f32.mrf.mxu0
        %v5560 = vadd.f32 0.0, %v5559
        %5561 = vmatmul.bf16.gmra.mxu0 %v4403
        %v5562 = vpop.f32.mrf.mxu0
        %v5563 = vadd.f32 0.0, %v5562
        %v5564 = vpop.f32.mrf.mxu0
        %v5565 = vadd.f32 0.0, %v5564
        %5566 = vmatmul.bf16.gmra.mxu0 %v4405
        %v5567 = vpop.f32.mrf.mxu0
        %v5568 = vadd.f32 0.0, %v5567
        %v5569 = vpop.f32.mrf.mxu0
        %v5570 = vadd.f32 0.0, %v5569
        %5571 = vmatmul.bf16.gmra.mxu0 %v4407
        %v5572 = vpop.f32.mrf.mxu0
        %v5573 = vadd.f32 0.0, %v5572
        %v5574 = vpop.f32.mrf.mxu0
        %v5575 = vadd.f32 0.0, %v5574
        %5576 = vmatmul.bf16.gmra.mxu0 %v4409
        %v5577 = vpop.f32.mrf.mxu0
        %v5578 = vadd.f32 0.0, %v5577
        %v5579 = vpop.f32.mrf.mxu0
        %v5580 = vadd.f32 0.0, %v5579
        %5581 = vmatmul.bf16.gmra.mxu0 %v4411
        %v5582 = vpop.f32.mrf.mxu0
        %v5583 = vadd.f32 0.0, %v5582
        %v5584 = vpop.f32.mrf.mxu0
        %v5585 = vadd.f32 0.0, %v5584
        %5586 = vmatmul.bf16.gmra.mxu0 %v4413
        %v5587 = vpop.f32.mrf.mxu0
        %v5588 = vadd.f32 0.0, %v5587
        %v5589 = vpop.f32.mrf.mxu0
        %v5590 = vadd.f32 0.0, %v5589
        %5591 = vmatmul.bf16.gmra.mxu0 %v4415
        %v5592 = vpop.f32.mrf.mxu0
        %v5593 = vadd.f32 0.0, %v5592
        %v5594 = vpop.f32.mrf.mxu0
        %v5595 = vadd.f32 0.0, %v5594
        %5596 = vmatmul.bf16.gmra.mxu0 %v4417
        %v5597 = vpop.f32.mrf.mxu0
        %v5598 = vadd.f32 0.0, %v5597
        %v5599 = vpop.f32.mrf.mxu0
        %v5600 = vadd.f32 0.0, %v5599
        %5601 = vmatmul.bf16.gmra.mxu0 %v4419
        %v5602 = vpop.f32.mrf.mxu0
        %v5603 = vadd.f32 0.0, %v5602
        %v5604 = vpop.f32.mrf.mxu0
        %v5605 = vadd.f32 0.0, %v5604
        %5606 = vmatmul.bf16.gmra.mxu0 %v4421
        %v5607 = vpop.f32.mrf.mxu0
        %v5608 = vadd.f32 0.0, %v5607
        %v5609 = vpop.f32.mrf.mxu0
        %v5610 = vadd.f32 0.0, %v5609
        %5611 = vdwg.mxu0
        %5612 = vmatpush.bf16.msra.mxu0 %v4294
        %5613 = vmatpush.bf16.msra.mxu0 %v4287
        %5614 = vmatpush.bf16.msra.mxu0 %v4280
        %5615 = vmatpush.bf16.msra.mxu0 %v4273
        %5616 = vmatpush.bf16.msra.mxu0 %v4266
        %5617 = vmatpush.bf16.msra.mxu0 %v4259
        %5618 = vmatpush.bf16.msra.mxu0 %v4252
        %5619 = vmatpush.bf16.msra.mxu0 %v4245
        %5620 = vmatmul.bf16.gmra.mxu0 %v4392
        %v5621 = vpop.f32.mrf.mxu0
        %v5622 = vadd.f32 %v5533, %v5621
        %v5623 = vpop.f32.mrf.mxu0
        %v5624 = vadd.f32 %v5535, %v5623
        %5625 = vmatmul.bf16.gmra.mxu0 %v4394
        %v5626 = vpop.f32.mrf.mxu0
        %v5627 = vadd.f32 %v5538, %v5626
        %v5628 = vpop.f32.mrf.mxu0
        %v5629 = vadd.f32 %v5540, %v5628
        %5630 = vmatmul.bf16.gmra.mxu0 %v4396
        %v5631 = vpop.f32.mrf.mxu0
        %v5632 = vadd.f32 %v5543, %v5631
        %v5633 = vpop.f32.mrf.mxu0
        %v5634 = vadd.f32 %v5545, %v5633
        %5635 = vmatmul.bf16.gmra.mxu0 %v4398
        %v5636 = vpop.f32.mrf.mxu0
        %v5637 = vadd.f32 %v5548, %v5636
        %v5638 = vpop.f32.mrf.mxu0
        %v5639 = vadd.f32 %v5550, %v5638
        %5640 = vmatmul.bf16.gmra.mxu0 %v4400
        %v5641 = vpop.f32.mrf.mxu0
        %v5642 = vadd.f32 %v5553, %v5641
        %v5643 = vpop.f32.mrf.mxu0
        %v5644 = vadd.f32 %v5555, %v5643
        %5645 = vmatmul.bf16.gmra.mxu0 %v4402
        %v5646 = vpop.f32.mrf.mxu0
        %v5647 = vadd.f32 %v5558, %v5646
        %v5648 = vpop.f32.mrf.mxu0
        %v5649 = vadd.f32 %v5560, %v5648
        %5650 = vmatmul.bf16.gmra.mxu0 %v4404
        %v5651 = vpop.f32.mrf.mxu0
        %v5652 = vadd.f32 %v5563, %v5651
        %v5653 = vpop.f32.mrf.mxu0
        %v5654 = vadd.f32 %v5565, %v5653
        %5655 = vmatmul.bf16.gmra.mxu0 %v4406
        %v5656 = vpop.f32.mrf.mxu0
        %v5657 = vadd.f32 %v5568, %v5656
        %v5658 = vpop.f32.mrf.mxu0
        %v5659 = vadd.f32 %v5570, %v5658
        %5660 = vmatmul.bf16.gmra.mxu0 %v4408
        %v5661 = vpop.f32.mrf.mxu0
        %v5662 = vadd.f32 %v5573, %v5661
        %v5663 = vpop.f32.mrf.mxu0
        %v5664 = vadd.f32 %v5575, %v5663
        %5665 = vmatmul.bf16.gmra.mxu0 %v4410
        %v5666 = vpop.f32.mrf.mxu0
        %v5667 = vadd.f32 %v5578, %v5666
        %v5668 = vpop.f32.mrf.mxu0
        %v5669 = vadd.f32 %v5580, %v5668
        %5670 = vmatmul.bf16.gmra.mxu0 %v4412
        %v5671 = vpop.f32.mrf.mxu0
        %v5672 = vadd.f32 %v5583, %v5671
        %v5673 = vpop.f32.mrf.mxu0
        %v5674 = vadd.f32 %v5585, %v5673
        %5675 = vmatmul.bf16.gmra.mxu0 %v4414
        %v5676 = vpop.f32.mrf.mxu0
        %v5677 = vadd.f32 %v5588, %v5676
        %v5678 = vpop.f32.mrf.mxu0
        %v5679 = vadd.f32 %v5590, %v5678
        %5680 = vmatmul.bf16.gmra.mxu0 %v4416
        %v5681 = vpop.f32.mrf.mxu0
        %v5682 = vadd.f32 %v5593, %v5681
        %v5683 = vpop.f32.mrf.mxu0
        %v5684 = vadd.f32 %v5595, %v5683
        %5685 = vmatmul.bf16.gmra.mxu0 %v4418
        %v5686 = vpop.f32.mrf.mxu0
        %v5687 = vadd.f32 %v5598, %v5686
        %v5688 = vpop.f32.mrf.mxu0
        %v5689 = vadd.f32 %v5600, %v5688
        %5690 = vmatmul.bf16.gmra.mxu0 %v4420
        %v5691 = vpop.f32.mrf.mxu0
        %v5692 = vadd.f32 %v5603, %v5691
        %v5693 = vpop.f32.mrf.mxu0
        %v5694 = vadd.f32 %v5605, %v5693
        %5695 = vmatmul.bf16.gmra.mxu0 %v4422
        %v5696 = vpop.f32.mrf.mxu0
        %v5697 = vadd.f32 %v5608, %v5696
        %v5698 = vpop.f32.mrf.mxu0
        %v5699 = vadd.f32 %v5610, %v5698
        %5700 = vdwg.mxu0
        %v5701 = vadd.f32 %v3927, %v4554
        %v5702 = vadd.f32 %v3928, %v4732
        %v5703 = vadd.f32 %v3929, %v4910
        %v5704 = vadd.f32 %v3930, %v5088
        %v5705 = vadd.f32 %v3931, %v5266
        %v5706 = vadd.f32 %v3932, %v5444
        %v5707 = vadd.f32 %v3933, %v5622
        %v5708 = vadd.f32 %v3934, %v4556
        %v5709 = vadd.f32 %v3935, %v4734
        %v5710 = vadd.f32 %v3936, %v4912
        %v5711 = vadd.f32 %v3937, %v5090
        %v5712 = vadd.f32 %v3938, %v5268
        %v5713 = vadd.f32 %v3939, %v5446
        %v5714 = vadd.f32 %v3940, %v5624
        %v5715 = vadd.f32 %v3941, %v4559
        %v5716 = vadd.f32 %v3942, %v4737
        %v5717 = vadd.f32 %v3943, %v4915
        %v5718 = vadd.f32 %v3944, %v5093
        %v5719 = vadd.f32 %v3945, %v5271
        %v5720 = vadd.f32 %v3946, %v5449
        %v5721 = vadd.f32 %v3947, %v5627
        %v5722 = vadd.f32 %v3948, %v4561
        %v5723 = vadd.f32 %v3949, %v4739
        %v5724 = vadd.f32 %v3950, %v4917
        %v5725 = vadd.f32 %v3951, %v5095
        %v5726 = vadd.f32 %v3952, %v5273
        %v5727 = vadd.f32 %v3953, %v5451
        %v5728 = vadd.f32 %v3954, %v5629
        %v5729 = vadd.f32 %v3955, %v4564
        %v5730 = vadd.f32 %v3956, %v4742
        %v5731 = vadd.f32 %v3957, %v4920
        %v5732 = vadd.f32 %v3958, %v5098
        %v5733 = vadd.f32 %v3959, %v5276
        %v5734 = vadd.f32 %v3960, %v5454
        %v5735 = vadd.f32 %v3961, %v5632
        %v5736 = vadd.f32 %v3962, %v4566
        %v5737 = vadd.f32 %v3963, %v4744
        %v5738 = vadd.f32 %v3964, %v4922
        %v5739 = vadd.f32 %v3965, %v5100
        %v5740 = vadd.f32 %v3966, %v5278
        %v5741 = vadd.f32 %v3967, %v5456
        %v5742 = vadd.f32 %v3968, %v5634
        %v5743 = vadd.f32 %v3969, %v4569
        %v5744 = vadd.f32 %v3970, %v4747
        %v5745 = vadd.f32 %v3971, %v4925
        %v5746 = vadd.f32 %v3972, %v5103
        %v5747 = vadd.f32 %v3973, %v5281
        %v5748 = vadd.f32 %v3974, %v5459
        %v5749 = vadd.f32 %v3975, %v5637
        %v5750 = vadd.f32 %v3976, %v4571
        %v5751 = vadd.f32 %v3977, %v4749
        %v5752 = vadd.f32 %v3978, %v4927
        %v5753 = vadd.f32 %v3979, %v5105
        %v5754 = vadd.f32 %v3980, %v5283
        %v5755 = vadd.f32 %v3981, %v5461
        %v5756 = vadd.f32 %v3982, %v5639
        %v5757 = vadd.f32 %v3983, %v4574
        %v5758 = vadd.f32 %v3984, %v4752
        %v5759 = vadd.f32 %v3985, %v4930
        %v5760 = vadd.f32 %v3986, %v5108
        %v5761 = vadd.f32 %v3987, %v5286
        %v5762 = vadd.f32 %v3988, %v5464
        %v5763 = vadd.f32 %v3989, %v5642
        %v5764 = vadd.f32 %v3990, %v4576
        %v5765 = vadd.f32 %v3991, %v4754
        %v5766 = vadd.f32 %v3992, %v4932
        %v5767 = vadd.f32 %v3993, %v5110
        %v5768 = vadd.f32 %v3994, %v5288
        %v5769 = vadd.f32 %v3995, %v5466
        %v5770 = vadd.f32 %v3996, %v5644
        %v5771 = vadd.f32 %v3997, %v4579
        %v5772 = vadd.f32 %v3998, %v4757
        %v5773 = vadd.f32 %v3999, %v4935
        %v5774 = vadd.f32 %v4000, %v5113
        %v5775 = vadd.f32 %v4001, %v5291
        %v5776 = vadd.f32 %v4002, %v5469
        %v5777 = vadd.f32 %v4003, %v5647
        %v5778 = vadd.f32 %v4004, %v4581
        %v5779 = vadd.f32 %v4005, %v4759
        %v5780 = vadd.f32 %v4006, %v4937
        %v5781 = vadd.f32 %v4007, %v5115
        %v5782 = vadd.f32 %v4008, %v5293
        %v5783 = vadd.f32 %v4009, %v5471
        %v5784 = vadd.f32 %v4010, %v5649
        %v5785 = vadd.f32 %v4011, %v4584
        %v5786 = vadd.f32 %v4012, %v4762
        %v5787 = vadd.f32 %v4013, %v4940
        %v5788 = vadd.f32 %v4014, %v5118
        %v5789 = vadd.f32 %v4015, %v5296
        %v5790 = vadd.f32 %v4016, %v5474
        %v5791 = vadd.f32 %v4017, %v5652
        %v5792 = vadd.f32 %v4018, %v4586
        %v5793 = vadd.f32 %v4019, %v4764
        %v5794 = vadd.f32 %v4020, %v4942
        %v5795 = vadd.f32 %v4021, %v5120
        %v5796 = vadd.f32 %v4022, %v5298
        %v5797 = vadd.f32 %v4023, %v5476
        %v5798 = vadd.f32 %v4024, %v5654
        %v5799 = vadd.f32 %v4025, %v4589
        %v5800 = vadd.f32 %v4026, %v4767
        %v5801 = vadd.f32 %v4027, %v4945
        %v5802 = vadd.f32 %v4028, %v5123
        %v5803 = vadd.f32 %v4029, %v5301
        %v5804 = vadd.f32 %v4030, %v5479
        %v5805 = vadd.f32 %v4031, %v5657
        %v5806 = vadd.f32 %v4032, %v4591
        %v5807 = vadd.f32 %v4033, %v4769
        %v5808 = vadd.f32 %v4034, %v4947
        %v5809 = vadd.f32 %v4035, %v5125
        %v5810 = vadd.f32 %v4036, %v5303
        %v5811 = vadd.f32 %v4037, %v5481
        %v5812 = vadd.f32 %v4038, %v5659
        %v5813 = vadd.f32 %v4039, %v4594
        %v5814 = vadd.f32 %v4040, %v4772
        %v5815 = vadd.f32 %v4041, %v4950
        %v5816 = vadd.f32 %v4042, %v5128
        %v5817 = vadd.f32 %v4043, %v5306
        %v5818 = vadd.f32 %v4044, %v5484
        %v5819 = vadd.f32 %v4045, %v5662
        %v5820 = vadd.f32 %v4046, %v4596
        %v5821 = vadd.f32 %v4047, %v4774
        %v5822 = vadd.f32 %v4048, %v4952
        %v5823 = vadd.f32 %v4049, %v5130
        %v5824 = vadd.f32 %v4050, %v5308
        %v5825 = vadd.f32 %v4051, %v5486
        %v5826 = vadd.f32 %v4052, %v5664
        %v5827 = vadd.f32 %v4053, %v4599
        %v5828 = vadd.f32 %v4054, %v4777
        %v5829 = vadd.f32 %v4055, %v4955
        %v5830 = vadd.f32 %v4056, %v5133
        %v5831 = vadd.f32 %v4057, %v5311
        %v5832 = vadd.f32 %v4058, %v5489
        %v5833 = vadd.f32 %v4059, %v5667
        %v5834 = vadd.f32 %v4060, %v4601
        %v5835 = vadd.f32 %v4061, %v4779
        %v5836 = vadd.f32 %v4062, %v4957
        %v5837 = vadd.f32 %v4063, %v5135
        %v5838 = vadd.f32 %v4064, %v5313
        %v5839 = vadd.f32 %v4065, %v5491
        %v5840 = vadd.f32 %v4066, %v5669
        %v5841 = vadd.f32 %v4067, %v4604
        %v5842 = vadd.f32 %v4068, %v4782
        %v5843 = vadd.f32 %v4069, %v4960
        %v5844 = vadd.f32 %v4070, %v5138
        %v5845 = vadd.f32 %v4071, %v5316
        %v5846 = vadd.f32 %v4072, %v5494
        %v5847 = vadd.f32 %v4073, %v5672
        %v5848 = vadd.f32 %v4074, %v4606
        %v5849 = vadd.f32 %v4075, %v4784
        %v5850 = vadd.f32 %v4076, %v4962
        %v5851 = vadd.f32 %v4077, %v5140
        %v5852 = vadd.f32 %v4078, %v5318
        %v5853 = vadd.f32 %v4079, %v5496
        %v5854 = vadd.f32 %v4080, %v5674
        %v5855 = vadd.f32 %v4081, %v4609
        %v5856 = vadd.f32 %v4082, %v4787
        %v5857 = vadd.f32 %v4083, %v4965
        %v5858 = vadd.f32 %v4084, %v5143
        %v5859 = vadd.f32 %v4085, %v5321
        %v5860 = vadd.f32 %v4086, %v5499
        %v5861 = vadd.f32 %v4087, %v5677
        %v5862 = vadd.f32 %v4088, %v4611
        %v5863 = vadd.f32 %v4089, %v4789
        %v5864 = vadd.f32 %v4090, %v4967
        %v5865 = vadd.f32 %v4091, %v5145
        %v5866 = vadd.f32 %v4092, %v5323
        %v5867 = vadd.f32 %v4093, %v5501
        %v5868 = vadd.f32 %v4094, %v5679
        %v5869 = vadd.f32 %v4095, %v4614
        %v5870 = vadd.f32 %v4096, %v4792
        %v5871 = vadd.f32 %v4097, %v4970
        %v5872 = vadd.f32 %v4098, %v5148
        %v5873 = vadd.f32 %v4099, %v5326
        %v5874 = vadd.f32 %v4100, %v5504
        %v5875 = vadd.f32 %v4101, %v5682
        %v5876 = vadd.f32 %v4102, %v4616
        %v5877 = vadd.f32 %v4103, %v4794
        %v5878 = vadd.f32 %v4104, %v4972
        %v5879 = vadd.f32 %v4105, %v5150
        %v5880 = vadd.f32 %v4106, %v5328
        %v5881 = vadd.f32 %v4107, %v5506
        %v5882 = vadd.f32 %v4108, %v5684
        %v5883 = vadd.f32 %v4109, %v4619
        %v5884 = vadd.f32 %v4110, %v4797
        %v5885 = vadd.f32 %v4111, %v4975
        %v5886 = vadd.f32 %v4112, %v5153
        %v5887 = vadd.f32 %v4113, %v5331
        %v5888 = vadd.f32 %v4114, %v5509
        %v5889 = vadd.f32 %v4115, %v5687
        %v5890 = vadd.f32 %v4116, %v4621
        %v5891 = vadd.f32 %v4117, %v4799
        %v5892 = vadd.f32 %v4118, %v4977
        %v5893 = vadd.f32 %v4119, %v5155
        %v5894 = vadd.f32 %v4120, %v5333
        %v5895 = vadd.f32 %v4121, %v5511
        %v5896 = vadd.f32 %v4122, %v5689
        %v5897 = vadd.f32 %v4123, %v4624
        %v5898 = vadd.f32 %v4124, %v4802
        %v5899 = vadd.f32 %v4125, %v4980
        %v5900 = vadd.f32 %v4126, %v5158
        %v5901 = vadd.f32 %v4127, %v5336
        %v5902 = vadd.f32 %v4128, %v5514
        %v5903 = vadd.f32 %v4129, %v5692
        %v5904 = vadd.f32 %v4130, %v4626
        %v5905 = vadd.f32 %v4131, %v4804
        %v5906 = vadd.f32 %v4132, %v4982
        %v5907 = vadd.f32 %v4133, %v5160
        %v5908 = vadd.f32 %v4134, %v5338
        %v5909 = vadd.f32 %v4135, %v5516
        %v5910 = vadd.f32 %v4136, %v5694
        %v5911 = vadd.f32 %v4137, %v4629
        %v5912 = vadd.f32 %v4138, %v4807
        %v5913 = vadd.f32 %v4139, %v4985
        %v5914 = vadd.f32 %v4140, %v5163
        %v5915 = vadd.f32 %v4141, %v5341
        %v5916 = vadd.f32 %v4142, %v5519
        %v5917 = vadd.f32 %v4143, %v5697
        %v5918 = vadd.f32 %v4144, %v4631
        %v5919 = vadd.f32 %v4145, %v4809
        %v5920 = vadd.f32 %v4146, %v4987
        %v5921 = vadd.f32 %v4147, %v5165
        %v5922 = vadd.f32 %v4148, %v5343
        %v5923 = vadd.f32 %v4149, %v5521
        %v5924 = vadd.f32 %v4150, %v5699
        %5925 = vst [vmem:[%s5] sm:$0xff] %v5701
        %5926 = vst [vmem:[%s5 + $0x8] sm:$0xff] %v5702
        %5927 = vst [vmem:[%s5 + $0x10] sm:$0xff] %v5703
        %5928 = vst [vmem:[%s5 + $0x18] sm:$0xff] %v5704
        %5929 = vst [vmem:[%s5 + $0x20] sm:$0xff] %v5705
        %5930 = vst [vmem:[%s5 + $0x28] sm:$0xff] %v5706
        %5931 = vst.msk [vmem:[%s5 + $0x30] sm:$0xff] %vm923, %v5707
        %5932 = vst [vmem:[%s5 + $0x38] sm:$0xff] %v5708
        %5933 = vst [vmem:[%s5 + $0x40] sm:$0xff] %v5709
        %5934 = vst [vmem:[%s5 + $0x48] sm:$0xff] %v5710
        %5935 = vst [vmem:[%s5 + $0x50] sm:$0xff] %v5711
        %5936 = vst [vmem:[%s5 + $0x58] sm:$0xff] %v5712
        %5937 = vst [vmem:[%s5 + $0x60] sm:$0xff] %v5713
        %5938 = vst.msk [vmem:[%s5 + $0x68] sm:$0xff] %vm923, %v5714
        %5939 = vst [vmem:[%s5 + $0x70] sm:$0xff] %v5715
        %5940 = vst [vmem:[%s5 + $0x78] sm:$0xff] %v5716
        %5941 = vst [vmem:[%s5 + $0x80] sm:$0xff] %v5717
        %5942 = vst [vmem:[%s5 + $0x88] sm:$0xff] %v5718
        %5943 = vst [vmem:[%s5 + $0x90] sm:$0xff] %v5719
        %5944 = vst [vmem:[%s5 + $0x98] sm:$0xff] %v5720
        %5945 = vst.msk [vmem:[%s5 + $0xa0] sm:$0xff] %vm923, %v5721
        %5946 = vst [vmem:[%s5 + $0xa8] sm:$0xff] %v5722
        %5947 = vst [vmem:[%s5 + $0xb0] sm:$0xff] %v5723
        %5948 = vst [vmem:[%s5 + $0xb8] sm:$0xff] %v5724
        %5949 = vst [vmem:[%s5 + $0xc0] sm:$0xff] %v5725
        %5950 = vst [vmem:[%s5 + $0xc8] sm:$0xff] %v5726
        %5951 = vst [vmem:[%s5 + $0xd0] sm:$0xff] %v5727
        %5952 = vst.msk [vmem:[%s5 + $0xd8] sm:$0xff] %vm923, %v5728
        %5953 = vst [vmem:[%s5 + $0xe0] sm:$0xff] %v5729
        %5954 = vst [vmem:[%s5 + $0xe8] sm:$0xff] %v5730
        %5955 = vst [vmem:[%s5 + $0xf0] sm:$0xff] %v5731
        %5956 = vst [vmem:[%s5 + $0xf8] sm:$0xff] %v5732
        %5957 = vst [vmem:[%s5 + $0x100] sm:$0xff] %v5733
        %5958 = vst [vmem:[%s5 + $0x108] sm:$0xff] %v5734
        %5959 = vst.msk [vmem:[%s5 + $0x110] sm:$0xff] %vm923, %v5735
        %5960 = vst [vmem:[%s5 + $0x118] sm:$0xff] %v5736
        %5961 = vst [vmem:[%s5 + $0x120] sm:$0xff] %v5737
        %5962 = vst [vmem:[%s5 + $0x128] sm:$0xff] %v5738
        %5963 = vst [vmem:[%s5 + $0x130] sm:$0xff] %v5739
        %5964 = vst [vmem:[%s5 + $0x138] sm:$0xff] %v5740
        %5965 = vst [vmem:[%s5 + $0x140] sm:$0xff] %v5741
        %5966 = vst.msk [vmem:[%s5 + $0x148] sm:$0xff] %vm923, %v5742
        %5967 = vst [vmem:[%s5 + $0x150] sm:$0xff] %v5743
        %5968 = vst [vmem:[%s5 + $0x158] sm:$0xff] %v5744
        %5969 = vst [vmem:[%s5 + $0x160] sm:$0xff] %v5745
        %5970 = vst [vmem:[%s5 + $0x168] sm:$0xff] %v5746
        %5971 = vst [vmem:[%s5 + $0x170] sm:$0xff] %v5747
        %5972 = vst [vmem:[%s5 + $0x178] sm:$0xff] %v5748
        %5973 = vst.msk [vmem:[%s5 + $0x180] sm:$0xff] %vm923, %v5749
        %5974 = vst [vmem:[%s5 + $0x188] sm:$0xff] %v5750
        %5975 = vst [vmem:[%s5 + $0x190] sm:$0xff] %v5751
        %5976 = vst [vmem:[%s5 + $0x198] sm:$0xff] %v5752
        %5977 = vst [vmem:[%s5 + $0x1a0] sm:$0xff] %v5753
        %5978 = vst [vmem:[%s5 + $0x1a8] sm:$0xff] %v5754
        %5979 = vst [vmem:[%s5 + $0x1b0] sm:$0xff] %v5755
        %5980 = vst.msk [vmem:[%s5 + $0x1b8] sm:$0xff] %vm923, %v5756
        %5981 = vst [vmem:[%s5 + $0x1c0] sm:$0xff] %v5757
        %5982 = vst [vmem:[%s5 + $0x1c8] sm:$0xff] %v5758
        %5983 = vst [vmem:[%s5 + $0x1d0] sm:$0xff] %v5759
        %5984 = vst [vmem:[%s5 + $0x1d8] sm:$0xff] %v5760
        %5985 = vst [vmem:[%s5 + $0x1e0] sm:$0xff] %v5761
        %5986 = vst [vmem:[%s5 + $0x1e8] sm:$0xff] %v5762
        %5987 = vst.msk [vmem:[%s5 + $0x1f0] sm:$0xff] %vm923, %v5763
        %5988 = vst [vmem:[%s5 + $0x1f8] sm:$0xff] %v5764
        %5989 = vst [vmem:[%s5 + $0x200] sm:$0xff] %v5765
        %5990 = vst [vmem:[%s5 + $0x208] sm:$0xff] %v5766
        %5991 = vst [vmem:[%s5 + $0x210] sm:$0xff] %v5767
        %5992 = vst [vmem:[%s5 + $0x218] sm:$0xff] %v5768
        %5993 = vst [vmem:[%s5 + $0x220] sm:$0xff] %v5769
        %5994 = vst.msk [vmem:[%s5 + $0x228] sm:$0xff] %vm923, %v5770
        %5995 = vst [vmem:[%s5 + $0x230] sm:$0xff] %v5771
        %5996 = vst [vmem:[%s5 + $0x238] sm:$0xff] %v5772
        %5997 = vst [vmem:[%s5 + $0x240] sm:$0xff] %v5773
        %5998 = vst [vmem:[%s5 + $0x248] sm:$0xff] %v5774
        %5999 = vst [vmem:[%s5 + $0x250] sm:$0xff] %v5775
        %6000 = vst [vmem:[%s5 + $0x258] sm:$0xff] %v5776
        %6001 = vst.msk [vmem:[%s5 + $0x260] sm:$0xff] %vm923, %v5777
        %6002 = vst [vmem:[%s5 + $0x268] sm:$0xff] %v5778
        %6003 = vst [vmem:[%s5 + $0x270] sm:$0xff] %v5779
        %6004 = vst [vmem:[%s5 + $0x278] sm:$0xff] %v5780
        %6005 = vst [vmem:[%s5 + $0x280] sm:$0xff] %v5781
        %6006 = vst [vmem:[%s5 + $0x288] sm:$0xff] %v5782
        %6007 = vst [vmem:[%s5 + $0x290] sm:$0xff] %v5783
        %6008 = vst.msk [vmem:[%s5 + $0x298] sm:$0xff] %vm923, %v5784
        %6009 = vst [vmem:[%s5 + $0x2a0] sm:$0xff] %v5785
        %6010 = vst [vmem:[%s5 + $0x2a8] sm:$0xff] %v5786
        %6011 = vst [vmem:[%s5 + $0x2b0] sm:$0xff] %v5787
        %6012 = vst [vmem:[%s5 + $0x2b8] sm:$0xff] %v5788
        %6013 = vst [vmem:[%s5 + $0x2c0] sm:$0xff] %v5789
        %6014 = vst [vmem:[%s5 + $0x2c8] sm:$0xff] %v5790
        %6015 = vst.msk [vmem:[%s5 + $0x2d0] sm:$0xff] %vm923, %v5791
        %6016 = vst [vmem:[%s5 + $0x2d8] sm:$0xff] %v5792
        %6017 = vst [vmem:[%s5 + $0x2e0] sm:$0xff] %v5793
        %6018 = vst [vmem:[%s5 + $0x2e8] sm:$0xff] %v5794
        %6019 = vst [vmem:[%s5 + $0x2f0] sm:$0xff] %v5795
        %6020 = vst [vmem:[%s5 + $0x2f8] sm:$0xff] %v5796
        %6021 = vst [vmem:[%s5 + $0x300] sm:$0xff] %v5797
        %6022 = vst.msk [vmem:[%s5 + $0x308] sm:$0xff] %vm923, %v5798
        %6023 = vst [vmem:[%s5 + $0x310] sm:$0xff] %v5799
        %6024 = vst [vmem:[%s5 + $0x318] sm:$0xff] %v5800
        %6025 = vst [vmem:[%s5 + $0x320] sm:$0xff] %v5801
        %6026 = vst [vmem:[%s5 + $0x328] sm:$0xff] %v5802
        %6027 = vst [vmem:[%s5 + $0x330] sm:$0xff] %v5803
        %6028 = vst [vmem:[%s5 + $0x338] sm:$0xff] %v5804
        %6029 = vst.msk [vmem:[%s5 + $0x340] sm:$0xff] %vm923, %v5805
        %6030 = vst [vmem:[%s5 + $0x348] sm:$0xff] %v5806
        %6031 = vst [vmem:[%s5 + $0x350] sm:$0xff] %v5807
        %6032 = vst [vmem:[%s5 + $0x358] sm:$0xff] %v5808
        %6033 = vst [vmem:[%s5 + $0x360] sm:$0xff] %v5809
        %6034 = vst [vmem:[%s5 + $0x368] sm:$0xff] %v5810
        %6035 = vst [vmem:[%s5 + $0x370] sm:$0xff] %v5811
        %6036 = vst.msk [vmem:[%s5 + $0x378] sm:$0xff] %vm923, %v5812
        %6037 = vst [vmem:[%s5 + $0x380] sm:$0xff] %v5813
        %6038 = vst [vmem:[%s5 + $0x388] sm:$0xff] %v5814
        %6039 = vst [vmem:[%s5 + $0x390] sm:$0xff] %v5815
        %6040 = vst [vmem:[%s5 + $0x398] sm:$0xff] %v5816
        %6041 = vst [vmem:[%s5 + $0x3a0] sm:$0xff] %v5817
        %6042 = vst [vmem:[%s5 + $0x3a8] sm:$0xff] %v5818
        %6043 = vst.msk [vmem:[%s5 + $0x3b0] sm:$0xff] %vm923, %v5819
        %6044 = vst [vmem:[%s5 + $0x3b8] sm:$0xff] %v5820
        %6045 = vst [vmem:[%s5 + $0x3c0] sm:$0xff] %v5821
        %6046 = vst [vmem:[%s5 + $0x3c8] sm:$0xff] %v5822
        %6047 = vst [vmem:[%s5 + $0x3d0] sm:$0xff] %v5823
        %6048 = vst [vmem:[%s5 + $0x3d8] sm:$0xff] %v5824
        %6049 = vst [vmem:[%s5 + $0x3e0] sm:$0xff] %v5825
        %6050 = vst.msk [vmem:[%s5 + $0x3e8] sm:$0xff] %vm923, %v5826
        %6051 = vst [vmem:[%s5 + $0x3f0] sm:$0xff] %v5827
        %6052 = vst [vmem:[%s5 + $0x3f8] sm:$0xff] %v5828
        %6053 = vst [vmem:[%s5 + $0x400] sm:$0xff] %v5829
        %6054 = vst [vmem:[%s5 + $0x408] sm:$0xff] %v5830
        %6055 = vst [vmem:[%s5 + $0x410] sm:$0xff] %v5831
        %6056 = vst [vmem:[%s5 + $0x418] sm:$0xff] %v5832
        %6057 = vst.msk [vmem:[%s5 + $0x420] sm:$0xff] %vm923, %v5833
        %6058 = vst [vmem:[%s5 + $0x428] sm:$0xff] %v5834
        %6059 = vst [vmem:[%s5 + $0x430] sm:$0xff] %v5835
        %6060 = vst [vmem:[%s5 + $0x438] sm:$0xff] %v5836
        %6061 = vst [vmem:[%s5 + $0x440] sm:$0xff] %v5837
        %6062 = vst [vmem:[%s5 + $0x448] sm:$0xff] %v5838
        %6063 = vst [vmem:[%s5 + $0x450] sm:$0xff] %v5839
        %6064 = vst.msk [vmem:[%s5 + $0x458] sm:$0xff] %vm923, %v5840
        %6065 = vst [vmem:[%s5 + $0x460] sm:$0xff] %v5841
        %6066 = vst [vmem:[%s5 + $0x468] sm:$0xff] %v5842
        %6067 = vst [vmem:[%s5 + $0x470] sm:$0xff] %v5843
        %6068 = vst [vmem:[%s5 + $0x478] sm:$0xff] %v5844
        %6069 = vst [vmem:[%s5 + $0x480] sm:$0xff] %v5845
        %6070 = vst [vmem:[%s5 + $0x488] sm:$0xff] %v5846
        %6071 = vst.msk [vmem:[%s5 + $0x490] sm:$0xff] %vm923, %v5847
        %6072 = vst [vmem:[%s5 + $0x498] sm:$0xff] %v5848
        %6073 = vst [vmem:[%s5 + $0x4a0] sm:$0xff] %v5849
        %6074 = vst [vmem:[%s5 + $0x4a8] sm:$0xff] %v5850
        %6075 = vst [vmem:[%s5 + $0x4b0] sm:$0xff] %v5851
        %6076 = vst [vmem:[%s5 + $0x4b8] sm:$0xff] %v5852
        %6077 = vst [vmem:[%s5 + $0x4c0] sm:$0xff] %v5853
        %6078 = vst.msk [vmem:[%s5 + $0x4c8] sm:$0xff] %vm923, %v5854
        %6079 = vst [vmem:[%s5 + $0x4d0] sm:$0xff] %v5855
        %6080 = vst [vmem:[%s5 + $0x4d8] sm:$0xff] %v5856
        %6081 = vst [vmem:[%s5 + $0x4e0] sm:$0xff] %v5857
        %6082 = vst [vmem:[%s5 + $0x4e8] sm:$0xff] %v5858
        %6083 = vst [vmem:[%s5 + $0x4f0] sm:$0xff] %v5859
        %6084 = vst [vmem:[%s5 + $0x4f8] sm:$0xff] %v5860
        %6085 = vst.msk [vmem:[%s5 + $0x500] sm:$0xff] %vm923, %v5861
        %6086 = vst [vmem:[%s5 + $0x508] sm:$0xff] %v5862
        %6087 = vst [vmem:[%s5 + $0x510] sm:$0xff] %v5863
        %6088 = vst [vmem:[%s5 + $0x518] sm:$0xff] %v5864
        %6089 = vst [vmem:[%s5 + $0x520] sm:$0xff] %v5865
        %6090 = vst [vmem:[%s5 + $0x528] sm:$0xff] %v5866
        %6091 = vst [vmem:[%s5 + $0x530] sm:$0xff] %v5867
        %6092 = vst.msk [vmem:[%s5 + $0x538] sm:$0xff] %vm923, %v5868
        %6093 = vst [vmem:[%s5 + $0x540] sm:$0xff] %v5869
        %6094 = vst [vmem:[%s5 + $0x548] sm:$0xff] %v5870
        %6095 = vst [vmem:[%s5 + $0x550] sm:$0xff] %v5871
        %6096 = vst [vmem:[%s5 + $0x558] sm:$0xff] %v5872
        %6097 = vst [vmem:[%s5 + $0x560] sm:$0xff] %v5873
        %6098 = vst [vmem:[%s5 + $0x568] sm:$0xff] %v5874
        %6099 = vst.msk [vmem:[%s5 + $0x570] sm:$0xff] %vm923, %v5875
        %6100 = vst [vmem:[%s5 + $0x578] sm:$0xff] %v5876
        %6101 = vst [vmem:[%s5 + $0x580] sm:$0xff] %v5877
        %6102 = vst [vmem:[%s5 + $0x588] sm:$0xff] %v5878
        %6103 = vst [vmem:[%s5 + $0x590] sm:$0xff] %v5879
        %6104 = vst [vmem:[%s5 + $0x598] sm:$0xff] %v5880
        %6105 = vst [vmem:[%s5 + $0x5a0] sm:$0xff] %v5881
        %6106 = vst.msk [vmem:[%s5 + $0x5a8] sm:$0xff] %vm923, %v5882
        %6107 = vst [vmem:[%s5 + $0x5b0] sm:$0xff] %v5883
        %6108 = vst [vmem:[%s5 + $0x5b8] sm:$0xff] %v5884
        %6109 = vst [vmem:[%s5 + $0x5c0] sm:$0xff] %v5885
        %6110 = vst [vmem:[%s5 + $0x5c8] sm:$0xff] %v5886
        %6111 = vst [vmem:[%s5 + $0x5d0] sm:$0xff] %v5887
        %6112 = vst [vmem:[%s5 + $0x5d8] sm:$0xff] %v5888
        %6113 = vst.msk [vmem:[%s5 + $0x5e0] sm:$0xff] %vm923, %v5889
        %6114 = vst [vmem:[%s5 + $0x5e8] sm:$0xff] %v5890
        %6115 = vst [vmem:[%s5 + $0x5f0] sm:$0xff] %v5891
        %6116 = vst [vmem:[%s5 + $0x5f8] sm:$0xff] %v5892
        %6117 = vst [vmem:[%s5 + $0x600] sm:$0xff] %v5893
        %6118 = vst [vmem:[%s5 + $0x608] sm:$0xff] %v5894
        %6119 = vst [vmem:[%s5 + $0x610] sm:$0xff] %v5895
        %6120 = vst.msk [vmem:[%s5 + $0x618] sm:$0xff] %vm923, %v5896
        %6121 = vst [vmem:[%s5 + $0x620] sm:$0xff] %v5897
        %6122 = vst [vmem:[%s5 + $0x628] sm:$0xff] %v5898
        %6123 = vst [vmem:[%s5 + $0x630] sm:$0xff] %v5899
        %6124 = vst [vmem:[%s5 + $0x638] sm:$0xff] %v5900
        %6125 = vst [vmem:[%s5 + $0x640] sm:$0xff] %v5901
        %6126 = vst [vmem:[%s5 + $0x648] sm:$0xff] %v5902
        %6127 = vst.msk [vmem:[%s5 + $0x650] sm:$0xff] %vm923, %v5903
        %6128 = vst [vmem:[%s5 + $0x658] sm:$0xff] %v5904
        %6129 = vst [vmem:[%s5 + $0x660] sm:$0xff] %v5905
        %6130 = vst [vmem:[%s5 + $0x668] sm:$0xff] %v5906
        %6131 = vst [vmem:[%s5 + $0x670] sm:$0xff] %v5907
        %6132 = vst [vmem:[%s5 + $0x678] sm:$0xff] %v5908
        %6133 = vst [vmem:[%s5 + $0x680] sm:$0xff] %v5909
        %6134 = vst.msk [vmem:[%s5 + $0x688] sm:$0xff] %vm923, %v5910
        %6135 = vst [vmem:[%s5 + $0x690] sm:$0xff] %v5911
        %6136 = vst [vmem:[%s5 + $0x698] sm:$0xff] %v5912
        %6137 = vst [vmem:[%s5 + $0x6a0] sm:$0xff] %v5913
        %6138 = vst [vmem:[%s5 + $0x6a8] sm:$0xff] %v5914
        %6139 = vst [vmem:[%s5 + $0x6b0] sm:$0xff] %v5915
        %6140 = vst [vmem:[%s5 + $0x6b8] sm:$0xff] %v5916
        %6141 = vst.msk [vmem:[%s5 + $0x6c0] sm:$0xff] %vm923, %v5917
        %6142 = vst [vmem:[%s5 + $0x6c8] sm:$0xff] %v5918
        %6143 = vst [vmem:[%s5 + $0x6d0] sm:$0xff] %v5919
        %6144 = vst [vmem:[%s5 + $0x6d8] sm:$0xff] %v5920
        %6145 = vst [vmem:[%s5 + $0x6e0] sm:$0xff] %v5921
        %6146 = vst [vmem:[%s5 + $0x6e8] sm:$0xff] %v5922
        %6147 = vst [vmem:[%s5 + $0x6f0] sm:$0xff] %v5923
        %6148 = vst.msk [vmem:[%s5 + $0x6f8] sm:$0xff] %vm923, %v5924
        // Predicated region
        $region83: #{module_forward.1} parent=73 // pred_check
          %p6149 = pneg %p159
        $region84: #{module_forward.1} parent=73 // pred_check_branch
          %6151 = sbr.rel (%p6149) target = $region86
        $region85: #{module_forward.1} parent=73 // pred_region
          _
        $region86: #{module_forward.1} parent=73 // pred_fallthru
          _
        // Predicated region
        $region87: #{module_forward.1} parent=73 // pred_check
          %p6152 = pneg %p159
        $region88: #{module_forward.1} parent=73 // pred_check_branch
          %6154 = sbr.rel (%p6152) target = $region90
        $region89: #{module_forward.1} parent=73 // pred_region
          _
        $region90: #{module_forward.1} parent=73 // pred_fallthru
          _
      $region74: #{module_forward.1} parent=5 // pred_fallthru
        _
      %p6155 = scmp.le.s32.totalorder 2, %s11
      // Predicated region
      $region91: #{module_forward.1} parent=5 // pred_check
        %p6156 = pneg %p6155
      $region92: #{module_forward.1} parent=5 // pred_check_branch
        %6158 = sbr.rel (%p6156) target = $region94
      $region93: #{module_forward.1} parent=5 // pred_region
        %s6159 = ssub.s32 %s11, 2
      $region94: #{module_forward.1} parent=5 // pred_fallthru
        _
    $region6: #{module_forward.1} parent=1 // loop_footer
      %s15 = sadd.s32 1, %s11
    $region7: #{module_forward.1} parent=1 // loop_footer_branch
      %10 = sbr.rel target = $region3
    $region8: #{module_forward.1} parent=1 // loop_exit
      _

</llo_original>
